<compile_context>
chip_gen: v7x
topology: tpu7x:2x2x1
jax: 0.10.0
libtpu: 0.0.40
codegen_flags: <defaults>
</compile_context>

<pallas_src>
import functools

import jax
import jax.numpy as jnp
from jax.experimental import pallas as pl
from jax.experimental.pallas import tpu as pltpu


def _fused_conv_bn_kernel(x_ref, w_ref, gamma_ref, beta_ref, o_ref, *,
                          inv_count, eps, compute_dtype):
    """One Cout-block of: y = W @ x (1x1 conv) + training-mode BN normalize.

    x_ref:     [N, Cin, HWp]  (grid-constant; HWp = HW padded to mult. of 128)
    w_ref:     [Cb, Cin]      (this grid step's channel slice of the weight)
    gamma_ref: [Cb, 1]
    beta_ref:  [Cb, 1]
    o_ref:     [N, Cb, HWp]
    """
    w = w_ref[...]
    if compute_dtype is not None:
        w = w.astype(compute_dtype)

    n = x_ref.shape[0]
    cb = w_ref.shape[0]
    s1 = jnp.zeros((cb, 1), jnp.float32)
    s2 = jnp.zeros((cb, 1), jnp.float32)
    ys = []
    for b in range(n):                       # static, tiny batch loop
        xb = x_ref[b]                        # [Cin, HWp]
        if compute_dtype is not None:
            xb = xb.astype(compute_dtype)
        yb = jnp.dot(w, xb, preferred_element_type=jnp.float32)   # [Cb, HWp]
        s1 = s1 + jnp.sum(yb, axis=1, keepdims=True)
        s2 = s2 + jnp.sum(yb * yb, axis=1, keepdims=True)
        ys.append(yb)

    # Biased (training-mode) batch statistics.  Padded spatial columns of y
    # are exactly zero (W @ 0) so they do not perturb the sums; inv_count is
    # 1/(N*HW_real), not 1/(N*HWp).
    mean = s1 * inv_count
    var = jnp.maximum(s2 * inv_count - mean * mean, 0.0)
    scale = gamma_ref[...] * jax.lax.rsqrt(var + eps)   # [Cb, 1]
    shift = beta_ref[...] - mean * scale

    for b in range(n):
        o_ref[b] = (ys[b] * scale + shift).astype(o_ref.dtype)


def conv1x1_batchnorm(x_nchw, weight, gamma, beta, *, eps=1e-5,
                      compute_dtype=None):
    """x_nchw: [N, Cin, H, W]; weight: [Cout, Cin] or [Cout, Cin, 1, 1];
    gamma/beta: [Cout].  Returns [N, Cout, H, W] (training-mode BN)."""
    n, cin, h, w_sp = x_nchw.shape
    if weight.ndim == 4:
        weight = weight.reshape(weight.shape[0], weight.shape[1])
    cout = weight.shape[0]
    assert weight.shape[1] == cin

    hw = h * w_sp
    hwp = max(128, pl.cdiv(hw, 128) * 128)        # lane-dense spatial extent

    # Channels-first reshape is free; zero-pad spatial to a lane multiple.
    x3 = x_nchw.reshape(n, cin, hw)
    if hwp != hw:
        x3 = jnp.pad(x3, ((0, 0), (0, 0), (0, hwp - hw)))

    # Split Cout across the grid so both v7x TensorCores get work (stats are
    # per-channel, so the channel split is fully independent).
    cblk = cout // 2 if (cout % 2 == 0 and (cout // 2) % 8 == 0) else cout
    n_blk = cout // cblk

    # TODO(synk): this fused path keeps the whole padded x resident in VMEM;
    # for large N*H*W (e.g. 56x56 stages) a two-pass tiled variant is needed.
    kernel = functools.partial(
        _fused_conv_bn_kernel,
        inv_count=1.0 / float(n * hw), eps=float(eps),
        compute_dtype=compute_dtype)

    out_p = pl.pallas_call(
        kernel,
        out_shape=jax.ShapeDtypeStruct((n, cout, hwp), x_nchw.dtype),
        grid=(n_blk,),
        in_specs=[
            pl.BlockSpec((n, cin, hwp), lambda j: (0, 0, 0)),   # x (grid-const)
            pl.BlockSpec((cblk, cin), lambda j: (j, 0)),        # weight slice
            pl.BlockSpec((cblk, 1), lambda j: (j, 0)),          # gamma slice
            pl.BlockSpec((cblk, 1), lambda j: (j, 0)),          # beta slice
        ],
        out_specs=pl.BlockSpec((n, cblk, hwp), lambda j: (0, j, 0)),
        compiler_params=pltpu.CompilerParams(
            dimension_semantics=("parallel",)),
    )(x3, weight,
      gamma.reshape(cout, 1).astype(jnp.float32),
      beta.reshape(cout, 1).astype(jnp.float32))

    # TODO(synk): BatchNorm2d in training mode also updates running_mean /
    # running_var (momentum=0.1); that buffer side effect is not part of the
    # returned forward value and is not modeled here.
    return out_p[:, :, :hw].reshape(n, cout, h, w_sp)


# ---------------------------------------------------------------------------
# Pure-JAX reference (1x1 conv + training-mode BatchNorm)
# ---------------------------------------------------------------------------
def _reference(x_nchw, weight, gamma, beta, eps=1e-5):
    n, cin, h, w_sp = x_nchw.shape
    if weight.ndim == 4:
        weight = weight.reshape(weight.shape[0], weight.shape[1])
    cout = weight.shape[0]
    xf = jnp.transpose(x_nchw, (0, 2, 3, 1)).reshape(-1, cin)
    y = jnp.dot(xf, weight.T, precision=jax.lax.Precision.HIGHEST)
    mean = y.mean(axis=0, keepdims=True)
    var = ((y - mean) ** 2).mean(axis=0, keepdims=True)    # biased variance
    out = (y - mean) / jnp.sqrt(var + eps) * gamma + beta
    return jnp.transpose(out.reshape(n, h, w_sp, cout), (0, 3, 1, 2))


if __name__ == "__main__":
    # The module's own shapes are small: x = [1, 2304, 7, 7], 2304->384 1x1.
    N, CIN, COUT, H, W = 1, 2304, 384, 7, 7

    key = jax.random.PRNGKey(0)
    kx, kw, kg, kb = jax.random.split(key, 4)
    x = jax.random.normal(kx, (N, CIN, H, W), dtype=jnp.float32)
    weight = jax.random.normal(kw, (COUT, CIN, 1, 1), dtype=jnp.float32) * 0.02
    gamma = 1.0 + 0.1 * jax.random.normal(kg, (COUT,), dtype=jnp.float32)
    beta = 0.1 * jax.random.normal(kb, (COUT,), dtype=jnp.float32)

    out = jax.jit(conv1x1_batchnorm)(x, weight, gamma, beta)
    out = jax.block_until_ready(out)

    ref = _reference(x, weight, gamma, beta)
    assert out.shape == (N, COUT, H, W)
    max_err = float(jnp.max(jnp.abs(out - ref)))
    assert jnp.allclose(out, ref, atol=2e-2, rtol=2e-2), f"max abs err {max_err}"

    print("KERNEL_OK")
</pallas_src>

<mosaic_0001>
module attributes {stable_mosaic.version = 11 : i64} {
  func.func @_fused_conv_bn_kernel(%arg0: i32, %arg1: memref<1x2304x128xf32, #tpu.memory_space<vmem>>, %arg2: memref<192x2304xf32, #tpu.memory_space<vmem>>, %arg3: memref<192x1xf32, #tpu.memory_space<vmem>>, %arg4: memref<192x1xf32, #tpu.memory_space<vmem>>, %arg5: memref<1x192x128xf32, #tpu.memory_space<vmem>>) attributes {dimension_semantics = [#tpu.dimension_semantics<parallel>], iteration_bounds = array<i64: 2>, scalar_prefetch = 0 : i64, scratch_operands = 0 : i64, tpu.core_type = #tpu.core_type<tc>, window_params = [{pipeline_mode = #tpu.pipeline_mode<synchronous>, transform_indices = @transform_0, window_bounds = array<i64: 1, 2304, 128>}, {transform_indices = @transform_1, window_bounds = array<i64: 192, 2304>}, {transform_indices = @transform_2, window_bounds = array<i64: 192, 1>}, {transform_indices = @transform_3, window_bounds = array<i64: 192, 1>}, {transform_indices = @transform_4, window_bounds = array<i64: 1, 192, 128>}]} {
    %c0 = arith.constant 0 : index
    %c0_0 = arith.constant 0 : index
    %0 = vector.load %arg2[%c0, %c0_0] : memref<192x2304xf32, #tpu.memory_space<vmem>>, vector<192x2304xf32>
    %cst = arith.constant 0.000000e+00 : f32
    %1 = vector.broadcast %cst : f32 to vector<192x1xf32>
    %cst_1 = arith.constant 0.000000e+00 : f32
    %2 = vector.broadcast %cst_1 : f32 to vector<192x1xf32>
    %c0_2 = arith.constant 0 : index
    %c0_3 = arith.constant 0 : index
    %c0_4 = arith.constant 0 : index
    %3 = vector.load %arg1[%c0_2, %c0_3, %c0_4] : memref<1x2304x128xf32, #tpu.memory_space<vmem>>, vector<1x2304x128xf32>
    %4 = vector.shape_cast %3 : vector<1x2304x128xf32> to vector<2304x128xf32>
    %cst_5 = arith.constant dense<0.000000e+00> : vector<192x128xf32>
    %5 = tpu.matmul %0, %4, %cst_5 {dimension_numbers = #tpu.dot_dimension_numbers<[1], [0], [0], [1], [0, 0, 1, 1], [], []>} : vector<192x2304xf32>, vector<2304x128xf32>, vector<192x128xf32> -> vector<192x128xf32>
    %cst_6 = arith.constant dense<0.000000e+00> : vector<192xf32>
    %6 = vector.multi_reduction <add>, %5, %cst_6 [1] : vector<192x128xf32> to vector<192xf32>
    %7 = vector.shape_cast %6 : vector<192xf32> to vector<192x1xf32>
    %8 = arith.addf %1, %7 : vector<192x1xf32>
    %9 = arith.mulf %5, %5 : vector<192x128xf32>
    %cst_7 = arith.constant dense<0.000000e+00> : vector<192xf32>
    %10 = vector.multi_reduction <add>, %9, %cst_7 [1] : vector<192x128xf32> to vector<192xf32>
    %11 = vector.shape_cast %10 : vector<192xf32> to vector<192x1xf32>
    %12 = arith.addf %2, %11 : vector<192x1xf32>
    %cst_8 = arith.constant 0.0204081628 : f32
    %13 = vector.broadcast %cst_8 : f32 to vector<192x1xf32>
    %14 = arith.mulf %8, %13 : vector<192x1xf32>
    %cst_9 = arith.constant 0.0204081628 : f32
    %15 = vector.broadcast %cst_9 : f32 to vector<192x1xf32>
    %16 = arith.mulf %12, %15 : vector<192x1xf32>
    %17 = arith.mulf %14, %14 : vector<192x1xf32>
    %18 = arith.subf %16, %17 : vector<192x1xf32>
    %cst_10 = arith.constant 0.000000e+00 : f32
    %19 = vector.broadcast %cst_10 : f32 to vector<192x1xf32>
    %20 = arith.maximumf %18, %19 : vector<192x1xf32>
    %c0_11 = arith.constant 0 : index
    %c0_12 = arith.constant 0 : index
    %21 = vector.load %arg3[%c0_11, %c0_12] : memref<192x1xf32, #tpu.memory_space<vmem>>, vector<192x1xf32>
    %cst_13 = arith.constant 9.99999974E-6 : f32
    %22 = vector.broadcast %cst_13 : f32 to vector<192x1xf32>
    %23 = arith.addf %20, %22 : vector<192x1xf32>
    %24 = math.rsqrt %23 : vector<192x1xf32>
    %25 = arith.mulf %21, %24 : vector<192x1xf32>
    %c0_14 = arith.constant 0 : index
    %c0_15 = arith.constant 0 : index
    %26 = vector.load %arg4[%c0_14, %c0_15] : memref<192x1xf32, #tpu.memory_space<vmem>>, vector<192x1xf32>
    %27 = arith.mulf %14, %25 : vector<192x1xf32>
    %28 = arith.subf %26, %27 : vector<192x1xf32>
    %29 = vector.broadcast %25 : vector<192x1xf32> to vector<192x128xf32>
    %30 = arith.mulf %5, %29 : vector<192x128xf32>
    %31 = vector.broadcast %28 : vector<192x1xf32> to vector<192x128xf32>
    %32 = arith.addf %30, %31 : vector<192x128xf32>
    %c0_16 = arith.constant 0 : index
    %c0_17 = arith.constant 0 : index
    %c0_18 = arith.constant 0 : index
    %33 = vector.load %arg5[%c0_16, %c0_17, %c0_18] : memref<1x192x128xf32, #tpu.memory_space<vmem>>, vector<1x192x128xf32>
    %34 = vector.shape_cast %33 : vector<1x192x128xf32> to vector<192x128xf32>
    %35 = vector.shape_cast %32 : vector<192x128xf32> to vector<1x192x128xf32>
    tpu.vector_store %arg5[%c0_16, %c0_17, %c0_18], %35 {strides = array<i32>} : memref<1x192x128xf32, #tpu.memory_space<vmem>>, vector<1x192x128xf32>,
    return
  }
  func.func @transform_0(%arg0: i32) -> (i32, i32, i32) {
    %c0_i32 = arith.constant 0 : i32
    %c0_i32_0 = arith.constant 0 : i32
    %c0_i32_1 = arith.constant 0 : i32
    %c0_i32_2 = arith.constant 0 : i32
    return %c0_i32, %c0_i32_0, %c0_i32_1 : i32, i32, i32
  }
  func.func @transform_1(%arg0: i32) -> (i32, i32) {
    %c0_i32 = arith.constant 0 : i32
    %c0_i32_0 = arith.constant 0 : i32
    return %arg0, %c0_i32 : i32, i32
  }
  func.func @transform_2(%arg0: i32) -> (i32, i32) {
    %c0_i32 = arith.constant 0 : i32
    %c0_i32_0 = arith.constant 0 : i32
    return %arg0, %c0_i32 : i32, i32
  }
  func.func @transform_3(%arg0: i32) -> (i32, i32) {
    %c0_i32 = arith.constant 0 : i32
    %c0_i32_0 = arith.constant 0 : i32
    return %arg0, %c0_i32 : i32, i32
  }
  func.func @transform_4(%arg0: i32) -> (i32, i32, i32) {
    %c0_i32 = arith.constant 0 : i32
    %c0_i32_0 = arith.constant 0 : i32
    %c0_i32_1 = arith.constant 0 : i32
    return %c0_i32, %arg0, %c0_i32_0 : i32, i32, i32
  }
}

</mosaic_0001>

<llo_original>
// kernel: conv1x1_batchnorm.1
$region0: #{conv1x1_batchnorm.1}
  #allocation0 [shape = 'u32[]', space=smem, size = 0x4, offset = 0x4, fixed_abs, tag = 'smem constant byte address 0x4 - core index']
  #allocation1 [shape = 'u32[144,128]{1,0:T(1,128)}', space=vmem, size = 0x12000, scoped, tag = 'internal scratch']
  %s0 = inlined_call_operand.vmem [shape: f32[1,2304,128], index: 0, kind: input, shape index: {}]
  %s1 = inlined_call_operand.vmem [shape: f32[384,2304], index: 1, kind: input, shape index: {}]
  %s2 = inlined_call_operand.vmem [shape: f32[384,1], index: 2, kind: input, shape index: {}]
  %s3 = inlined_call_operand.vmem [shape: f32[384,1], index: 3, kind: input, shape index: {}]
  %s4 = inlined_call_operand.vmem [shape: f32[1,384,128], index: 4, kind: output, shape index: {}]
  %s5 = sld [smem:[#allocation0]]
  $region49: #{conv1x1_batchnorm.1} parent=0
    _
  %s7 = ssub.s32 1, %s5
  %s8 = scalar_select 0, %s7, %s5
  loop: start=0, step=1, limit=4
  $region2: #{conv1x1_batchnorm.1} parent=0 // loop_pre_header
    _
  $region3: #{conv1x1_batchnorm.1} parent=0 // loop_header
    %s10 = sphi 0, %s14
    %p11 = scmp.ge.s32.totalorder %s10, 4
    %s18 = sphi 0, %s18
    %s20 = sphi 0, %s18
    %s21 = sphi 0, %s20
    %s35 = sphi 0, %s21
    %s41 = sphi 0, %s43
    %s44 = sphi 0, %s41
    %s45 = sphi 0, %s44
    %s61 = sphi 0, %s45
    %s67 = sphi 0, %s69
    %s70 = sphi 0, %s67
    %s71 = sphi 0, %s70
    %s87 = sphi 0, %s71
    %s93 = sphi 0, %s95
    %s96 = sphi 0, %s93
    %s97 = sphi 0, %s96
    %s113 = sphi 0, %s97
    %s119 = sphi 0, %s121
    %s122 = sphi 0, %s119
    %s123 = sphi 0, %s122
    %s139 = sphi 0, %s123
  $region4: #{conv1x1_batchnorm.1} parent=0 // loop_header_branch
    %13 = sbr.rel (%p11) target = $region8
  $region5: #{conv1x1_batchnorm.1} parent=0 // loop_body
    %s15 = ssub.s32 %s10, 1
    %s16 = ssub.s32 %s10, 2
    %s17 = sadd.s32 %s10, 1
    %s19 = sadd.s32 %s18, 1
    %p22 = scmp.eq.s32.totalorder %s10, 1
    %p23 = scmp.ne.s32.totalorder %s18, %s20
    %p24 = scmp.eq.s32.totalorder %s10, 0
    %p25 = por %p23, %p24
    %p26 = scmp.ne.s32.totalorder %s18, %s20
    %p27 = scmp.eq.s32.totalorder %s15, 1
    %p28 = por %p26, %p27
    %p29 = scmp.ne.s32.totalorder %s20, %s21
    %p30 = scmp.eq.s32.totalorder %s15, 0
    %p31 = por %p29, %p30
    %p32 = scmp.ne.s32.totalorder %s20, %s21
    %p33 = scmp.eq.s32.totalorder %s16, 1
    %p34 = por %p32, %p33
    %p36 = scmp.ne.s32.totalorder %s21, %s35
    %p37 = scmp.eq.s32.totalorder %s16, 0
    %p38 = por %p36, %p37
    %s39 = ssub.s32 %s10, %s17
    %p40 = scmp.eq.s32.totalorder %s39, 0
    %s42 = sadd.s32 %s41, 1
    %s43 = scalar_select %p40, %s41, %s42
    %p46 = pneg %p40
    %p47 = scmp.eq.s32.totalorder %s10, 1
    %p48 = por %p46, %p47
    %p49 = scmp.ne.s32.totalorder %s41, %s44
    %p50 = scmp.eq.s32.totalorder %s10, 0
    %p51 = por %p49, %p50
    %p52 = scmp.ne.s32.totalorder %s41, %s44
    %p53 = scmp.eq.s32.totalorder %s15, 1
    %p54 = por %p52, %p53
    %p55 = scmp.ne.s32.totalorder %s44, %s45
    %p56 = scmp.eq.s32.totalorder %s15, 0
    %p57 = por %p55, %p56
    %p58 = scmp.ne.s32.totalorder %s44, %s45
    %p59 = scmp.eq.s32.totalorder %s16, 1
    %p60 = por %p58, %p59
    %p62 = scmp.ne.s32.totalorder %s45, %s61
    %p63 = scmp.eq.s32.totalorder %s16, 0
    %p64 = por %p62, %p63
    %s65 = ssub.s32 %s10, %s17
    %p66 = scmp.eq.s32.totalorder %s65, 0
    %s68 = sadd.s32 %s67, 1
    %s69 = scalar_select %p66, %s67, %s68
    %p72 = pneg %p66
    %p73 = scmp.eq.s32.totalorder %s10, 1
    %p74 = por %p72, %p73
    %p75 = scmp.ne.s32.totalorder %s67, %s70
    %p76 = scmp.eq.s32.totalorder %s10, 0
    %p77 = por %p75, %p76
    %p78 = scmp.ne.s32.totalorder %s67, %s70
    %p79 = scmp.eq.s32.totalorder %s15, 1
    %p80 = por %p78, %p79
    %p81 = scmp.ne.s32.totalorder %s70, %s71
    %p82 = scmp.eq.s32.totalorder %s15, 0
    %p83 = por %p81, %p82
    %p84 = scmp.ne.s32.totalorder %s70, %s71
    %p85 = scmp.eq.s32.totalorder %s16, 1
    %p86 = por %p84, %p85
    %p88 = scmp.ne.s32.totalorder %s71, %s87
    %p89 = scmp.eq.s32.totalorder %s16, 0
    %p90 = por %p88, %p89
    %s91 = ssub.s32 %s10, %s17
    %p92 = scmp.eq.s32.totalorder %s91, 0
    %s94 = sadd.s32 %s93, 1
    %s95 = scalar_select %p92, %s93, %s94
    %p98 = pneg %p92
    %p99 = scmp.eq.s32.totalorder %s10, 1
    %p100 = por %p98, %p99
    %p101 = scmp.ne.s32.totalorder %s93, %s96
    %p102 = scmp.eq.s32.totalorder %s10, 0
    %p103 = por %p101, %p102
    %p104 = scmp.ne.s32.totalorder %s93, %s96
    %p105 = scmp.eq.s32.totalorder %s15, 1
    %p106 = por %p104, %p105
    %p107 = scmp.ne.s32.totalorder %s96, %s97
    %p108 = scmp.eq.s32.totalorder %s15, 0
    %p109 = por %p107, %p108
    %p110 = scmp.ne.s32.totalorder %s96, %s97
    %p111 = scmp.eq.s32.totalorder %s16, 1
    %p112 = por %p110, %p111
    %p114 = scmp.ne.s32.totalorder %s97, %s113
    %p115 = scmp.eq.s32.totalorder %s16, 0
    %p116 = por %p114, %p115
    %s117 = ssub.s32 %s10, %s17
    %p118 = scmp.eq.s32.totalorder %s117, 0
    %s120 = sadd.s32 %s119, 1
    %s121 = scalar_select %p118, %s119, %s120
    %p124 = pneg %p118
    %p125 = scmp.eq.s32.totalorder %s10, 1
    %p126 = por %p124, %p125
    %p127 = scmp.ne.s32.totalorder %s119, %s122
    %p128 = scmp.eq.s32.totalorder %s10, 0
    %p129 = por %p127, %p128
    %p130 = scmp.ne.s32.totalorder %s119, %s122
    %p131 = scmp.eq.s32.totalorder %s15, 1
    %p132 = por %p130, %p131
    %p133 = scmp.ne.s32.totalorder %s122, %s123
    %p134 = scmp.eq.s32.totalorder %s15, 0
    %p135 = por %p133, %p134
    %p136 = scmp.ne.s32.totalorder %s122, %s123
    %p137 = scmp.eq.s32.totalorder %s16, 1
    %p138 = por %p136, %p137
    %p140 = scmp.ne.s32.totalorder %s123, %s139
    %p141 = scmp.eq.s32.totalorder %s16, 0
    %p142 = por %p140, %p141
    %p143 = scmp.le.s32.totalorder 1, %s10
    %p144 = scmp.lt.s32.totalorder %s10, 3
    %p145 = pnand %p143, %p144
    %p146 = pneg %p145
    // Predicated region
    $region9: #{conv1x1_batchnorm.1} parent=5 // pred_check
      _
    $region10: #{conv1x1_batchnorm.1} parent=5 // pred_check_branch
      %148 = sbr.rel (%p145) target = $region12
    $region11: #{conv1x1_batchnorm.1} parent=5 // pred_region
      %s149 = ssub.s32 %s10, 1
      // Predicated region
      $region13: #{conv1x1_batchnorm.1} parent=11 // pred_check
        %p150 = pneg %p31
      $region14: #{conv1x1_batchnorm.1} parent=11 // pred_check_branch
        %152 = sbr.rel (%p150) target = $region16
      $region15: #{conv1x1_batchnorm.1} parent=11 // pred_region
        _
      $region16: #{conv1x1_batchnorm.1} parent=11 // pred_fallthru
        _
    $region12: #{conv1x1_batchnorm.1} parent=5 // pred_fallthru
      _
    %p153 = scmp.lt.s32.totalorder %s10, 2
    // Predicated region
    $region17: #{conv1x1_batchnorm.1} parent=5 // pred_check
      %p154 = pneg %p153
    $region18: #{conv1x1_batchnorm.1} parent=5 // pred_check_branch
      %156 = sbr.rel (%p154) target = $region20
    $region19: #{conv1x1_batchnorm.1} parent=5 // pred_region
      // Predicated region
      $region21: #{conv1x1_batchnorm.1} parent=19 // pred_check
        %p157 = pneg %p51
      $region22: #{conv1x1_batchnorm.1} parent=19 // pred_check_branch
        %159 = sbr.rel (%p157) target = $region24
      $region23: #{conv1x1_batchnorm.1} parent=19 // pred_region
        %s160 = smul.u32 24, %s10
        %p161 = scmp.lt.s32.totalorder %s160, 47
        %s162 = scalar_select %p161, %s160, 47
        %s163 = smul.addr %s162, 18
        %s164 = smul.addr %s163, 8
        %s165 = scalar_lea.vmem %s1, %s164
        %s166 = smul.u32 24, %s10
      $region24: #{conv1x1_batchnorm.1} parent=19 // pred_fallthru
        _
      // Predicated region
      $region25: #{conv1x1_batchnorm.1} parent=19 // pred_check
        %p167 = pneg %p77
      $region26: #{conv1x1_batchnorm.1} parent=19 // pred_check_branch
        %169 = sbr.rel (%p167) target = $region28
      $region27: #{conv1x1_batchnorm.1} parent=19 // pred_region
        %s170 = smul.u32 24, %s10
        %p171 = scmp.lt.s32.totalorder %s170, 47
        %s172 = scalar_select %p171, %s170, 47
        %s173 = smul.addr %s172, 8
        %s174 = scalar_lea.vmem %s2, %s173
        %s175 = smul.u32 24, %s10
      $region28: #{conv1x1_batchnorm.1} parent=19 // pred_fallthru
        _
      // Predicated region
      $region29: #{conv1x1_batchnorm.1} parent=19 // pred_check
        %p176 = pneg %p103
      $region30: #{conv1x1_batchnorm.1} parent=19 // pred_check_branch
        %178 = sbr.rel (%p176) target = $region32
      $region31: #{conv1x1_batchnorm.1} parent=19 // pred_region
        %s179 = smul.u32 24, %s10
        %p180 = scmp.lt.s32.totalorder %s179, 47
        %s181 = scalar_select %p180, %s179, 47
        %s182 = smul.addr %s181, 8
        %s183 = scalar_lea.vmem %s3, %s182
        %s184 = smul.u32 24, %s10
      $region32: #{conv1x1_batchnorm.1} parent=19 // pred_fallthru
        _
    $region20: #{conv1x1_batchnorm.1} parent=5 // pred_fallthru
      _
    %p185 = scmp.le.s32.totalorder 1, %s10
    %p186 = scmp.lt.s32.totalorder %s10, 3
    %p187 = pnand %p185, %p186
    %p188 = pneg %p187
    // Predicated region
    $region33: #{conv1x1_batchnorm.1} parent=5 // pred_check
      _
    $region34: #{conv1x1_batchnorm.1} parent=5 // pred_check_branch
      %190 = sbr.rel (%p187) target = $region36
    $region35: #{conv1x1_batchnorm.1} parent=5 // pred_region
      %s191 = ssub.s32 %s10, 1
      %p192 = pneg %p31
      %p193 = pneg %p28
      %s194 = smul.u32 24, %s15
      %p195 = scmp.lt.s32.totalorder %s194, 47
      %s196 = scalar_select %p195, %s194, 47
      %s197 = smul.addr %s196, 18
      %s198 = smul.addr %s197, 8
      %s199 = scalar_lea.vmem %s1, %s198
      %p200 = pneg %p57
      %p201 = pneg %p54
      %s202 = smul.u32 24, %s15
      %p203 = scmp.lt.s32.totalorder %s202, 47
      %s204 = scalar_select %p203, %s202, 47
      %s205 = smul.addr %s204, 8
      %s206 = scalar_lea.vmem %s2, %s205
      %p207 = pneg %p83
      %p208 = pneg %p80
      %s209 = smul.u32 24, %s15
      %p210 = scmp.lt.s32.totalorder %s209, 47
      %s211 = scalar_select %p210, %s209, 47
      %s212 = smul.addr %s211, 8
      %s213 = scalar_lea.vmem %s3, %s212
      %p214 = pneg %p109
      %p215 = pneg %p106
      %p216 = pneg %p135
      %p217 = pneg %p132
      %s218 = smul.u32 24, %s15
      %p219 = scmp.lt.s32.totalorder %s218, 47
      %s220 = scalar_select %p219, %s218, 47
      %s221 = smul.addr %s220, 8
      %s222 = scalar_lea.vmem %s4, %s221
      %s223 = smul.u32 24, %s15
      %p224 = scmp.lt.s32.totalorder %s223, 47
      %s225 = scalar_select %p224, %s223, 47
      %s226 = smul.addr %s225, 18
      %s227 = smul.addr %s226, 8
      %s228 = scalar_lea.vmem %s1, %s227
      %s229 = smul.u32 24, %s15
      %s230 = smul.u32 24, %s15
      %p231 = scmp.lt.s32.totalorder %s230, 47
      %s232 = scalar_select %p231, %s230, 47
      %s233 = smul.addr %s232, 8
      %s234 = scalar_lea.vmem %s2, %s233
      %s235 = smul.u32 24, %s15
      %s236 = smul.u32 24, %s15
      %p237 = scmp.lt.s32.totalorder %s236, 47
      %s238 = scalar_select %p237, %s236, 47
      %s239 = smul.addr %s238, 8
      %s240 = scalar_lea.vmem %s3, %s239
      %s241 = smul.u32 24, %s15
      %s242 = smul.u32 24, %s15
      %p243 = scmp.lt.s32.totalorder %s242, 47
      %s244 = scalar_select %p243, %s242, 47
      %s245 = smul.addr %s244, 8
      %s246 = scalar_lea.vmem %s4, %s245
      %s247 = smul.u32 24, %s15
      %v248 = vld [vmem:[%s228] sm:$0xff]
      %v249 = vld [vmem:[%s228 + $0x8] sm:$0xff]
      %v250 = vld [vmem:[%s228 + $0x10] sm:$0xff]
      %v251 = vld [vmem:[%s228 + $0x18] sm:$0xff]
      %v252 = vld [vmem:[%s228 + $0x20] sm:$0xff]
      %v253 = vld [vmem:[%s228 + $0x28] sm:$0xff]
      %v254 = vld [vmem:[%s228 + $0x30] sm:$0xff]
      %v255 = vld [vmem:[%s228 + $0x38] sm:$0xff]
      %v256 = vld [vmem:[%s228 + $0x40] sm:$0xff]
      %v257 = vld [vmem:[%s228 + $0x48] sm:$0xff]
      %v258 = vld [vmem:[%s228 + $0x50] sm:$0xff]
      %v259 = vld [vmem:[%s228 + $0x58] sm:$0xff]
      %v260 = vld [vmem:[%s228 + $0x60] sm:$0xff]
      %v261 = vld [vmem:[%s228 + $0x68] sm:$0xff]
      %v262 = vld [vmem:[%s228 + $0x70] sm:$0xff]
      %v263 = vld [vmem:[%s228 + $0x78] sm:$0xff]
      %v264 = vld [vmem:[%s228 + $0x80] sm:$0xff]
      %v265 = vld [vmem:[%s228 + $0x88] sm:$0xff]
      %v266 = vld [vmem:[%s228 + $0x90] sm:$0xff]
      %v267 = vld [vmem:[%s228 + $0x98] sm:$0xff]
      %v268 = vld [vmem:[%s228 + $0xa0] sm:$0xff]
      %v269 = vld [vmem:[%s228 + $0xa8] sm:$0xff]
      %v270 = vld [vmem:[%s228 + $0xb0] sm:$0xff]
      %v271 = vld [vmem:[%s228 + $0xb8] sm:$0xff]
      %v272 = vld [vmem:[%s228 + $0xc0] sm:$0xff]
      %v273 = vld [vmem:[%s228 + $0xc8] sm:$0xff]
      %v274 = vld [vmem:[%s228 + $0xd0] sm:$0xff]
      %v275 = vld [vmem:[%s228 + $0xd8] sm:$0xff]
      %v276 = vld [vmem:[%s228 + $0xe0] sm:$0xff]
      %v277 = vld [vmem:[%s228 + $0xe8] sm:$0xff]
      %v278 = vld [vmem:[%s228 + $0xf0] sm:$0xff]
      %v279 = vld [vmem:[%s228 + $0xf8] sm:$0xff]
      %v280 = vld [vmem:[%s228 + $0x100] sm:$0xff]
      %v281 = vld [vmem:[%s228 + $0x108] sm:$0xff]
      %v282 = vld [vmem:[%s228 + $0x110] sm:$0xff]
      %v283 = vld [vmem:[%s228 + $0x118] sm:$0xff]
      %v284 = vld [vmem:[%s228 + $0x120] sm:$0xff]
      %v285 = vld [vmem:[%s228 + $0x128] sm:$0xff]
      %v286 = vld [vmem:[%s228 + $0x130] sm:$0xff]
      %v287 = vld [vmem:[%s228 + $0x138] sm:$0xff]
      %v288 = vld [vmem:[%s228 + $0x140] sm:$0xff]
      %v289 = vld [vmem:[%s228 + $0x148] sm:$0xff]
      %v290 = vld [vmem:[%s228 + $0x150] sm:$0xff]
      %v291 = vld [vmem:[%s228 + $0x158] sm:$0xff]
      %v292 = vld [vmem:[%s228 + $0x160] sm:$0xff]
      %v293 = vld [vmem:[%s228 + $0x168] sm:$0xff]
      %v294 = vld [vmem:[%s228 + $0x170] sm:$0xff]
      %v295 = vld [vmem:[%s228 + $0x178] sm:$0xff]
      %v296 = vld [vmem:[%s228 + $0x180] sm:$0xff]
      %v297 = vld [vmem:[%s228 + $0x188] sm:$0xff]
      %v298 = vld [vmem:[%s228 + $0x190] sm:$0xff]
      %v299 = vld [vmem:[%s228 + $0x198] sm:$0xff]
      %v300 = vld [vmem:[%s228 + $0x1a0] sm:$0xff]
      %v301 = vld [vmem:[%s228 + $0x1a8] sm:$0xff]
      %v302 = vld [vmem:[%s228 + $0x1b0] sm:$0xff]
      %v303 = vld [vmem:[%s228 + $0x1b8] sm:$0xff]
      %v304 = vld [vmem:[%s228 + $0x1c0] sm:$0xff]
      %v305 = vld [vmem:[%s228 + $0x1c8] sm:$0xff]
      %v306 = vld [vmem:[%s228 + $0x1d0] sm:$0xff]
      %v307 = vld [vmem:[%s228 + $0x1d8] sm:$0xff]
      %v308 = vld [vmem:[%s228 + $0x1e0] sm:$0xff]
      %v309 = vld [vmem:[%s228 + $0x1e8] sm:$0xff]
      %v310 = vld [vmem:[%s228 + $0x1f0] sm:$0xff]
      %v311 = vld [vmem:[%s228 + $0x1f8] sm:$0xff]
      %v312 = vld [vmem:[%s228 + $0x200] sm:$0xff]
      %v313 = vld [vmem:[%s228 + $0x208] sm:$0xff]
      %v314 = vld [vmem:[%s228 + $0x210] sm:$0xff]
      %v315 = vld [vmem:[%s228 + $0x218] sm:$0xff]
      %v316 = vld [vmem:[%s228 + $0x220] sm:$0xff]
      %v317 = vld [vmem:[%s228 + $0x228] sm:$0xff]
      %v318 = vld [vmem:[%s228 + $0x230] sm:$0xff]
      %v319 = vld [vmem:[%s228 + $0x238] sm:$0xff]
      %v320 = vld [vmem:[%s228 + $0x240] sm:$0xff]
      %v321 = vld [vmem:[%s228 + $0x248] sm:$0xff]
      %v322 = vld [vmem:[%s228 + $0x250] sm:$0xff]
      %v323 = vld [vmem:[%s228 + $0x258] sm:$0xff]
      %v324 = vld [vmem:[%s228 + $0x260] sm:$0xff]
      %v325 = vld [vmem:[%s228 + $0x268] sm:$0xff]
      %v326 = vld [vmem:[%s228 + $0x270] sm:$0xff]
      %v327 = vld [vmem:[%s228 + $0x278] sm:$0xff]
      %v328 = vld [vmem:[%s228 + $0x280] sm:$0xff]
      %v329 = vld [vmem:[%s228 + $0x288] sm:$0xff]
      %v330 = vld [vmem:[%s228 + $0x290] sm:$0xff]
      %v331 = vld [vmem:[%s228 + $0x298] sm:$0xff]
      %v332 = vld [vmem:[%s228 + $0x2a0] sm:$0xff]
      %v333 = vld [vmem:[%s228 + $0x2a8] sm:$0xff]
      %v334 = vld [vmem:[%s228 + $0x2b0] sm:$0xff]
      %v335 = vld [vmem:[%s228 + $0x2b8] sm:$0xff]
      %v336 = vld [vmem:[%s228 + $0x2c0] sm:$0xff]
      %v337 = vld [vmem:[%s228 + $0x2c8] sm:$0xff]
      %v338 = vld [vmem:[%s228 + $0x2d0] sm:$0xff]
      %v339 = vld [vmem:[%s228 + $0x2d8] sm:$0xff]
      %v340 = vld [vmem:[%s228 + $0x2e0] sm:$0xff]
      %v341 = vld [vmem:[%s228 + $0x2e8] sm:$0xff]
      %v342 = vld [vmem:[%s228 + $0x2f0] sm:$0xff]
      %v343 = vld [vmem:[%s228 + $0x2f8] sm:$0xff]
      %v344 = vld [vmem:[%s228 + $0x300] sm:$0xff]
      %v345 = vld [vmem:[%s228 + $0x308] sm:$0xff]
      %v346 = vld [vmem:[%s228 + $0x310] sm:$0xff]
      %v347 = vld [vmem:[%s228 + $0x318] sm:$0xff]
      %v348 = vld [vmem:[%s228 + $0x320] sm:$0xff]
      %v349 = vld [vmem:[%s228 + $0x328] sm:$0xff]
      %v350 = vld [vmem:[%s228 + $0x330] sm:$0xff]
      %v351 = vld [vmem:[%s228 + $0x338] sm:$0xff]
      %v352 = vld [vmem:[%s228 + $0x340] sm:$0xff]
      %v353 = vld [vmem:[%s228 + $0x348] sm:$0xff]
      %v354 = vld [vmem:[%s228 + $0x350] sm:$0xff]
      %v355 = vld [vmem:[%s228 + $0x358] sm:$0xff]
      %v356 = vld [vmem:[%s228 + $0x360] sm:$0xff]
      %v357 = vld [vmem:[%s228 + $0x368] sm:$0xff]
      %v358 = vld [vmem:[%s228 + $0x370] sm:$0xff]
      %v359 = vld [vmem:[%s228 + $0x378] sm:$0xff]
      %v360 = vld [vmem:[%s228 + $0x380] sm:$0xff]
      %v361 = vld [vmem:[%s228 + $0x388] sm:$0xff]
      %v362 = vld [vmem:[%s228 + $0x390] sm:$0xff]
      %v363 = vld [vmem:[%s228 + $0x398] sm:$0xff]
      %v364 = vld [vmem:[%s228 + $0x3a0] sm:$0xff]
      %v365 = vld [vmem:[%s228 + $0x3a8] sm:$0xff]
      %v366 = vld [vmem:[%s228 + $0x3b0] sm:$0xff]
      %v367 = vld [vmem:[%s228 + $0x3b8] sm:$0xff]
      %v368 = vld [vmem:[%s228 + $0x3c0] sm:$0xff]
      %v369 = vld [vmem:[%s228 + $0x3c8] sm:$0xff]
      %v370 = vld [vmem:[%s228 + $0x3d0] sm:$0xff]
      %v371 = vld [vmem:[%s228 + $0x3d8] sm:$0xff]
      %v372 = vld [vmem:[%s228 + $0x3e0] sm:$0xff]
      %v373 = vld [vmem:[%s228 + $0x3e8] sm:$0xff]
      %v374 = vld [vmem:[%s228 + $0x3f0] sm:$0xff]
      %v375 = vld [vmem:[%s228 + $0x3f8] sm:$0xff]
      %v376 = vld [vmem:[%s228 + $0x400] sm:$0xff]
      %v377 = vld [vmem:[%s228 + $0x408] sm:$0xff]
      %v378 = vld [vmem:[%s228 + $0x410] sm:$0xff]
      %v379 = vld [vmem:[%s228 + $0x418] sm:$0xff]
      %v380 = vld [vmem:[%s228 + $0x420] sm:$0xff]
      %v381 = vld [vmem:[%s228 + $0x428] sm:$0xff]
      %v382 = vld [vmem:[%s228 + $0x430] sm:$0xff]
      %v383 = vld [vmem:[%s228 + $0x438] sm:$0xff]
      %v384 = vld [vmem:[%s228 + $0x440] sm:$0xff]
      %v385 = vld [vmem:[%s228 + $0x448] sm:$0xff]
      %v386 = vld [vmem:[%s228 + $0x450] sm:$0xff]
      %v387 = vld [vmem:[%s228 + $0x458] sm:$0xff]
      %v388 = vld [vmem:[%s228 + $0x460] sm:$0xff]
      %v389 = vld [vmem:[%s228 + $0x468] sm:$0xff]
      %v390 = vld [vmem:[%s228 + $0x470] sm:$0xff]
      %v391 = vld [vmem:[%s228 + $0x478] sm:$0xff]
      %v392 = vld [vmem:[%s228 + $0x480] sm:$0xff]
      %v393 = vld [vmem:[%s228 + $0x488] sm:$0xff]
      %v394 = vld [vmem:[%s228 + $0x490] sm:$0xff]
      %v395 = vld [vmem:[%s228 + $0x498] sm:$0xff]
      %v396 = vld [vmem:[%s228 + $0x4a0] sm:$0xff]
      %v397 = vld [vmem:[%s228 + $0x4a8] sm:$0xff]
      %v398 = vld [vmem:[%s228 + $0x4b0] sm:$0xff]
      %v399 = vld [vmem:[%s228 + $0x4b8] sm:$0xff]
      %v400 = vld [vmem:[%s228 + $0x4c0] sm:$0xff]
      %v401 = vld [vmem:[%s228 + $0x4c8] sm:$0xff]
      %v402 = vld [vmem:[%s228 + $0x4d0] sm:$0xff]
      %v403 = vld [vmem:[%s228 + $0x4d8] sm:$0xff]
      %v404 = vld [vmem:[%s228 + $0x4e0] sm:$0xff]
      %v405 = vld [vmem:[%s228 + $0x4e8] sm:$0xff]
      %v406 = vld [vmem:[%s228 + $0x4f0] sm:$0xff]
      %v407 = vld [vmem:[%s228 + $0x4f8] sm:$0xff]
      %v408 = vld [vmem:[%s228 + $0x500] sm:$0xff]
      %v409 = vld [vmem:[%s228 + $0x508] sm:$0xff]
      %v410 = vld [vmem:[%s228 + $0x510] sm:$0xff]
      %v411 = vld [vmem:[%s228 + $0x518] sm:$0xff]
      %v412 = vld [vmem:[%s228 + $0x520] sm:$0xff]
      %v413 = vld [vmem:[%s228 + $0x528] sm:$0xff]
      %v414 = vld [vmem:[%s228 + $0x530] sm:$0xff]
      %v415 = vld [vmem:[%s228 + $0x538] sm:$0xff]
      %v416 = vld [vmem:[%s228 + $0x540] sm:$0xff]
      %v417 = vld [vmem:[%s228 + $0x548] sm:$0xff]
      %v418 = vld [vmem:[%s228 + $0x550] sm:$0xff]
      %v419 = vld [vmem:[%s228 + $0x558] sm:$0xff]
      %v420 = vld [vmem:[%s228 + $0x560] sm:$0xff]
      %v421 = vld [vmem:[%s228 + $0x568] sm:$0xff]
      %v422 = vld [vmem:[%s228 + $0x570] sm:$0xff]
      %v423 = vld [vmem:[%s228 + $0x578] sm:$0xff]
      %v424 = vld [vmem:[%s228 + $0x580] sm:$0xff]
      %v425 = vld [vmem:[%s228 + $0x588] sm:$0xff]
      %v426 = vld [vmem:[%s228 + $0x590] sm:$0xff]
      %v427 = vld [vmem:[%s228 + $0x598] sm:$0xff]
      %v428 = vld [vmem:[%s228 + $0x5a0] sm:$0xff]
      %v429 = vld [vmem:[%s228 + $0x5a8] sm:$0xff]
      %v430 = vld [vmem:[%s228 + $0x5b0] sm:$0xff]
      %v431 = vld [vmem:[%s228 + $0x5b8] sm:$0xff]
      %v432 = vld [vmem:[%s228 + $0x5c0] sm:$0xff]
      %v433 = vld [vmem:[%s228 + $0x5c8] sm:$0xff]
      %v434 = vld [vmem:[%s228 + $0x5d0] sm:$0xff]
      %v435 = vld [vmem:[%s228 + $0x5d8] sm:$0xff]
      %v436 = vld [vmem:[%s228 + $0x5e0] sm:$0xff]
      %v437 = vld [vmem:[%s228 + $0x5e8] sm:$0xff]
      %v438 = vld [vmem:[%s228 + $0x5f0] sm:$0xff]
      %v439 = vld [vmem:[%s228 + $0x5f8] sm:$0xff]
      %v440 = vld [vmem:[%s228 + $0x600] sm:$0xff]
      %v441 = vld [vmem:[%s228 + $0x608] sm:$0xff]
      %v442 = vld [vmem:[%s228 + $0x610] sm:$0xff]
      %v443 = vld [vmem:[%s228 + $0x618] sm:$0xff]
      %v444 = vld [vmem:[%s228 + $0x620] sm:$0xff]
      %v445 = vld [vmem:[%s228 + $0x628] sm:$0xff]
      %v446 = vld [vmem:[%s228 + $0x630] sm:$0xff]
      %v447 = vld [vmem:[%s228 + $0x638] sm:$0xff]
      %v448 = vld [vmem:[%s228 + $0x640] sm:$0xff]
      %v449 = vld [vmem:[%s228 + $0x648] sm:$0xff]
      %v450 = vld [vmem:[%s228 + $0x650] sm:$0xff]
      %v451 = vld [vmem:[%s228 + $0x658] sm:$0xff]
      %v452 = vld [vmem:[%s228 + $0x660] sm:$0xff]
      %v453 = vld [vmem:[%s228 + $0x668] sm:$0xff]
      %v454 = vld [vmem:[%s228 + $0x670] sm:$0xff]
      %v455 = vld [vmem:[%s228 + $0x678] sm:$0xff]
      %v456 = vld [vmem:[%s228 + $0x680] sm:$0xff]
      %v457 = vld [vmem:[%s228 + $0x688] sm:$0xff]
      %v458 = vld [vmem:[%s228 + $0x690] sm:$0xff]
      %v459 = vld [vmem:[%s228 + $0x698] sm:$0xff]
      %v460 = vld [vmem:[%s228 + $0x6a0] sm:$0xff]
      %v461 = vld [vmem:[%s228 + $0x6a8] sm:$0xff]
      %v462 = vld [vmem:[%s228 + $0x6b0] sm:$0xff]
      %v463 = vld [vmem:[%s228 + $0x6b8] sm:$0xff]
      %v464 = vld [vmem:[%s228 + $0x6c0] sm:$0xff]
      %v465 = vld [vmem:[%s228 + $0x6c8] sm:$0xff]
      %v466 = vld [vmem:[%s228 + $0x6d0] sm:$0xff]
      %v467 = vld [vmem:[%s228 + $0x6d8] sm:$0xff]
      %v468 = vld [vmem:[%s228 + $0x6e0] sm:$0xff]
      %v469 = vld [vmem:[%s228 + $0x6e8] sm:$0xff]
      %v470 = vld [vmem:[%s228 + $0x6f0] sm:$0xff]
      %v471 = vld [vmem:[%s228 + $0x6f8] sm:$0xff]
      %v472 = vld [vmem:[%s228 + $0x700] sm:$0xff]
      %v473 = vld [vmem:[%s228 + $0x708] sm:$0xff]
      %v474 = vld [vmem:[%s228 + $0x710] sm:$0xff]
      %v475 = vld [vmem:[%s228 + $0x718] sm:$0xff]
      %v476 = vld [vmem:[%s228 + $0x720] sm:$0xff]
      %v477 = vld [vmem:[%s228 + $0x728] sm:$0xff]
      %v478 = vld [vmem:[%s228 + $0x730] sm:$0xff]
      %v479 = vld [vmem:[%s228 + $0x738] sm:$0xff]
      %v480 = vld [vmem:[%s228 + $0x740] sm:$0xff]
      %v481 = vld [vmem:[%s228 + $0x748] sm:$0xff]
      %v482 = vld [vmem:[%s228 + $0x750] sm:$0xff]
      %v483 = vld [vmem:[%s228 + $0x758] sm:$0xff]
      %v484 = vld [vmem:[%s228 + $0x760] sm:$0xff]
      %v485 = vld [vmem:[%s228 + $0x768] sm:$0xff]
      %v486 = vld [vmem:[%s228 + $0x770] sm:$0xff]
      %v487 = vld [vmem:[%s228 + $0x778] sm:$0xff]
      %v488 = vld [vmem:[%s228 + $0x780] sm:$0xff]
      %v489 = vld [vmem:[%s228 + $0x788] sm:$0xff]
      %v490 = vld [vmem:[%s228 + $0x790] sm:$0xff]
      %v491 = vld [vmem:[%s228 + $0x798] sm:$0xff]
      %v492 = vld [vmem:[%s228 + $0x7a0] sm:$0xff]
      %v493 = vld [vmem:[%s228 + $0x7a8] sm:$0xff]
      %v494 = vld [vmem:[%s228 + $0x7b0] sm:$0xff]
      %v495 = vld [vmem:[%s228 + $0x7b8] sm:$0xff]
      %v496 = vld [vmem:[%s228 + $0x7c0] sm:$0xff]
      %v497 = vld [vmem:[%s228 + $0x7c8] sm:$0xff]
      %v498 = vld [vmem:[%s228 + $0x7d0] sm:$0xff]
      %v499 = vld [vmem:[%s228 + $0x7d8] sm:$0xff]
      %v500 = vld [vmem:[%s228 + $0x7e0] sm:$0xff]
      %v501 = vld [vmem:[%s228 + $0x7e8] sm:$0xff]
      %v502 = vld [vmem:[%s228 + $0x7f0] sm:$0xff]
      %v503 = vld [vmem:[%s228 + $0x7f8] sm:$0xff]
      %v504 = vld [vmem:[%s228 + $0x800] sm:$0xff]
      %v505 = vld [vmem:[%s228 + $0x808] sm:$0xff]
      %v506 = vld [vmem:[%s228 + $0x810] sm:$0xff]
      %v507 = vld [vmem:[%s228 + $0x818] sm:$0xff]
      %v508 = vld [vmem:[%s228 + $0x820] sm:$0xff]
      %v509 = vld [vmem:[%s228 + $0x828] sm:$0xff]
      %v510 = vld [vmem:[%s228 + $0x830] sm:$0xff]
      %v511 = vld [vmem:[%s228 + $0x838] sm:$0xff]
      %v512 = vld [vmem:[%s228 + $0x840] sm:$0xff]
      %v513 = vld [vmem:[%s228 + $0x848] sm:$0xff]
      %v514 = vld [vmem:[%s228 + $0x850] sm:$0xff]
      %v515 = vld [vmem:[%s228 + $0x858] sm:$0xff]
      %v516 = vld [vmem:[%s228 + $0x860] sm:$0xff]
      %v517 = vld [vmem:[%s228 + $0x868] sm:$0xff]
      %v518 = vld [vmem:[%s228 + $0x870] sm:$0xff]
      %v519 = vld [vmem:[%s228 + $0x878] sm:$0xff]
      %v520 = vld [vmem:[%s228 + $0x880] sm:$0xff]
      %v521 = vld [vmem:[%s228 + $0x888] sm:$0xff]
      %v522 = vld [vmem:[%s228 + $0x890] sm:$0xff]
      %v523 = vld [vmem:[%s228 + $0x898] sm:$0xff]
      %v524 = vld [vmem:[%s228 + $0x8a0] sm:$0xff]
      %v525 = vld [vmem:[%s228 + $0x8a8] sm:$0xff]
      %v526 = vld [vmem:[%s228 + $0x8b0] sm:$0xff]
      %v527 = vld [vmem:[%s228 + $0x8b8] sm:$0xff]
      %v528 = vld [vmem:[%s228 + $0x8c0] sm:$0xff]
      %v529 = vld [vmem:[%s228 + $0x8c8] sm:$0xff]
      %v530 = vld [vmem:[%s228 + $0x8d0] sm:$0xff]
      %v531 = vld [vmem:[%s228 + $0x8d8] sm:$0xff]
      %v532 = vld [vmem:[%s228 + $0x8e0] sm:$0xff]
      %v533 = vld [vmem:[%s228 + $0x8e8] sm:$0xff]
      %v534 = vld [vmem:[%s228 + $0x8f0] sm:$0xff]
      %v535 = vld [vmem:[%s228 + $0x8f8] sm:$0xff]
      %v536 = vld [vmem:[%s228 + $0x900] sm:$0xff]
      %v537 = vld [vmem:[%s228 + $0x908] sm:$0xff]
      %v538 = vld [vmem:[%s228 + $0x910] sm:$0xff]
      %v539 = vld [vmem:[%s228 + $0x918] sm:$0xff]
      %v540 = vld [vmem:[%s228 + $0x920] sm:$0xff]
      %v541 = vld [vmem:[%s228 + $0x928] sm:$0xff]
      %v542 = vld [vmem:[%s228 + $0x930] sm:$0xff]
      %v543 = vld [vmem:[%s228 + $0x938] sm:$0xff]
      %v544 = vld [vmem:[%s228 + $0x940] sm:$0xff]
      %v545 = vld [vmem:[%s228 + $0x948] sm:$0xff]
      %v546 = vld [vmem:[%s228 + $0x950] sm:$0xff]
      %v547 = vld [vmem:[%s228 + $0x958] sm:$0xff]
      %v548 = vld [vmem:[%s228 + $0x960] sm:$0xff]
      %v549 = vld [vmem:[%s228 + $0x968] sm:$0xff]
      %v550 = vld [vmem:[%s228 + $0x970] sm:$0xff]
      %v551 = vld [vmem:[%s228 + $0x978] sm:$0xff]
      %v552 = vld [vmem:[%s228 + $0x980] sm:$0xff]
      %v553 = vld [vmem:[%s228 + $0x988] sm:$0xff]
      %v554 = vld [vmem:[%s228 + $0x990] sm:$0xff]
      %v555 = vld [vmem:[%s228 + $0x998] sm:$0xff]
      %v556 = vld [vmem:[%s228 + $0x9a0] sm:$0xff]
      %v557 = vld [vmem:[%s228 + $0x9a8] sm:$0xff]
      %v558 = vld [vmem:[%s228 + $0x9b0] sm:$0xff]
      %v559 = vld [vmem:[%s228 + $0x9b8] sm:$0xff]
      %v560 = vld [vmem:[%s228 + $0x9c0] sm:$0xff]
      %v561 = vld [vmem:[%s228 + $0x9c8] sm:$0xff]
      %v562 = vld [vmem:[%s228 + $0x9d0] sm:$0xff]
      %v563 = vld [vmem:[%s228 + $0x9d8] sm:$0xff]
      %v564 = vld [vmem:[%s228 + $0x9e0] sm:$0xff]
      %v565 = vld [vmem:[%s228 + $0x9e8] sm:$0xff]
      %v566 = vld [vmem:[%s228 + $0x9f0] sm:$0xff]
      %v567 = vld [vmem:[%s228 + $0x9f8] sm:$0xff]
      %v568 = vld [vmem:[%s228 + $0xa00] sm:$0xff]
      %v569 = vld [vmem:[%s228 + $0xa08] sm:$0xff]
      %v570 = vld [vmem:[%s228 + $0xa10] sm:$0xff]
      %v571 = vld [vmem:[%s228 + $0xa18] sm:$0xff]
      %v572 = vld [vmem:[%s228 + $0xa20] sm:$0xff]
      %v573 = vld [vmem:[%s228 + $0xa28] sm:$0xff]
      %v574 = vld [vmem:[%s228 + $0xa30] sm:$0xff]
      %v575 = vld [vmem:[%s228 + $0xa38] sm:$0xff]
      %v576 = vld [vmem:[%s228 + $0xa40] sm:$0xff]
      %v577 = vld [vmem:[%s228 + $0xa48] sm:$0xff]
      %v578 = vld [vmem:[%s228 + $0xa50] sm:$0xff]
      %v579 = vld [vmem:[%s228 + $0xa58] sm:$0xff]
      %v580 = vld [vmem:[%s228 + $0xa60] sm:$0xff]
      %v581 = vld [vmem:[%s228 + $0xa68] sm:$0xff]
      %v582 = vld [vmem:[%s228 + $0xa70] sm:$0xff]
      %v583 = vld [vmem:[%s228 + $0xa78] sm:$0xff]
      %v584 = vld [vmem:[%s228 + $0xa80] sm:$0xff]
      %v585 = vld [vmem:[%s228 + $0xa88] sm:$0xff]
      %v586 = vld [vmem:[%s228 + $0xa90] sm:$0xff]
      %v587 = vld [vmem:[%s228 + $0xa98] sm:$0xff]
      %v588 = vld [vmem:[%s228 + $0xaa0] sm:$0xff]
      %v589 = vld [vmem:[%s228 + $0xaa8] sm:$0xff]
      %v590 = vld [vmem:[%s228 + $0xab0] sm:$0xff]
      %v591 = vld [vmem:[%s228 + $0xab8] sm:$0xff]
      %v592 = vld [vmem:[%s228 + $0xac0] sm:$0xff]
      %v593 = vld [vmem:[%s228 + $0xac8] sm:$0xff]
      %v594 = vld [vmem:[%s228 + $0xad0] sm:$0xff]
      %v595 = vld [vmem:[%s228 + $0xad8] sm:$0xff]
      %v596 = vld [vmem:[%s228 + $0xae0] sm:$0xff]
      %v597 = vld [vmem:[%s228 + $0xae8] sm:$0xff]
      %v598 = vld [vmem:[%s228 + $0xaf0] sm:$0xff]
      %v599 = vld [vmem:[%s228 + $0xaf8] sm:$0xff]
      %v600 = vld [vmem:[%s228 + $0xb00] sm:$0xff]
      %v601 = vld [vmem:[%s228 + $0xb08] sm:$0xff]
      %v602 = vld [vmem:[%s228 + $0xb10] sm:$0xff]
      %v603 = vld [vmem:[%s228 + $0xb18] sm:$0xff]
      %v604 = vld [vmem:[%s228 + $0xb20] sm:$0xff]
      %v605 = vld [vmem:[%s228 + $0xb28] sm:$0xff]
      %v606 = vld [vmem:[%s228 + $0xb30] sm:$0xff]
      %v607 = vld [vmem:[%s228 + $0xb38] sm:$0xff]
      %v608 = vld [vmem:[%s228 + $0xb40] sm:$0xff]
      %v609 = vld [vmem:[%s228 + $0xb48] sm:$0xff]
      %v610 = vld [vmem:[%s228 + $0xb50] sm:$0xff]
      %v611 = vld [vmem:[%s228 + $0xb58] sm:$0xff]
      %v612 = vld [vmem:[%s228 + $0xb60] sm:$0xff]
      %v613 = vld [vmem:[%s228 + $0xb68] sm:$0xff]
      %v614 = vld [vmem:[%s228 + $0xb70] sm:$0xff]
      %v615 = vld [vmem:[%s228 + $0xb78] sm:$0xff]
      %v616 = vld [vmem:[%s228 + $0xb80] sm:$0xff]
      %v617 = vld [vmem:[%s228 + $0xb88] sm:$0xff]
      %v618 = vld [vmem:[%s228 + $0xb90] sm:$0xff]
      %v619 = vld [vmem:[%s228 + $0xb98] sm:$0xff]
      %v620 = vld [vmem:[%s228 + $0xba0] sm:$0xff]
      %v621 = vld [vmem:[%s228 + $0xba8] sm:$0xff]
      %v622 = vld [vmem:[%s228 + $0xbb0] sm:$0xff]
      %v623 = vld [vmem:[%s228 + $0xbb8] sm:$0xff]
      %v624 = vld [vmem:[%s228 + $0xbc0] sm:$0xff]
      %v625 = vld [vmem:[%s228 + $0xbc8] sm:$0xff]
      %v626 = vld [vmem:[%s228 + $0xbd0] sm:$0xff]
      %v627 = vld [vmem:[%s228 + $0xbd8] sm:$0xff]
      %v628 = vld [vmem:[%s228 + $0xbe0] sm:$0xff]
      %v629 = vld [vmem:[%s228 + $0xbe8] sm:$0xff]
      %v630 = vld [vmem:[%s228 + $0xbf0] sm:$0xff]
      %v631 = vld [vmem:[%s228 + $0xbf8] sm:$0xff]
      %v632 = vld [vmem:[%s228 + $0xc00] sm:$0xff]
      %v633 = vld [vmem:[%s228 + $0xc08] sm:$0xff]
      %v634 = vld [vmem:[%s228 + $0xc10] sm:$0xff]
      %v635 = vld [vmem:[%s228 + $0xc18] sm:$0xff]
      %v636 = vld [vmem:[%s228 + $0xc20] sm:$0xff]
      %v637 = vld [vmem:[%s228 + $0xc28] sm:$0xff]
      %v638 = vld [vmem:[%s228 + $0xc30] sm:$0xff]
      %v639 = vld [vmem:[%s228 + $0xc38] sm:$0xff]
      %v640 = vld [vmem:[%s228 + $0xc40] sm:$0xff]
      %v641 = vld [vmem:[%s228 + $0xc48] sm:$0xff]
      %v642 = vld [vmem:[%s228 + $0xc50] sm:$0xff]
      %v643 = vld [vmem:[%s228 + $0xc58] sm:$0xff]
      %v644 = vld [vmem:[%s228 + $0xc60] sm:$0xff]
      %v645 = vld [vmem:[%s228 + $0xc68] sm:$0xff]
      %v646 = vld [vmem:[%s228 + $0xc70] sm:$0xff]
      %v647 = vld [vmem:[%s228 + $0xc78] sm:$0xff]
      %v648 = vld [vmem:[%s228 + $0xc80] sm:$0xff]
      %v649 = vld [vmem:[%s228 + $0xc88] sm:$0xff]
      %v650 = vld [vmem:[%s228 + $0xc90] sm:$0xff]
      %v651 = vld [vmem:[%s228 + $0xc98] sm:$0xff]
      %v652 = vld [vmem:[%s228 + $0xca0] sm:$0xff]
      %v653 = vld [vmem:[%s228 + $0xca8] sm:$0xff]
      %v654 = vld [vmem:[%s228 + $0xcb0] sm:$0xff]
      %v655 = vld [vmem:[%s228 + $0xcb8] sm:$0xff]
      %v656 = vld [vmem:[%s228 + $0xcc0] sm:$0xff]
      %v657 = vld [vmem:[%s228 + $0xcc8] sm:$0xff]
      %v658 = vld [vmem:[%s228 + $0xcd0] sm:$0xff]
      %v659 = vld [vmem:[%s228 + $0xcd8] sm:$0xff]
      %v660 = vld [vmem:[%s228 + $0xce0] sm:$0xff]
      %v661 = vld [vmem:[%s228 + $0xce8] sm:$0xff]
      %v662 = vld [vmem:[%s228 + $0xcf0] sm:$0xff]
      %v663 = vld [vmem:[%s228 + $0xcf8] sm:$0xff]
      %v664 = vld [vmem:[%s228 + $0xd00] sm:$0xff]
      %v665 = vld [vmem:[%s228 + $0xd08] sm:$0xff]
      %v666 = vld [vmem:[%s228 + $0xd10] sm:$0xff]
      %v667 = vld [vmem:[%s228 + $0xd18] sm:$0xff]
      %v668 = vld [vmem:[%s228 + $0xd20] sm:$0xff]
      %v669 = vld [vmem:[%s228 + $0xd28] sm:$0xff]
      %v670 = vld [vmem:[%s228 + $0xd30] sm:$0xff]
      %v671 = vld [vmem:[%s228 + $0xd38] sm:$0xff]
      %v672 = vld [vmem:[%s228 + $0xd40] sm:$0xff]
      %v673 = vld [vmem:[%s228 + $0xd48] sm:$0xff]
      %v674 = vld [vmem:[%s228 + $0xd50] sm:$0xff]
      %v675 = vld [vmem:[%s228 + $0xd58] sm:$0xff]
      %v676 = vld [vmem:[%s228 + $0xd60] sm:$0xff]
      %v677 = vld [vmem:[%s228 + $0xd68] sm:$0xff]
      %v678 = vld [vmem:[%s228 + $0xd70] sm:$0xff]
      %v679 = vld [vmem:[%s228 + $0xd78] sm:$0xff]
      %v680 = vld [vmem:[%s0] sm:$0xff]
      %v681 = vld [vmem:[%s0 + $0x8] sm:$0xff]
      %v682 = vld [vmem:[%s0 + $0x10] sm:$0xff]
      %v683 = vld [vmem:[%s0 + $0x18] sm:$0xff]
      %v684 = vld [vmem:[%s0 + $0x20] sm:$0xff]
      %v685 = vld [vmem:[%s0 + $0x28] sm:$0xff]
      %v686 = vld [vmem:[%s0 + $0x30] sm:$0xff]
      %v687 = vld [vmem:[%s0 + $0x38] sm:$0xff]
      %v688 = vld [vmem:[%s0 + $0x40] sm:$0xff]
      %v689 = vld [vmem:[%s0 + $0x48] sm:$0xff]
      %v690 = vld [vmem:[%s0 + $0x50] sm:$0xff]
      %v691 = vld [vmem:[%s0 + $0x58] sm:$0xff]
      %v692 = vld [vmem:[%s0 + $0x60] sm:$0xff]
      %v693 = vld [vmem:[%s0 + $0x68] sm:$0xff]
      %v694 = vld [vmem:[%s0 + $0x70] sm:$0xff]
      %v695 = vld [vmem:[%s0 + $0x78] sm:$0xff]
      %v696 = vld [vmem:[%s0 + $0x80] sm:$0xff]
      %v697 = vld [vmem:[%s0 + $0x88] sm:$0xff]
      %v698 = vld [vmem:[%s0 + $0x90] sm:$0xff]
      %v699 = vld [vmem:[%s0 + $0x98] sm:$0xff]
      %v700 = vld [vmem:[%s0 + $0xa0] sm:$0xff]
      %v701 = vld [vmem:[%s0 + $0xa8] sm:$0xff]
      %v702 = vld [vmem:[%s0 + $0xb0] sm:$0xff]
      %v703 = vld [vmem:[%s0 + $0xb8] sm:$0xff]
      %v704 = vld [vmem:[%s0 + $0xc0] sm:$0xff]
      %v705 = vld [vmem:[%s0 + $0xc8] sm:$0xff]
      %v706 = vld [vmem:[%s0 + $0xd0] sm:$0xff]
      %v707 = vld [vmem:[%s0 + $0xd8] sm:$0xff]
      %v708 = vld [vmem:[%s0 + $0xe0] sm:$0xff]
      %v709 = vld [vmem:[%s0 + $0xe8] sm:$0xff]
      %v710 = vld [vmem:[%s0 + $0xf0] sm:$0xff]
      %v711 = vld [vmem:[%s0 + $0xf8] sm:$0xff]
      %v712 = vld [vmem:[%s0 + $0x100] sm:$0xff]
      %v713 = vld [vmem:[%s0 + $0x108] sm:$0xff]
      %v714 = vld [vmem:[%s0 + $0x110] sm:$0xff]
      %v715 = vld [vmem:[%s0 + $0x118] sm:$0xff]
      %v716 = vld [vmem:[%s0 + $0x120] sm:$0xff]
      %v717 = vld [vmem:[%s0 + $0x128] sm:$0xff]
      %v718 = vld [vmem:[%s0 + $0x130] sm:$0xff]
      %v719 = vld [vmem:[%s0 + $0x138] sm:$0xff]
      %v720 = vld [vmem:[%s0 + $0x140] sm:$0xff]
      %v721 = vld [vmem:[%s0 + $0x148] sm:$0xff]
      %v722 = vld [vmem:[%s0 + $0x150] sm:$0xff]
      %v723 = vld [vmem:[%s0 + $0x158] sm:$0xff]
      %v724 = vld [vmem:[%s0 + $0x160] sm:$0xff]
      %v725 = vld [vmem:[%s0 + $0x168] sm:$0xff]
      %v726 = vld [vmem:[%s0 + $0x170] sm:$0xff]
      %v727 = vld [vmem:[%s0 + $0x178] sm:$0xff]
      %v728 = vld [vmem:[%s0 + $0x180] sm:$0xff]
      %v729 = vld [vmem:[%s0 + $0x188] sm:$0xff]
      %v730 = vld [vmem:[%s0 + $0x190] sm:$0xff]
      %v731 = vld [vmem:[%s0 + $0x198] sm:$0xff]
      %v732 = vld [vmem:[%s0 + $0x1a0] sm:$0xff]
      %v733 = vld [vmem:[%s0 + $0x1a8] sm:$0xff]
      %v734 = vld [vmem:[%s0 + $0x1b0] sm:$0xff]
      %v735 = vld [vmem:[%s0 + $0x1b8] sm:$0xff]
      %v736 = vld [vmem:[%s0 + $0x1c0] sm:$0xff]
      %v737 = vld [vmem:[%s0 + $0x1c8] sm:$0xff]
      %v738 = vld [vmem:[%s0 + $0x1d0] sm:$0xff]
      %v739 = vld [vmem:[%s0 + $0x1d8] sm:$0xff]
      %v740 = vld [vmem:[%s0 + $0x1e0] sm:$0xff]
      %v741 = vld [vmem:[%s0 + $0x1e8] sm:$0xff]
      %v742 = vld [vmem:[%s0 + $0x1f0] sm:$0xff]
      %v743 = vld [vmem:[%s0 + $0x1f8] sm:$0xff]
      %v744 = vld [vmem:[%s0 + $0x200] sm:$0xff]
      %v745 = vld [vmem:[%s0 + $0x208] sm:$0xff]
      %v746 = vld [vmem:[%s0 + $0x210] sm:$0xff]
      %v747 = vld [vmem:[%s0 + $0x218] sm:$0xff]
      %v748 = vld [vmem:[%s0 + $0x220] sm:$0xff]
      %v749 = vld [vmem:[%s0 + $0x228] sm:$0xff]
      %v750 = vld [vmem:[%s0 + $0x230] sm:$0xff]
      %v751 = vld [vmem:[%s0 + $0x238] sm:$0xff]
      %v752 = vld [vmem:[%s0 + $0x240] sm:$0xff]
      %v753 = vld [vmem:[%s0 + $0x248] sm:$0xff]
      %v754 = vld [vmem:[%s0 + $0x250] sm:$0xff]
      %v755 = vld [vmem:[%s0 + $0x258] sm:$0xff]
      %v756 = vld [vmem:[%s0 + $0x260] sm:$0xff]
      %v757 = vld [vmem:[%s0 + $0x268] sm:$0xff]
      %v758 = vld [vmem:[%s0 + $0x270] sm:$0xff]
      %v759 = vld [vmem:[%s0 + $0x278] sm:$0xff]
      %v760 = vld [vmem:[%s0 + $0x280] sm:$0xff]
      %v761 = vld [vmem:[%s0 + $0x288] sm:$0xff]
      %v762 = vld [vmem:[%s0 + $0x290] sm:$0xff]
      %v763 = vld [vmem:[%s0 + $0x298] sm:$0xff]
      %v764 = vld [vmem:[%s0 + $0x2a0] sm:$0xff]
      %v765 = vld [vmem:[%s0 + $0x2a8] sm:$0xff]
      %v766 = vld [vmem:[%s0 + $0x2b0] sm:$0xff]
      %v767 = vld [vmem:[%s0 + $0x2b8] sm:$0xff]
      %v768 = vld [vmem:[%s0 + $0x2c0] sm:$0xff]
      %v769 = vld [vmem:[%s0 + $0x2c8] sm:$0xff]
      %v770 = vld [vmem:[%s0 + $0x2d0] sm:$0xff]
      %v771 = vld [vmem:[%s0 + $0x2d8] sm:$0xff]
      %v772 = vld [vmem:[%s0 + $0x2e0] sm:$0xff]
      %v773 = vld [vmem:[%s0 + $0x2e8] sm:$0xff]
      %v774 = vld [vmem:[%s0 + $0x2f0] sm:$0xff]
      %v775 = vld [vmem:[%s0 + $0x2f8] sm:$0xff]
      %v776 = vld [vmem:[%s0 + $0x300] sm:$0xff]
      %v777 = vld [vmem:[%s0 + $0x308] sm:$0xff]
      %v778 = vld [vmem:[%s0 + $0x310] sm:$0xff]
      %v779 = vld [vmem:[%s0 + $0x318] sm:$0xff]
      %v780 = vld [vmem:[%s0 + $0x320] sm:$0xff]
      %v781 = vld [vmem:[%s0 + $0x328] sm:$0xff]
      %v782 = vld [vmem:[%s0 + $0x330] sm:$0xff]
      %v783 = vld [vmem:[%s0 + $0x338] sm:$0xff]
      %v784 = vld [vmem:[%s0 + $0x340] sm:$0xff]
      %v785 = vld [vmem:[%s0 + $0x348] sm:$0xff]
      %v786 = vld [vmem:[%s0 + $0x350] sm:$0xff]
      %v787 = vld [vmem:[%s0 + $0x358] sm:$0xff]
      %v788 = vld [vmem:[%s0 + $0x360] sm:$0xff]
      %v789 = vld [vmem:[%s0 + $0x368] sm:$0xff]
      %v790 = vld [vmem:[%s0 + $0x370] sm:$0xff]
      %v791 = vld [vmem:[%s0 + $0x378] sm:$0xff]
      %v792 = vld [vmem:[%s0 + $0x380] sm:$0xff]
      %v793 = vld [vmem:[%s0 + $0x388] sm:$0xff]
      %v794 = vld [vmem:[%s0 + $0x390] sm:$0xff]
      %v795 = vld [vmem:[%s0 + $0x398] sm:$0xff]
      %v796 = vld [vmem:[%s0 + $0x3a0] sm:$0xff]
      %v797 = vld [vmem:[%s0 + $0x3a8] sm:$0xff]
      %v798 = vld [vmem:[%s0 + $0x3b0] sm:$0xff]
      %v799 = vld [vmem:[%s0 + $0x3b8] sm:$0xff]
      %v800 = vld [vmem:[%s0 + $0x3c0] sm:$0xff]
      %v801 = vld [vmem:[%s0 + $0x3c8] sm:$0xff]
      %v802 = vld [vmem:[%s0 + $0x3d0] sm:$0xff]
      %v803 = vld [vmem:[%s0 + $0x3d8] sm:$0xff]
      %v804 = vld [vmem:[%s0 + $0x3e0] sm:$0xff]
      %v805 = vld [vmem:[%s0 + $0x3e8] sm:$0xff]
      %v806 = vld [vmem:[%s0 + $0x3f0] sm:$0xff]
      %v807 = vld [vmem:[%s0 + $0x3f8] sm:$0xff]
      %v808 = vld [vmem:[%s0 + $0x400] sm:$0xff]
      %v809 = vld [vmem:[%s0 + $0x408] sm:$0xff]
      %v810 = vld [vmem:[%s0 + $0x410] sm:$0xff]
      %v811 = vld [vmem:[%s0 + $0x418] sm:$0xff]
      %v812 = vld [vmem:[%s0 + $0x420] sm:$0xff]
      %v813 = vld [vmem:[%s0 + $0x428] sm:$0xff]
      %v814 = vld [vmem:[%s0 + $0x430] sm:$0xff]
      %v815 = vld [vmem:[%s0 + $0x438] sm:$0xff]
      %v816 = vld [vmem:[%s0 + $0x440] sm:$0xff]
      %v817 = vld [vmem:[%s0 + $0x448] sm:$0xff]
      %v818 = vld [vmem:[%s0 + $0x450] sm:$0xff]
      %v819 = vld [vmem:[%s0 + $0x458] sm:$0xff]
      %v820 = vld [vmem:[%s0 + $0x460] sm:$0xff]
      %v821 = vld [vmem:[%s0 + $0x468] sm:$0xff]
      %v822 = vld [vmem:[%s0 + $0x470] sm:$0xff]
      %v823 = vld [vmem:[%s0 + $0x478] sm:$0xff]
      %v824 = vld [vmem:[%s0 + $0x480] sm:$0xff]
      %v825 = vld [vmem:[%s0 + $0x488] sm:$0xff]
      %v826 = vld [vmem:[%s0 + $0x490] sm:$0xff]
      %v827 = vld [vmem:[%s0 + $0x498] sm:$0xff]
      %v828 = vld [vmem:[%s0 + $0x4a0] sm:$0xff]
      %v829 = vld [vmem:[%s0 + $0x4a8] sm:$0xff]
      %v830 = vld [vmem:[%s0 + $0x4b0] sm:$0xff]
      %v831 = vld [vmem:[%s0 + $0x4b8] sm:$0xff]
      %v832 = vld [vmem:[%s0 + $0x4c0] sm:$0xff]
      %v833 = vld [vmem:[%s0 + $0x4c8] sm:$0xff]
      %v834 = vld [vmem:[%s0 + $0x4d0] sm:$0xff]
      %v835 = vld [vmem:[%s0 + $0x4d8] sm:$0xff]
      %v836 = vld [vmem:[%s0 + $0x4e0] sm:$0xff]
      %v837 = vld [vmem:[%s0 + $0x4e8] sm:$0xff]
      %v838 = vld [vmem:[%s0 + $0x4f0] sm:$0xff]
      %v839 = vld [vmem:[%s0 + $0x4f8] sm:$0xff]
      %v840 = vld [vmem:[%s0 + $0x500] sm:$0xff]
      %v841 = vld [vmem:[%s0 + $0x508] sm:$0xff]
      %v842 = vld [vmem:[%s0 + $0x510] sm:$0xff]
      %v843 = vld [vmem:[%s0 + $0x518] sm:$0xff]
      %v844 = vld [vmem:[%s0 + $0x520] sm:$0xff]
      %v845 = vld [vmem:[%s0 + $0x528] sm:$0xff]
      %v846 = vld [vmem:[%s0 + $0x530] sm:$0xff]
      %v847 = vld [vmem:[%s0 + $0x538] sm:$0xff]
      %v848 = vld [vmem:[%s0 + $0x540] sm:$0xff]
      %v849 = vld [vmem:[%s0 + $0x548] sm:$0xff]
      %v850 = vld [vmem:[%s0 + $0x550] sm:$0xff]
      %v851 = vld [vmem:[%s0 + $0x558] sm:$0xff]
      %v852 = vld [vmem:[%s0 + $0x560] sm:$0xff]
      %v853 = vld [vmem:[%s0 + $0x568] sm:$0xff]
      %v854 = vld [vmem:[%s0 + $0x570] sm:$0xff]
      %v855 = vld [vmem:[%s0 + $0x578] sm:$0xff]
      %v856 = vld [vmem:[%s0 + $0x580] sm:$0xff]
      %v857 = vld [vmem:[%s0 + $0x588] sm:$0xff]
      %v858 = vld [vmem:[%s0 + $0x590] sm:$0xff]
      %v859 = vld [vmem:[%s0 + $0x598] sm:$0xff]
      %v860 = vld [vmem:[%s0 + $0x5a0] sm:$0xff]
      %v861 = vld [vmem:[%s0 + $0x5a8] sm:$0xff]
      %v862 = vld [vmem:[%s0 + $0x5b0] sm:$0xff]
      %v863 = vld [vmem:[%s0 + $0x5b8] sm:$0xff]
      %v864 = vld [vmem:[%s0 + $0x5c0] sm:$0xff]
      %v865 = vld [vmem:[%s0 + $0x5c8] sm:$0xff]
      %v866 = vld [vmem:[%s0 + $0x5d0] sm:$0xff]
      %v867 = vld [vmem:[%s0 + $0x5d8] sm:$0xff]
      %v868 = vld [vmem:[%s0 + $0x5e0] sm:$0xff]
      %v869 = vld [vmem:[%s0 + $0x5e8] sm:$0xff]
      %v870 = vld [vmem:[%s0 + $0x5f0] sm:$0xff]
      %v871 = vld [vmem:[%s0 + $0x5f8] sm:$0xff]
      %v872 = vld [vmem:[%s0 + $0x600] sm:$0xff]
      %v873 = vld [vmem:[%s0 + $0x608] sm:$0xff]
      %v874 = vld [vmem:[%s0 + $0x610] sm:$0xff]
      %v875 = vld [vmem:[%s0 + $0x618] sm:$0xff]
      %v876 = vld [vmem:[%s0 + $0x620] sm:$0xff]
      %v877 = vld [vmem:[%s0 + $0x628] sm:$0xff]
      %v878 = vld [vmem:[%s0 + $0x630] sm:$0xff]
      %v879 = vld [vmem:[%s0 + $0x638] sm:$0xff]
      %v880 = vld [vmem:[%s0 + $0x640] sm:$0xff]
      %v881 = vld [vmem:[%s0 + $0x648] sm:$0xff]
      %v882 = vld [vmem:[%s0 + $0x650] sm:$0xff]
      %v883 = vld [vmem:[%s0 + $0x658] sm:$0xff]
      %v884 = vld [vmem:[%s0 + $0x660] sm:$0xff]
      %v885 = vld [vmem:[%s0 + $0x668] sm:$0xff]
      %v886 = vld [vmem:[%s0 + $0x670] sm:$0xff]
      %v887 = vld [vmem:[%s0 + $0x678] sm:$0xff]
      %v888 = vld [vmem:[%s0 + $0x680] sm:$0xff]
      %v889 = vld [vmem:[%s0 + $0x688] sm:$0xff]
      %v890 = vld [vmem:[%s0 + $0x690] sm:$0xff]
      %v891 = vld [vmem:[%s0 + $0x698] sm:$0xff]
      %v892 = vld [vmem:[%s0 + $0x6a0] sm:$0xff]
      %v893 = vld [vmem:[%s0 + $0x6a8] sm:$0xff]
      %v894 = vld [vmem:[%s0 + $0x6b0] sm:$0xff]
      %v895 = vld [vmem:[%s0 + $0x6b8] sm:$0xff]
      %v896 = vld [vmem:[%s0 + $0x6c0] sm:$0xff]
      %v897 = vld [vmem:[%s0 + $0x6c8] sm:$0xff]
      %v898 = vld [vmem:[%s0 + $0x6d0] sm:$0xff]
      %v899 = vld [vmem:[%s0 + $0x6d8] sm:$0xff]
      %v900 = vld [vmem:[%s0 + $0x6e0] sm:$0xff]
      %v901 = vld [vmem:[%s0 + $0x6e8] sm:$0xff]
      %v902 = vld [vmem:[%s0 + $0x6f0] sm:$0xff]
      %v903 = vld [vmem:[%s0 + $0x6f8] sm:$0xff]
      %v904 = vld [vmem:[%s0 + $0x700] sm:$0xff]
      %v905 = vld [vmem:[%s0 + $0x708] sm:$0xff]
      %v906 = vld [vmem:[%s0 + $0x710] sm:$0xff]
      %v907 = vld [vmem:[%s0 + $0x718] sm:$0xff]
      %v908 = vld [vmem:[%s0 + $0x720] sm:$0xff]
      %v909 = vld [vmem:[%s0 + $0x728] sm:$0xff]
      %v910 = vld [vmem:[%s0 + $0x730] sm:$0xff]
      %v911 = vld [vmem:[%s0 + $0x738] sm:$0xff]
      %v912 = vld [vmem:[%s0 + $0x740] sm:$0xff]
      %v913 = vld [vmem:[%s0 + $0x748] sm:$0xff]
      %v914 = vld [vmem:[%s0 + $0x750] sm:$0xff]
      %v915 = vld [vmem:[%s0 + $0x758] sm:$0xff]
      %v916 = vld [vmem:[%s0 + $0x760] sm:$0xff]
      %v917 = vld [vmem:[%s0 + $0x768] sm:$0xff]
      %v918 = vld [vmem:[%s0 + $0x770] sm:$0xff]
      %v919 = vld [vmem:[%s0 + $0x778] sm:$0xff]
      %v920 = vld [vmem:[%s0 + $0x780] sm:$0xff]
      %v921 = vld [vmem:[%s0 + $0x788] sm:$0xff]
      %v922 = vld [vmem:[%s0 + $0x790] sm:$0xff]
      %v923 = vld [vmem:[%s0 + $0x798] sm:$0xff]
      %v924 = vld [vmem:[%s0 + $0x7a0] sm:$0xff]
      %v925 = vld [vmem:[%s0 + $0x7a8] sm:$0xff]
      %v926 = vld [vmem:[%s0 + $0x7b0] sm:$0xff]
      %v927 = vld [vmem:[%s0 + $0x7b8] sm:$0xff]
      %v928 = vld [vmem:[%s0 + $0x7c0] sm:$0xff]
      %v929 = vld [vmem:[%s0 + $0x7c8] sm:$0xff]
      %v930 = vld [vmem:[%s0 + $0x7d0] sm:$0xff]
      %v931 = vld [vmem:[%s0 + $0x7d8] sm:$0xff]
      %v932 = vld [vmem:[%s0 + $0x7e0] sm:$0xff]
      %v933 = vld [vmem:[%s0 + $0x7e8] sm:$0xff]
      %v934 = vld [vmem:[%s0 + $0x7f0] sm:$0xff]
      %v935 = vld [vmem:[%s0 + $0x7f8] sm:$0xff]
      %v936 = vld [vmem:[%s0 + $0x800] sm:$0xff]
      %v937 = vld [vmem:[%s0 + $0x808] sm:$0xff]
      %v938 = vld [vmem:[%s0 + $0x810] sm:$0xff]
      %v939 = vld [vmem:[%s0 + $0x818] sm:$0xff]
      %v940 = vld [vmem:[%s0 + $0x820] sm:$0xff]
      %v941 = vld [vmem:[%s0 + $0x828] sm:$0xff]
      %v942 = vld [vmem:[%s0 + $0x830] sm:$0xff]
      %v943 = vld [vmem:[%s0 + $0x838] sm:$0xff]
      %v944 = vld [vmem:[%s0 + $0x840] sm:$0xff]
      %v945 = vld [vmem:[%s0 + $0x848] sm:$0xff]
      %v946 = vld [vmem:[%s0 + $0x850] sm:$0xff]
      %v947 = vld [vmem:[%s0 + $0x858] sm:$0xff]
      %v948 = vld [vmem:[%s0 + $0x860] sm:$0xff]
      %v949 = vld [vmem:[%s0 + $0x868] sm:$0xff]
      %v950 = vld [vmem:[%s0 + $0x870] sm:$0xff]
      %v951 = vld [vmem:[%s0 + $0x878] sm:$0xff]
      %v952 = vld [vmem:[%s0 + $0x880] sm:$0xff]
      %v953 = vld [vmem:[%s0 + $0x888] sm:$0xff]
      %v954 = vld [vmem:[%s0 + $0x890] sm:$0xff]
      %v955 = vld [vmem:[%s0 + $0x898] sm:$0xff]
      %v956 = vld [vmem:[%s0 + $0x8a0] sm:$0xff]
      %v957 = vld [vmem:[%s0 + $0x8a8] sm:$0xff]
      %v958 = vld [vmem:[%s0 + $0x8b0] sm:$0xff]
      %v959 = vld [vmem:[%s0 + $0x8b8] sm:$0xff]
      %v960 = vld [vmem:[%s0 + $0x8c0] sm:$0xff]
      %v961 = vld [vmem:[%s0 + $0x8c8] sm:$0xff]
      %v962 = vld [vmem:[%s0 + $0x8d0] sm:$0xff]
      %v963 = vld [vmem:[%s0 + $0x8d8] sm:$0xff]
      %v964 = vld [vmem:[%s0 + $0x8e0] sm:$0xff]
      %v965 = vld [vmem:[%s0 + $0x8e8] sm:$0xff]
      %v966 = vld [vmem:[%s0 + $0x8f0] sm:$0xff]
      %v967 = vld [vmem:[%s0 + $0x8f8] sm:$0xff]
      %968 = vmatprep.subr.mxu0 0.0
      %969 = vmatpush1.msra.mxu0 %v680
      %970 = vmatprep.subr.mxu0 0.0
      %971 = vmatpush1.msra.mxu0 %v681
      %972 = vmatprep.subr.mxu0 0.0
      %973 = vmatpush1.msra.mxu0 %v682
      %974 = vmatprep.subr.mxu0 0.0
      %975 = vmatpush1.msra.mxu0 %v683
      %976 = vmatprep.subr.mxu0 0.0
      %977 = vmatpush1.msra.mxu0 %v684
      %978 = vmatprep.subr.mxu0 0.0
      %979 = vmatpush1.msra.mxu0 %v685
      %980 = vmatprep.subr.mxu0 0.0
      %981 = vmatpush1.msra.mxu0 %v686
      %982 = vmatprep.subr.mxu0 0.0
      %983 = vmatpush1.msra.mxu0 %v687
      %984 = vmatprep.subr.mxu0 0.0
      %985 = vmatpush1.msra.mxu0 %v688
      %986 = vmatprep.subr.mxu0 0.0
      %987 = vmatpush1.msra.mxu0 %v689
      %988 = vmatprep.subr.mxu0 0.0
      %989 = vmatpush1.msra.mxu0 %v690
      %990 = vmatprep.subr.mxu0 0.0
      %991 = vmatpush1.msra.mxu0 %v691
      %992 = vmatprep.subr.mxu0 0.0
      %993 = vmatpush1.msra.mxu0 %v692
      %994 = vmatprep.subr.mxu0 0.0
      %995 = vmatpush1.msra.mxu0 %v693
      %996 = vmatprep.subr.mxu0 0.0
      %997 = vmatpush1.msra.mxu0 %v694
      %998 = vmatprep.subr.mxu0 0.0
      %999 = vmatpush1.msra.mxu0 %v695
      %1000 = vmatprep.subr.mxu0 0.0
      %1001 = vmatpush1.msra.mxu0 %v696
      %1002 = vmatprep.subr.mxu0 0.0
      %1003 = vmatpush1.msra.mxu0 %v697
      %1004 = vmatprep.subr.mxu0 0.0
      %1005 = vmatpush1.msra.mxu0 %v698
      %1006 = vmatprep.subr.mxu0 0.0
      %1007 = vmatpush1.msra.mxu0 %v699
      %1008 = vmatprep.subr.mxu0 0.0
      %1009 = vmatpush1.msra.mxu0 %v700
      %1010 = vmatprep.subr.mxu0 0.0
      %1011 = vmatpush1.msra.mxu0 %v701
      %1012 = vmatprep.subr.mxu0 0.0
      %1013 = vmatpush1.msra.mxu0 %v702
      %1014 = vmatprep.subr.mxu0 0.0
      %1015 = vmatpush1.msra.mxu0 %v703
      %1016 = vmatprep.subr.mxu0 0.0
      %1017 = vmatpush1.msra.mxu0 %v704
      %1018 = vmatprep.subr.mxu0 0.0
      %1019 = vmatpush1.msra.mxu0 %v705
      %1020 = vmatprep.subr.mxu0 0.0
      %1021 = vmatpush1.msra.mxu0 %v706
      %1022 = vmatprep.subr.mxu0 0.0
      %1023 = vmatpush1.msra.mxu0 %v707
      %1024 = vmatprep.subr.mxu0 0.0
      %1025 = vmatpush1.msra.mxu0 %v708
      %1026 = vmatprep.subr.mxu0 0.0
      %1027 = vmatpush1.msra.mxu0 %v709
      %1028 = vmatprep.subr.mxu0 0.0
      %1029 = vmatpush1.msra.mxu0 %v710
      %1030 = vmatprep.subr.mxu0 0.0
      %1031 = vmatpush1.msra.mxu0 %v711
      %1032 = vmatprep.mubr.f32.mxu0 %v249
      %1033 = vmatmul.mubr.f32.gmra.mrb[0].mxu0 %v248
      %v1034 = vpop.f32.mrb[0].mxu0
      %v1035 = vadd.f32 0.0, %v1034
      %v1036 = vpop.f32.mrb[0].mxu0
      %1037 = vmatprep.mubr.f32.mxu0 %v267
      %1038 = vmatmul.mubr.f32.gmra.mrb[0].mxu0 %v266
      %v1039 = vpop.f32.mrb[0].mxu0
      %v1040 = vadd.f32 0.0, %v1039
      %v1041 = vpop.f32.mrb[0].mxu0
      %1042 = vmatprep.mubr.f32.mxu0 %v285
      %1043 = vmatmul.mubr.f32.gmra.mrb[0].mxu0 %v284
      %v1044 = vpop.f32.mrb[0].mxu0
      %v1045 = vadd.f32 0.0, %v1044
      %v1046 = vpop.f32.mrb[0].mxu0
      %1047 = vmatprep.mubr.f32.mxu0 %v303
      %1048 = vmatmul.mubr.f32.gmra.mrb[0].mxu0 %v302
      %v1049 = vpop.f32.mrb[0].mxu0
      %v1050 = vadd.f32 0.0, %v1049
      %v1051 = vpop.f32.mrb[0].mxu0
      %1052 = vmatprep.mubr.f32.mxu0 %v321
      %1053 = vmatmul.mubr.f32.gmra.mrb[0].mxu0 %v320
      %v1054 = vpop.f32.mrb[0].mxu0
      %v1055 = vadd.f32 0.0, %v1054
      %v1056 = vpop.f32.mrb[0].mxu0
      %1057 = vmatprep.mubr.f32.mxu0 %v339
      %1058 = vmatmul.mubr.f32.gmra.mrb[0].mxu0 %v338
      %v1059 = vpop.f32.mrb[0].mxu0
      %v1060 = vadd.f32 0.0, %v1059
      %v1061 = vpop.f32.mrb[0].mxu0
      %1062 = vmatprep.mubr.f32.mxu0 %v357
      %1063 = vmatmul.mubr.f32.gmra.mrb[0].mxu0 %v356
      %v1064 = vpop.f32.mrb[0].mxu0
      %v1065 = vadd.f32 0.0, %v1064
      %v1066 = vpop.f32.mrb[0].mxu0
      %1067 = vmatprep.mubr.f32.mxu0 %v375
      %1068 = vmatmul.mubr.f32.gmra.mrb[0].mxu0 %v374
      %v1069 = vpop.f32.mrb[0].mxu0
      %v1070 = vadd.f32 0.0, %v1069
      %v1071 = vpop.f32.mrb[0].mxu0
      %1072 = vmatprep.mubr.f32.mxu0 %v393
      %1073 = vmatmul.mubr.f32.gmra.mrb[0].mxu0 %v392
      %v1074 = vpop.f32.mrb[0].mxu0
      %v1075 = vadd.f32 0.0, %v1074
      %v1076 = vpop.f32.mrb[0].mxu0
      %1077 = vmatprep.mubr.f32.mxu0 %v411
      %1078 = vmatmul.mubr.f32.gmra.mrb[0].mxu0 %v410
      %v1079 = vpop.f32.mrb[0].mxu0
      %v1080 = vadd.f32 0.0, %v1079
      %v1081 = vpop.f32.mrb[0].mxu0
      %1082 = vmatprep.mubr.f32.mxu0 %v429
      %1083 = vmatmul.mubr.f32.gmra.mrb[0].mxu0 %v428
      %v1084 = vpop.f32.mrb[0].mxu0
      %v1085 = vadd.f32 0.0, %v1084
      %v1086 = vpop.f32.mrb[0].mxu0
      %1087 = vmatprep.mubr.f32.mxu0 %v447
      %1088 = vmatmul.mubr.f32.gmra.mrb[0].mxu0 %v446
      %v1089 = vpop.f32.mrb[0].mxu0
      %v1090 = vadd.f32 0.0, %v1089
      %v1091 = vpop.f32.mrb[0].mxu0
      %1092 = vmatprep.mubr.f32.mxu0 %v465
      %1093 = vmatmul.mubr.f32.gmra.mrb[0].mxu0 %v464
      %v1094 = vpop.f32.mrb[0].mxu0
      %v1095 = vadd.f32 0.0, %v1094
      %v1096 = vpop.f32.mrb[0].mxu0
      %1097 = vmatprep.mubr.f32.mxu0 %v483
      %1098 = vmatmul.mubr.f32.gmra.mrb[0].mxu0 %v482
      %v1099 = vpop.f32.mrb[0].mxu0
      %v1100 = vadd.f32 0.0, %v1099
      %v1101 = vpop.f32.mrb[0].mxu0
      %1102 = vmatprep.mubr.f32.mxu0 %v501
      %1103 = vmatmul.mubr.f32.gmra.mrb[0].mxu0 %v500
      %v1104 = vpop.f32.mrb[0].mxu0
      %v1105 = vadd.f32 0.0, %v1104
      %v1106 = vpop.f32.mrb[0].mxu0
      %1107 = vmatprep.mubr.f32.mxu0 %v519
      %1108 = vmatmul.mubr.f32.gmra.mrb[0].mxu0 %v518
      %v1109 = vpop.f32.mrb[0].mxu0
      %v1110 = vadd.f32 0.0, %v1109
      %v1111 = vpop.f32.mrb[0].mxu0
      %1112 = vmatprep.mubr.f32.mxu0 %v537
      %1113 = vmatmul.mubr.f32.gmra.mrb[0].mxu0 %v536
      %v1114 = vpop.f32.mrb[0].mxu0
      %v1115 = vadd.f32 0.0, %v1114
      %v1116 = vpop.f32.mrb[0].mxu0
      %1117 = vmatprep.mubr.f32.mxu0 %v555
      %1118 = vmatmul.mubr.f32.gmra.mrb[0].mxu0 %v554
      %v1119 = vpop.f32.mrb[0].mxu0
      %v1120 = vadd.f32 0.0, %v1119
      %v1121 = vpop.f32.mrb[0].mxu0
      %1122 = vmatprep.mubr.f32.mxu0 %v573
      %1123 = vmatmul.mubr.f32.gmra.mrb[0].mxu0 %v572
      %v1124 = vpop.f32.mrb[0].mxu0
      %v1125 = vadd.f32 0.0, %v1124
      %v1126 = vpop.f32.mrb[0].mxu0
      %1127 = vmatprep.mubr.f32.mxu0 %v591
      %1128 = vmatmul.mubr.f32.gmra.mrb[0].mxu0 %v590
      %v1129 = vpop.f32.mrb[0].mxu0
      %v1130 = vadd.f32 0.0, %v1129
      %v1131 = vpop.f32.mrb[0].mxu0
      %1132 = vmatprep.mubr.f32.mxu0 %v609
      %1133 = vmatmul.mubr.f32.gmra.mrb[0].mxu0 %v608
      %v1134 = vpop.f32.mrb[0].mxu0
      %v1135 = vadd.f32 0.0, %v1134
      %v1136 = vpop.f32.mrb[0].mxu0
      %1137 = vmatprep.mubr.f32.mxu0 %v627
      %1138 = vmatmul.mubr.f32.gmra.mrb[0].mxu0 %v626
      %v1139 = vpop.f32.mrb[0].mxu0
      %v1140 = vadd.f32 0.0, %v1139
      %v1141 = vpop.f32.mrb[0].mxu0
      %1142 = vmatprep.mubr.f32.mxu0 %v645
      %1143 = vmatmul.mubr.f32.gmra.mrb[0].mxu0 %v644
      %v1144 = vpop.f32.mrb[0].mxu0
      %v1145 = vadd.f32 0.0, %v1144
      %v1146 = vpop.f32.mrb[0].mxu0
      %1147 = vmatprep.mubr.f32.mxu0 %v663
      %1148 = vmatmul.mubr.f32.gmra.mrb[0].mxu0 %v662
      %v1149 = vpop.f32.mrb[0].mxu0
      %v1150 = vadd.f32 0.0, %v1149
      %v1151 = vpop.f32.mrb[0].mxu0
      %1152 = vdwg.mxu0
      %1153 = vmatprep.subr.mxu0 0.0
      %1154 = vmatpush1.msra.mxu0 %v712
      %1155 = vmatprep.subr.mxu0 0.0
      %1156 = vmatpush1.msra.mxu0 %v713
      %1157 = vmatprep.subr.mxu0 0.0
      %1158 = vmatpush1.msra.mxu0 %v714
      %1159 = vmatprep.subr.mxu0 0.0
      %1160 = vmatpush1.msra.mxu0 %v715
      %1161 = vmatprep.subr.mxu0 0.0
      %1162 = vmatpush1.msra.mxu0 %v716
      %1163 = vmatprep.subr.mxu0 0.0
      %1164 = vmatpush1.msra.mxu0 %v717
      %1165 = vmatprep.subr.mxu0 0.0
      %1166 = vmatpush1.msra.mxu0 %v718
      %1167 = vmatprep.subr.mxu0 0.0
      %1168 = vmatpush1.msra.mxu0 %v719
      %1169 = vmatprep.subr.mxu0 0.0
      %1170 = vmatpush1.msra.mxu0 %v720
      %1171 = vmatprep.subr.mxu0 0.0
      %1172 = vmatpush1.msra.mxu0 %v721
      %1173 = vmatprep.subr.mxu0 0.0
      %1174 = vmatpush1.msra.mxu0 %v722
      %1175 = vmatprep.subr.mxu0 0.0
      %1176 = vmatpush1.msra.mxu0 %v723
      %1177 = vmatprep.subr.mxu0 0.0
      %1178 = vmatpush1.msra.mxu0 %v724
      %1179 = vmatprep.subr.mxu0 0.0
      %1180 = vmatpush1.msra.mxu0 %v725
      %1181 = vmatprep.subr.mxu0 0.0
      %1182 = vmatpush1.msra.mxu0 %v726
      %1183 = vmatprep.subr.mxu0 0.0
      %1184 = vmatpush1.msra.mxu0 %v727
      %1185 = vmatprep.subr.mxu0 0.0
      %1186 = vmatpush1.msra.mxu0 %v728
      %1187 = vmatprep.subr.mxu0 0.0
      %1188 = vmatpush1.msra.mxu0 %v729
      %1189 = vmatprep.subr.mxu0 0.0
      %1190 = vmatpush1.msra.mxu0 %v730
      %1191 = vmatprep.subr.mxu0 0.0
      %1192 = vmatpush1.msra.mxu0 %v731
      %1193 = vmatprep.subr.mxu0 0.0
      %1194 = vmatpush1.msra.mxu0 %v732
      %1195 = vmatprep.subr.mxu0 0.0
      %1196 = vmatpush1.msra.mxu0 %v733
      %1197 = vmatprep.subr.mxu0 0.0
      %1198 = vmatpush1.msra.mxu0 %v734
      %1199 = vmatprep.subr.mxu0 0.0
      %1200 = vmatpush1.msra.mxu0 %v735
      %1201 = vmatprep.subr.mxu0 0.0
      %1202 = vmatpush1.msra.mxu0 %v736
      %1203 = vmatprep.subr.mxu0 0.0
      %1204 = vmatpush1.msra.mxu0 %v737
      %1205 = vmatprep.subr.mxu0 0.0
      %1206 = vmatpush1.msra.mxu0 %v738
      %1207 = vmatprep.subr.mxu0 0.0
      %1208 = vmatpush1.msra.mxu0 %v739
      %1209 = vmatprep.subr.mxu0 0.0
      %1210 = vmatpush1.msra.mxu0 %v740
      %1211 = vmatprep.subr.mxu0 0.0
      %1212 = vmatpush1.msra.mxu0 %v741
      %1213 = vmatprep.subr.mxu0 0.0
      %1214 = vmatpush1.msra.mxu0 %v742
      %1215 = vmatprep.subr.mxu0 0.0
      %1216 = vmatpush1.msra.mxu0 %v743
      %1217 = vmatprep.mubr.f32.mxu0 %v251
      %1218 = vmatmul.mubr.f32.gmra.mrb[0].mxu0 %v250
      %v1219 = vpop.f32.mrb[0].mxu0
      %v1220 = vadd.f32 %v1035, %v1219
      %v1221 = vpop.f32.mrb[0].mxu0
      %1222 = vmatprep.mubr.f32.mxu0 %v269
      %1223 = vmatmul.mubr.f32.gmra.mrb[0].mxu0 %v268
      %v1224 = vpop.f32.mrb[0].mxu0
      %v1225 = vadd.f32 %v1040, %v1224
      %v1226 = vpop.f32.mrb[0].mxu0
      %1227 = vmatprep.mubr.f32.mxu0 %v287
      %1228 = vmatmul.mubr.f32.gmra.mrb[0].mxu0 %v286
      %v1229 = vpop.f32.mrb[0].mxu0
      %v1230 = vadd.f32 %v1045, %v1229
      %v1231 = vpop.f32.mrb[0].mxu0
      %1232 = vmatprep.mubr.f32.mxu0 %v305
      %1233 = vmatmul.mubr.f32.gmra.mrb[0].mxu0 %v304
      %v1234 = vpop.f32.mrb[0].mxu0
      %v1235 = vadd.f32 %v1050, %v1234
      %v1236 = vpop.f32.mrb[0].mxu0
      %1237 = vmatprep.mubr.f32.mxu0 %v323
      %1238 = vmatmul.mubr.f32.gmra.mrb[0].mxu0 %v322
      %v1239 = vpop.f32.mrb[0].mxu0
      %v1240 = vadd.f32 %v1055, %v1239
      %v1241 = vpop.f32.mrb[0].mxu0
      %1242 = vmatprep.mubr.f32.mxu0 %v341
      %1243 = vmatmul.mubr.f32.gmra.mrb[0].mxu0 %v340
      %v1244 = vpop.f32.mrb[0].mxu0
      %v1245 = vadd.f32 %v1060, %v1244
      %v1246 = vpop.f32.mrb[0].mxu0
      %1247 = vmatprep.mubr.f32.mxu0 %v359
      %1248 = vmatmul.mubr.f32.gmra.mrb[0].mxu0 %v358
      %v1249 = vpop.f32.mrb[0].mxu0
      %v1250 = vadd.f32 %v1065, %v1249
      %v1251 = vpop.f32.mrb[0].mxu0
      %1252 = vmatprep.mubr.f32.mxu0 %v377
      %1253 = vmatmul.mubr.f32.gmra.mrb[0].mxu0 %v376
      %v1254 = vpop.f32.mrb[0].mxu0
      %v1255 = vadd.f32 %v1070, %v1254
      %v1256 = vpop.f32.mrb[0].mxu0
      %1257 = vmatprep.mubr.f32.mxu0 %v395
      %1258 = vmatmul.mubr.f32.gmra.mrb[0].mxu0 %v394
      %v1259 = vpop.f32.mrb[0].mxu0
      %v1260 = vadd.f32 %v1075, %v1259
      %v1261 = vpop.f32.mrb[0].mxu0
      %1262 = vmatprep.mubr.f32.mxu0 %v413
      %1263 = vmatmul.mubr.f32.gmra.mrb[0].mxu0 %v412
      %v1264 = vpop.f32.mrb[0].mxu0
      %v1265 = vadd.f32 %v1080, %v1264
      %v1266 = vpop.f32.mrb[0].mxu0
      %1267 = vmatprep.mubr.f32.mxu0 %v431
      %1268 = vmatmul.mubr.f32.gmra.mrb[0].mxu0 %v430
      %v1269 = vpop.f32.mrb[0].mxu0
      %v1270 = vadd.f32 %v1085, %v1269
      %v1271 = vpop.f32.mrb[0].mxu0
      %1272 = vmatprep.mubr.f32.mxu0 %v449
      %1273 = vmatmul.mubr.f32.gmra.mrb[0].mxu0 %v448
      %v1274 = vpop.f32.mrb[0].mxu0
      %v1275 = vadd.f32 %v1090, %v1274
      %v1276 = vpop.f32.mrb[0].mxu0
      %1277 = vmatprep.mubr.f32.mxu0 %v467
      %1278 = vmatmul.mubr.f32.gmra.mrb[0].mxu0 %v466
      %v1279 = vpop.f32.mrb[0].mxu0
      %v1280 = vadd.f32 %v1095, %v1279
      %v1281 = vpop.f32.mrb[0].mxu0
      %1282 = vmatprep.mubr.f32.mxu0 %v485
      %1283 = vmatmul.mubr.f32.gmra.mrb[0].mxu0 %v484
      %v1284 = vpop.f32.mrb[0].mxu0
      %v1285 = vadd.f32 %v1100, %v1284
      %v1286 = vpop.f32.mrb[0].mxu0
      %1287 = vmatprep.mubr.f32.mxu0 %v503
      %1288 = vmatmul.mubr.f32.gmra.mrb[0].mxu0 %v502
      %v1289 = vpop.f32.mrb[0].mxu0
      %v1290 = vadd.f32 %v1105, %v1289
      %v1291 = vpop.f32.mrb[0].mxu0
      %1292 = vmatprep.mubr.f32.mxu0 %v521
      %1293 = vmatmul.mubr.f32.gmra.mrb[0].mxu0 %v520
      %v1294 = vpop.f32.mrb[0].mxu0
      %v1295 = vadd.f32 %v1110, %v1294
      %v1296 = vpop.f32.mrb[0].mxu0
      %1297 = vmatprep.mubr.f32.mxu0 %v539
      %1298 = vmatmul.mubr.f32.gmra.mrb[0].mxu0 %v538
      %v1299 = vpop.f32.mrb[0].mxu0
      %v1300 = vadd.f32 %v1115, %v1299
      %v1301 = vpop.f32.mrb[0].mxu0
      %1302 = vmatprep.mubr.f32.mxu0 %v557
      %1303 = vmatmul.mubr.f32.gmra.mrb[0].mxu0 %v556
      %v1304 = vpop.f32.mrb[0].mxu0
      %v1305 = vadd.f32 %v1120, %v1304
      %v1306 = vpop.f32.mrb[0].mxu0
      %1307 = vmatprep.mubr.f32.mxu0 %v575
      %1308 = vmatmul.mubr.f32.gmra.mrb[0].mxu0 %v574
      %v1309 = vpop.f32.mrb[0].mxu0
      %v1310 = vadd.f32 %v1125, %v1309
      %v1311 = vpop.f32.mrb[0].mxu0
      %1312 = vmatprep.mubr.f32.mxu0 %v593
      %1313 = vmatmul.mubr.f32.gmra.mrb[0].mxu0 %v592
      %v1314 = vpop.f32.mrb[0].mxu0
      %v1315 = vadd.f32 %v1130, %v1314
      %v1316 = vpop.f32.mrb[0].mxu0
      %1317 = vmatprep.mubr.f32.mxu0 %v611
      %1318 = vmatmul.mubr.f32.gmra.mrb[0].mxu0 %v610
      %v1319 = vpop.f32.mrb[0].mxu0
      %v1320 = vadd.f32 %v1135, %v1319
      %v1321 = vpop.f32.mrb[0].mxu0
      %1322 = vmatprep.mubr.f32.mxu0 %v629
      %1323 = vmatmul.mubr.f32.gmra.mrb[0].mxu0 %v628
      %v1324 = vpop.f32.mrb[0].mxu0
      %v1325 = vadd.f32 %v1140, %v1324
      %v1326 = vpop.f32.mrb[0].mxu0
      %1327 = vmatprep.mubr.f32.mxu0 %v647
      %1328 = vmatmul.mubr.f32.gmra.mrb[0].mxu0 %v646
      %v1329 = vpop.f32.mrb[0].mxu0
      %v1330 = vadd.f32 %v1145, %v1329
      %v1331 = vpop.f32.mrb[0].mxu0
      %1332 = vmatprep.mubr.f32.mxu0 %v665
      %1333 = vmatmul.mubr.f32.gmra.mrb[0].mxu0 %v664
      %v1334 = vpop.f32.mrb[0].mxu0
      %v1335 = vadd.f32 %v1150, %v1334
      %v1336 = vpop.f32.mrb[0].mxu0
      %1337 = vdwg.mxu0
      %1338 = vmatprep.subr.mxu0 0.0
      %1339 = vmatpush1.msra.mxu0 %v744
      %1340 = vmatprep.subr.mxu0 0.0
      %1341 = vmatpush1.msra.mxu0 %v745
      %1342 = vmatprep.subr.mxu0 0.0
      %1343 = vmatpush1.msra.mxu0 %v746
      %1344 = vmatprep.subr.mxu0 0.0
      %1345 = vmatpush1.msra.mxu0 %v747
      %1346 = vmatprep.subr.mxu0 0.0
      %1347 = vmatpush1.msra.mxu0 %v748
      %1348 = vmatprep.subr.mxu0 0.0
      %1349 = vmatpush1.msra.mxu0 %v749
      %1350 = vmatprep.subr.mxu0 0.0
      %1351 = vmatpush1.msra.mxu0 %v750
      %1352 = vmatprep.subr.mxu0 0.0
      %1353 = vmatpush1.msra.mxu0 %v751
      %1354 = vmatprep.subr.mxu0 0.0
      %1355 = vmatpush1.msra.mxu0 %v752
      %1356 = vmatprep.subr.mxu0 0.0
      %1357 = vmatpush1.msra.mxu0 %v753
      %1358 = vmatprep.subr.mxu0 0.0
      %1359 = vmatpush1.msra.mxu0 %v754
      %1360 = vmatprep.subr.mxu0 0.0
      %1361 = vmatpush1.msra.mxu0 %v755
      %1362 = vmatprep.subr.mxu0 0.0
      %1363 = vmatpush1.msra.mxu0 %v756
      %1364 = vmatprep.subr.mxu0 0.0
      %1365 = vmatpush1.msra.mxu0 %v757
      %1366 = vmatprep.subr.mxu0 0.0
      %1367 = vmatpush1.msra.mxu0 %v758
      %1368 = vmatprep.subr.mxu0 0.0
      %1369 = vmatpush1.msra.mxu0 %v759
      %1370 = vmatprep.subr.mxu0 0.0
      %1371 = vmatpush1.msra.mxu0 %v760
      %1372 = vmatprep.subr.mxu0 0.0
      %1373 = vmatpush1.msra.mxu0 %v761
      %1374 = vmatprep.subr.mxu0 0.0
      %1375 = vmatpush1.msra.mxu0 %v762
      %1376 = vmatprep.subr.mxu0 0.0
      %1377 = vmatpush1.msra.mxu0 %v763
      %1378 = vmatprep.subr.mxu0 0.0
      %1379 = vmatpush1.msra.mxu0 %v764
      %1380 = vmatprep.subr.mxu0 0.0
      %1381 = vmatpush1.msra.mxu0 %v765
      %1382 = vmatprep.subr.mxu0 0.0
      %1383 = vmatpush1.msra.mxu0 %v766
      %1384 = vmatprep.subr.mxu0 0.0
      %1385 = vmatpush1.msra.mxu0 %v767
      %1386 = vmatprep.subr.mxu0 0.0
      %1387 = vmatpush1.msra.mxu0 %v768
      %1388 = vmatprep.subr.mxu0 0.0
      %1389 = vmatpush1.msra.mxu0 %v769
      %1390 = vmatprep.subr.mxu0 0.0
      %1391 = vmatpush1.msra.mxu0 %v770
      %1392 = vmatprep.subr.mxu0 0.0
      %1393 = vmatpush1.msra.mxu0 %v771
      %1394 = vmatprep.subr.mxu0 0.0
      %1395 = vmatpush1.msra.mxu0 %v772
      %1396 = vmatprep.subr.mxu0 0.0
      %1397 = vmatpush1.msra.mxu0 %v773
      %1398 = vmatprep.subr.mxu0 0.0
      %1399 = vmatpush1.msra.mxu0 %v774
      %1400 = vmatprep.subr.mxu0 0.0
      %1401 = vmatpush1.msra.mxu0 %v775
      %1402 = vmatprep.mubr.f32.mxu0 %v253
      %1403 = vmatmul.mubr.f32.gmra.mrb[0].mxu0 %v252
      %v1404 = vpop.f32.mrb[0].mxu0
      %v1405 = vadd.f32 %v1220, %v1404
      %v1406 = vpop.f32.mrb[0].mxu0
      %1407 = vmatprep.mubr.f32.mxu0 %v271
      %1408 = vmatmul.mubr.f32.gmra.mrb[0].mxu0 %v270
      %v1409 = vpop.f32.mrb[0].mxu0
      %v1410 = vadd.f32 %v1225, %v1409
      %v1411 = vpop.f32.mrb[0].mxu0
      %1412 = vmatprep.mubr.f32.mxu0 %v289
      %1413 = vmatmul.mubr.f32.gmra.mrb[0].mxu0 %v288
      %v1414 = vpop.f32.mrb[0].mxu0
      %v1415 = vadd.f32 %v1230, %v1414
      %v1416 = vpop.f32.mrb[0].mxu0
      %1417 = vmatprep.mubr.f32.mxu0 %v307
      %1418 = vmatmul.mubr.f32.gmra.mrb[0].mxu0 %v306
      %v1419 = vpop.f32.mrb[0].mxu0
      %v1420 = vadd.f32 %v1235, %v1419
      %v1421 = vpop.f32.mrb[0].mxu0
      %1422 = vmatprep.mubr.f32.mxu0 %v325
      %1423 = vmatmul.mubr.f32.gmra.mrb[0].mxu0 %v324
      %v1424 = vpop.f32.mrb[0].mxu0
      %v1425 = vadd.f32 %v1240, %v1424
      %v1426 = vpop.f32.mrb[0].mxu0
      %1427 = vmatprep.mubr.f32.mxu0 %v343
      %1428 = vmatmul.mubr.f32.gmra.mrb[0].mxu0 %v342
      %v1429 = vpop.f32.mrb[0].mxu0
      %v1430 = vadd.f32 %v1245, %v1429
      %v1431 = vpop.f32.mrb[0].mxu0
      %1432 = vmatprep.mubr.f32.mxu0 %v361
      %1433 = vmatmul.mubr.f32.gmra.mrb[0].mxu0 %v360
      %v1434 = vpop.f32.mrb[0].mxu0
      %v1435 = vadd.f32 %v1250, %v1434
      %v1436 = vpop.f32.mrb[0].mxu0
      %1437 = vmatprep.mubr.f32.mxu0 %v379
      %1438 = vmatmul.mubr.f32.gmra.mrb[0].mxu0 %v378
      %v1439 = vpop.f32.mrb[0].mxu0
      %v1440 = vadd.f32 %v1255, %v1439
      %v1441 = vpop.f32.mrb[0].mxu0
      %1442 = vmatprep.mubr.f32.mxu0 %v397
      %1443 = vmatmul.mubr.f32.gmra.mrb[0].mxu0 %v396
      %v1444 = vpop.f32.mrb[0].mxu0
      %v1445 = vadd.f32 %v1260, %v1444
      %v1446 = vpop.f32.mrb[0].mxu0
      %1447 = vmatprep.mubr.f32.mxu0 %v415
      %1448 = vmatmul.mubr.f32.gmra.mrb[0].mxu0 %v414
      %v1449 = vpop.f32.mrb[0].mxu0
      %v1450 = vadd.f32 %v1265, %v1449
      %v1451 = vpop.f32.mrb[0].mxu0
      %1452 = vmatprep.mubr.f32.mxu0 %v433
      %1453 = vmatmul.mubr.f32.gmra.mrb[0].mxu0 %v432
      %v1454 = vpop.f32.mrb[0].mxu0
      %v1455 = vadd.f32 %v1270, %v1454
      %v1456 = vpop.f32.mrb[0].mxu0
      %1457 = vmatprep.mubr.f32.mxu0 %v451
      %1458 = vmatmul.mubr.f32.gmra.mrb[0].mxu0 %v450
      %v1459 = vpop.f32.mrb[0].mxu0
      %v1460 = vadd.f32 %v1275, %v1459
      %v1461 = vpop.f32.mrb[0].mxu0
      %1462 = vmatprep.mubr.f32.mxu0 %v469
      %1463 = vmatmul.mubr.f32.gmra.mrb[0].mxu0 %v468
      %v1464 = vpop.f32.mrb[0].mxu0
      %v1465 = vadd.f32 %v1280, %v1464
      %v1466 = vpop.f32.mrb[0].mxu0
      %1467 = vmatprep.mubr.f32.mxu0 %v487
      %1468 = vmatmul.mubr.f32.gmra.mrb[0].mxu0 %v486
      %v1469 = vpop.f32.mrb[0].mxu0
      %v1470 = vadd.f32 %v1285, %v1469
      %v1471 = vpop.f32.mrb[0].mxu0
      %1472 = vmatprep.mubr.f32.mxu0 %v505
      %1473 = vmatmul.mubr.f32.gmra.mrb[0].mxu0 %v504
      %v1474 = vpop.f32.mrb[0].mxu0
      %v1475 = vadd.f32 %v1290, %v1474
      %v1476 = vpop.f32.mrb[0].mxu0
      %1477 = vmatprep.mubr.f32.mxu0 %v523
      %1478 = vmatmul.mubr.f32.gmra.mrb[0].mxu0 %v522
      %v1479 = vpop.f32.mrb[0].mxu0
      %v1480 = vadd.f32 %v1295, %v1479
      %v1481 = vpop.f32.mrb[0].mxu0
      %1482 = vmatprep.mubr.f32.mxu0 %v541
      %1483 = vmatmul.mubr.f32.gmra.mrb[0].mxu0 %v540
      %v1484 = vpop.f32.mrb[0].mxu0
      %v1485 = vadd.f32 %v1300, %v1484
      %v1486 = vpop.f32.mrb[0].mxu0
      %1487 = vmatprep.mubr.f32.mxu0 %v559
      %1488 = vmatmul.mubr.f32.gmra.mrb[0].mxu0 %v558
      %v1489 = vpop.f32.mrb[0].mxu0
      %v1490 = vadd.f32 %v1305, %v1489
      %v1491 = vpop.f32.mrb[0].mxu0
      %1492 = vmatprep.mubr.f32.mxu0 %v577
      %1493 = vmatmul.mubr.f32.gmra.mrb[0].mxu0 %v576
      %v1494 = vpop.f32.mrb[0].mxu0
      %v1495 = vadd.f32 %v1310, %v1494
      %v1496 = vpop.f32.mrb[0].mxu0
      %1497 = vmatprep.mubr.f32.mxu0 %v595
      %1498 = vmatmul.mubr.f32.gmra.mrb[0].mxu0 %v594
      %v1499 = vpop.f32.mrb[0].mxu0
      %v1500 = vadd.f32 %v1315, %v1499
      %v1501 = vpop.f32.mrb[0].mxu0
      %1502 = vmatprep.mubr.f32.mxu0 %v613
      %1503 = vmatmul.mubr.f32.gmra.mrb[0].mxu0 %v612
      %v1504 = vpop.f32.mrb[0].mxu0
      %v1505 = vadd.f32 %v1320, %v1504
      %v1506 = vpop.f32.mrb[0].mxu0
      %1507 = vmatprep.mubr.f32.mxu0 %v631
      %1508 = vmatmul.mubr.f32.gmra.mrb[0].mxu0 %v630
      %v1509 = vpop.f32.mrb[0].mxu0
      %v1510 = vadd.f32 %v1325, %v1509
      %v1511 = vpop.f32.mrb[0].mxu0
      %1512 = vmatprep.mubr.f32.mxu0 %v649
      %1513 = vmatmul.mubr.f32.gmra.mrb[0].mxu0 %v648
      %v1514 = vpop.f32.mrb[0].mxu0
      %v1515 = vadd.f32 %v1330, %v1514
      %v1516 = vpop.f32.mrb[0].mxu0
      %1517 = vmatprep.mubr.f32.mxu0 %v667
      %1518 = vmatmul.mubr.f32.gmra.mrb[0].mxu0 %v666
      %v1519 = vpop.f32.mrb[0].mxu0
      %v1520 = vadd.f32 %v1335, %v1519
      %v1521 = vpop.f32.mrb[0].mxu0
      %1522 = vdwg.mxu0
      %1523 = vmatprep.subr.mxu0 0.0
      %1524 = vmatpush1.msra.mxu0 %v776
      %1525 = vmatprep.subr.mxu0 0.0
      %1526 = vmatpush1.msra.mxu0 %v777
      %1527 = vmatprep.subr.mxu0 0.0
      %1528 = vmatpush1.msra.mxu0 %v778
      %1529 = vmatprep.subr.mxu0 0.0
      %1530 = vmatpush1.msra.mxu0 %v779
      %1531 = vmatprep.subr.mxu0 0.0
      %1532 = vmatpush1.msra.mxu0 %v780
      %1533 = vmatprep.subr.mxu0 0.0
      %1534 = vmatpush1.msra.mxu0 %v781
      %1535 = vmatprep.subr.mxu0 0.0
      %1536 = vmatpush1.msra.mxu0 %v782
      %1537 = vmatprep.subr.mxu0 0.0
      %1538 = vmatpush1.msra.mxu0 %v783
      %1539 = vmatprep.subr.mxu0 0.0
      %1540 = vmatpush1.msra.mxu0 %v784
      %1541 = vmatprep.subr.mxu0 0.0
      %1542 = vmatpush1.msra.mxu0 %v785
      %1543 = vmatprep.subr.mxu0 0.0
      %1544 = vmatpush1.msra.mxu0 %v786
      %1545 = vmatprep.subr.mxu0 0.0
      %1546 = vmatpush1.msra.mxu0 %v787
      %1547 = vmatprep.subr.mxu0 0.0
      %1548 = vmatpush1.msra.mxu0 %v788
      %1549 = vmatprep.subr.mxu0 0.0
      %1550 = vmatpush1.msra.mxu0 %v789
      %1551 = vmatprep.subr.mxu0 0.0
      %1552 = vmatpush1.msra.mxu0 %v790
      %1553 = vmatprep.subr.mxu0 0.0
      %1554 = vmatpush1.msra.mxu0 %v791
      %1555 = vmatprep.subr.mxu0 0.0
      %1556 = vmatpush1.msra.mxu0 %v792
      %1557 = vmatprep.subr.mxu0 0.0
      %1558 = vmatpush1.msra.mxu0 %v793
      %1559 = vmatprep.subr.mxu0 0.0
      %1560 = vmatpush1.msra.mxu0 %v794
      %1561 = vmatprep.subr.mxu0 0.0
      %1562 = vmatpush1.msra.mxu0 %v795
      %1563 = vmatprep.subr.mxu0 0.0
      %1564 = vmatpush1.msra.mxu0 %v796
      %1565 = vmatprep.subr.mxu0 0.0
      %1566 = vmatpush1.msra.mxu0 %v797
      %1567 = vmatprep.subr.mxu0 0.0
      %1568 = vmatpush1.msra.mxu0 %v798
      %1569 = vmatprep.subr.mxu0 0.0
      %1570 = vmatpush1.msra.mxu0 %v799
      %1571 = vmatprep.subr.mxu0 0.0
      %1572 = vmatpush1.msra.mxu0 %v800
      %1573 = vmatprep.subr.mxu0 0.0
      %1574 = vmatpush1.msra.mxu0 %v801
      %1575 = vmatprep.subr.mxu0 0.0
      %1576 = vmatpush1.msra.mxu0 %v802
      %1577 = vmatprep.subr.mxu0 0.0
      %1578 = vmatpush1.msra.mxu0 %v803
      %1579 = vmatprep.subr.mxu0 0.0
      %1580 = vmatpush1.msra.mxu0 %v804
      %1581 = vmatprep.subr.mxu0 0.0
      %1582 = vmatpush1.msra.mxu0 %v805
      %1583 = vmatprep.subr.mxu0 0.0
      %1584 = vmatpush1.msra.mxu0 %v806
      %1585 = vmatprep.subr.mxu0 0.0
      %1586 = vmatpush1.msra.mxu0 %v807
      %1587 = vmatprep.mubr.f32.mxu0 %v255
      %1588 = vmatmul.mubr.f32.gmra.mrb[0].mxu0 %v254
      %v1589 = vpop.f32.mrb[0].mxu0
      %v1590 = vadd.f32 %v1405, %v1589
      %v1591 = vpop.f32.mrb[0].mxu0
      %1592 = vmatprep.mubr.f32.mxu0 %v273
      %1593 = vmatmul.mubr.f32.gmra.mrb[0].mxu0 %v272
      %v1594 = vpop.f32.mrb[0].mxu0
      %v1595 = vadd.f32 %v1410, %v1594
      %v1596 = vpop.f32.mrb[0].mxu0
      %1597 = vmatprep.mubr.f32.mxu0 %v291
      %1598 = vmatmul.mubr.f32.gmra.mrb[0].mxu0 %v290
      %v1599 = vpop.f32.mrb[0].mxu0
      %v1600 = vadd.f32 %v1415, %v1599
      %v1601 = vpop.f32.mrb[0].mxu0
      %1602 = vmatprep.mubr.f32.mxu0 %v309
      %1603 = vmatmul.mubr.f32.gmra.mrb[0].mxu0 %v308
      %v1604 = vpop.f32.mrb[0].mxu0
      %v1605 = vadd.f32 %v1420, %v1604
      %v1606 = vpop.f32.mrb[0].mxu0
      %1607 = vmatprep.mubr.f32.mxu0 %v327
      %1608 = vmatmul.mubr.f32.gmra.mrb[0].mxu0 %v326
      %v1609 = vpop.f32.mrb[0].mxu0
      %v1610 = vadd.f32 %v1425, %v1609
      %v1611 = vpop.f32.mrb[0].mxu0
      %1612 = vmatprep.mubr.f32.mxu0 %v345
      %1613 = vmatmul.mubr.f32.gmra.mrb[0].mxu0 %v344
      %v1614 = vpop.f32.mrb[0].mxu0
      %v1615 = vadd.f32 %v1430, %v1614
      %v1616 = vpop.f32.mrb[0].mxu0
      %1617 = vmatprep.mubr.f32.mxu0 %v363
      %1618 = vmatmul.mubr.f32.gmra.mrb[0].mxu0 %v362
      %v1619 = vpop.f32.mrb[0].mxu0
      %v1620 = vadd.f32 %v1435, %v1619
      %v1621 = vpop.f32.mrb[0].mxu0
      %1622 = vmatprep.mubr.f32.mxu0 %v381
      %1623 = vmatmul.mubr.f32.gmra.mrb[0].mxu0 %v380
      %v1624 = vpop.f32.mrb[0].mxu0
      %v1625 = vadd.f32 %v1440, %v1624
      %v1626 = vpop.f32.mrb[0].mxu0
      %1627 = vmatprep.mubr.f32.mxu0 %v399
      %1628 = vmatmul.mubr.f32.gmra.mrb[0].mxu0 %v398
      %v1629 = vpop.f32.mrb[0].mxu0
      %v1630 = vadd.f32 %v1445, %v1629
      %v1631 = vpop.f32.mrb[0].mxu0
      %1632 = vmatprep.mubr.f32.mxu0 %v417
      %1633 = vmatmul.mubr.f32.gmra.mrb[0].mxu0 %v416
      %v1634 = vpop.f32.mrb[0].mxu0
      %v1635 = vadd.f32 %v1450, %v1634
      %v1636 = vpop.f32.mrb[0].mxu0
      %1637 = vmatprep.mubr.f32.mxu0 %v435
      %1638 = vmatmul.mubr.f32.gmra.mrb[0].mxu0 %v434
      %v1639 = vpop.f32.mrb[0].mxu0
      %v1640 = vadd.f32 %v1455, %v1639
      %v1641 = vpop.f32.mrb[0].mxu0
      %1642 = vmatprep.mubr.f32.mxu0 %v453
      %1643 = vmatmul.mubr.f32.gmra.mrb[0].mxu0 %v452
      %v1644 = vpop.f32.mrb[0].mxu0
      %v1645 = vadd.f32 %v1460, %v1644
      %v1646 = vpop.f32.mrb[0].mxu0
      %1647 = vmatprep.mubr.f32.mxu0 %v471
      %1648 = vmatmul.mubr.f32.gmra.mrb[0].mxu0 %v470
      %v1649 = vpop.f32.mrb[0].mxu0
      %v1650 = vadd.f32 %v1465, %v1649
      %v1651 = vpop.f32.mrb[0].mxu0
      %1652 = vmatprep.mubr.f32.mxu0 %v489
      %1653 = vmatmul.mubr.f32.gmra.mrb[0].mxu0 %v488
      %v1654 = vpop.f32.mrb[0].mxu0
      %v1655 = vadd.f32 %v1470, %v1654
      %v1656 = vpop.f32.mrb[0].mxu0
      %1657 = vmatprep.mubr.f32.mxu0 %v507
      %1658 = vmatmul.mubr.f32.gmra.mrb[0].mxu0 %v506
      %v1659 = vpop.f32.mrb[0].mxu0
      %v1660 = vadd.f32 %v1475, %v1659
      %v1661 = vpop.f32.mrb[0].mxu0
      %1662 = vmatprep.mubr.f32.mxu0 %v525
      %1663 = vmatmul.mubr.f32.gmra.mrb[0].mxu0 %v524
      %v1664 = vpop.f32.mrb[0].mxu0
      %v1665 = vadd.f32 %v1480, %v1664
      %v1666 = vpop.f32.mrb[0].mxu0
      %1667 = vmatprep.mubr.f32.mxu0 %v543
      %1668 = vmatmul.mubr.f32.gmra.mrb[0].mxu0 %v542
      %v1669 = vpop.f32.mrb[0].mxu0
      %v1670 = vadd.f32 %v1485, %v1669
      %v1671 = vpop.f32.mrb[0].mxu0
      %1672 = vmatprep.mubr.f32.mxu0 %v561
      %1673 = vmatmul.mubr.f32.gmra.mrb[0].mxu0 %v560
      %v1674 = vpop.f32.mrb[0].mxu0
      %v1675 = vadd.f32 %v1490, %v1674
      %v1676 = vpop.f32.mrb[0].mxu0
      %1677 = vmatprep.mubr.f32.mxu0 %v579
      %1678 = vmatmul.mubr.f32.gmra.mrb[0].mxu0 %v578
      %v1679 = vpop.f32.mrb[0].mxu0
      %v1680 = vadd.f32 %v1495, %v1679
      %v1681 = vpop.f32.mrb[0].mxu0
      %1682 = vmatprep.mubr.f32.mxu0 %v597
      %1683 = vmatmul.mubr.f32.gmra.mrb[0].mxu0 %v596
      %v1684 = vpop.f32.mrb[0].mxu0
      %v1685 = vadd.f32 %v1500, %v1684
      %v1686 = vpop.f32.mrb[0].mxu0
      %1687 = vmatprep.mubr.f32.mxu0 %v615
      %1688 = vmatmul.mubr.f32.gmra.mrb[0].mxu0 %v614
      %v1689 = vpop.f32.mrb[0].mxu0
      %v1690 = vadd.f32 %v1505, %v1689
      %v1691 = vpop.f32.mrb[0].mxu0
      %1692 = vmatprep.mubr.f32.mxu0 %v633
      %1693 = vmatmul.mubr.f32.gmra.mrb[0].mxu0 %v632
      %v1694 = vpop.f32.mrb[0].mxu0
      %v1695 = vadd.f32 %v1510, %v1694
      %v1696 = vpop.f32.mrb[0].mxu0
      %1697 = vmatprep.mubr.f32.mxu0 %v651
      %1698 = vmatmul.mubr.f32.gmra.mrb[0].mxu0 %v650
      %v1699 = vpop.f32.mrb[0].mxu0
      %v1700 = vadd.f32 %v1515, %v1699
      %v1701 = vpop.f32.mrb[0].mxu0
      %1702 = vmatprep.mubr.f32.mxu0 %v669
      %1703 = vmatmul.mubr.f32.gmra.mrb[0].mxu0 %v668
      %v1704 = vpop.f32.mrb[0].mxu0
      %v1705 = vadd.f32 %v1520, %v1704
      %v1706 = vpop.f32.mrb[0].mxu0
      %1707 = vdwg.mxu0
      %1708 = vmatprep.subr.mxu0 0.0
      %1709 = vmatpush1.msra.mxu0 %v808
      %1710 = vmatprep.subr.mxu0 0.0
      %1711 = vmatpush1.msra.mxu0 %v809
      %1712 = vmatprep.subr.mxu0 0.0
      %1713 = vmatpush1.msra.mxu0 %v810
      %1714 = vmatprep.subr.mxu0 0.0
      %1715 = vmatpush1.msra.mxu0 %v811
      %1716 = vmatprep.subr.mxu0 0.0
      %1717 = vmatpush1.msra.mxu0 %v812
      %1718 = vmatprep.subr.mxu0 0.0
      %1719 = vmatpush1.msra.mxu0 %v813
      %1720 = vmatprep.subr.mxu0 0.0
      %1721 = vmatpush1.msra.mxu0 %v814
      %1722 = vmatprep.subr.mxu0 0.0
      %1723 = vmatpush1.msra.mxu0 %v815
      %1724 = vmatprep.subr.mxu0 0.0
      %1725 = vmatpush1.msra.mxu0 %v816
      %1726 = vmatprep.subr.mxu0 0.0
      %1727 = vmatpush1.msra.mxu0 %v817
      %1728 = vmatprep.subr.mxu0 0.0
      %1729 = vmatpush1.msra.mxu0 %v818
      %1730 = vmatprep.subr.mxu0 0.0
      %1731 = vmatpush1.msra.mxu0 %v819
      %1732 = vmatprep.subr.mxu0 0.0
      %1733 = vmatpush1.msra.mxu0 %v820
      %1734 = vmatprep.subr.mxu0 0.0
      %1735 = vmatpush1.msra.mxu0 %v821
      %1736 = vmatprep.subr.mxu0 0.0
      %1737 = vmatpush1.msra.mxu0 %v822
      %1738 = vmatprep.subr.mxu0 0.0
      %1739 = vmatpush1.msra.mxu0 %v823
      %1740 = vmatprep.subr.mxu0 0.0
      %1741 = vmatpush1.msra.mxu0 %v824
      %1742 = vmatprep.subr.mxu0 0.0
      %1743 = vmatpush1.msra.mxu0 %v825
      %1744 = vmatprep.subr.mxu0 0.0
      %1745 = vmatpush1.msra.mxu0 %v826
      %1746 = vmatprep.subr.mxu0 0.0
      %1747 = vmatpush1.msra.mxu0 %v827
      %1748 = vmatprep.subr.mxu0 0.0
      %1749 = vmatpush1.msra.mxu0 %v828
      %1750 = vmatprep.subr.mxu0 0.0
      %1751 = vmatpush1.msra.mxu0 %v829
      %1752 = vmatprep.subr.mxu0 0.0
      %1753 = vmatpush1.msra.mxu0 %v830
      %1754 = vmatprep.subr.mxu0 0.0
      %1755 = vmatpush1.msra.mxu0 %v831
      %1756 = vmatprep.subr.mxu0 0.0
      %1757 = vmatpush1.msra.mxu0 %v832
      %1758 = vmatprep.subr.mxu0 0.0
      %1759 = vmatpush1.msra.mxu0 %v833
      %1760 = vmatprep.subr.mxu0 0.0
      %1761 = vmatpush1.msra.mxu0 %v834
      %1762 = vmatprep.subr.mxu0 0.0
      %1763 = vmatpush1.msra.mxu0 %v835
      %1764 = vmatprep.subr.mxu0 0.0
      %1765 = vmatpush1.msra.mxu0 %v836
      %1766 = vmatprep.subr.mxu0 0.0
      %1767 = vmatpush1.msra.mxu0 %v837
      %1768 = vmatprep.subr.mxu0 0.0
      %1769 = vmatpush1.msra.mxu0 %v838
      %1770 = vmatprep.subr.mxu0 0.0
      %1771 = vmatpush1.msra.mxu0 %v839
      %1772 = vmatprep.mubr.f32.mxu0 %v257
      %1773 = vmatmul.mubr.f32.gmra.mrb[0].mxu0 %v256
      %v1774 = vpop.f32.mrb[0].mxu0
      %v1775 = vadd.f32 %v1590, %v1774
      %v1776 = vpop.f32.mrb[0].mxu0
      %1777 = vmatprep.mubr.f32.mxu0 %v275
      %1778 = vmatmul.mubr.f32.gmra.mrb[0].mxu0 %v274
      %v1779 = vpop.f32.mrb[0].mxu0
      %v1780 = vadd.f32 %v1595, %v1779
      %v1781 = vpop.f32.mrb[0].mxu0
      %1782 = vmatprep.mubr.f32.mxu0 %v293
      %1783 = vmatmul.mubr.f32.gmra.mrb[0].mxu0 %v292
      %v1784 = vpop.f32.mrb[0].mxu0
      %v1785 = vadd.f32 %v1600, %v1784
      %v1786 = vpop.f32.mrb[0].mxu0
      %1787 = vmatprep.mubr.f32.mxu0 %v311
      %1788 = vmatmul.mubr.f32.gmra.mrb[0].mxu0 %v310
      %v1789 = vpop.f32.mrb[0].mxu0
      %v1790 = vadd.f32 %v1605, %v1789
      %v1791 = vpop.f32.mrb[0].mxu0
      %1792 = vmatprep.mubr.f32.mxu0 %v329
      %1793 = vmatmul.mubr.f32.gmra.mrb[0].mxu0 %v328
      %v1794 = vpop.f32.mrb[0].mxu0
      %v1795 = vadd.f32 %v1610, %v1794
      %v1796 = vpop.f32.mrb[0].mxu0
      %1797 = vmatprep.mubr.f32.mxu0 %v347
      %1798 = vmatmul.mubr.f32.gmra.mrb[0].mxu0 %v346
      %v1799 = vpop.f32.mrb[0].mxu0
      %v1800 = vadd.f32 %v1615, %v1799
      %v1801 = vpop.f32.mrb[0].mxu0
      %1802 = vmatprep.mubr.f32.mxu0 %v365
      %1803 = vmatmul.mubr.f32.gmra.mrb[0].mxu0 %v364
      %v1804 = vpop.f32.mrb[0].mxu0
      %v1805 = vadd.f32 %v1620, %v1804
      %v1806 = vpop.f32.mrb[0].mxu0
      %1807 = vmatprep.mubr.f32.mxu0 %v383
      %1808 = vmatmul.mubr.f32.gmra.mrb[0].mxu0 %v382
      %v1809 = vpop.f32.mrb[0].mxu0
      %v1810 = vadd.f32 %v1625, %v1809
      %v1811 = vpop.f32.mrb[0].mxu0
      %1812 = vmatprep.mubr.f32.mxu0 %v401
      %1813 = vmatmul.mubr.f32.gmra.mrb[0].mxu0 %v400
      %v1814 = vpop.f32.mrb[0].mxu0
      %v1815 = vadd.f32 %v1630, %v1814
      %v1816 = vpop.f32.mrb[0].mxu0
      %1817 = vmatprep.mubr.f32.mxu0 %v419
      %1818 = vmatmul.mubr.f32.gmra.mrb[0].mxu0 %v418
      %v1819 = vpop.f32.mrb[0].mxu0
      %v1820 = vadd.f32 %v1635, %v1819
      %v1821 = vpop.f32.mrb[0].mxu0
      %1822 = vmatprep.mubr.f32.mxu0 %v437
      %1823 = vmatmul.mubr.f32.gmra.mrb[0].mxu0 %v436
      %v1824 = vpop.f32.mrb[0].mxu0
      %v1825 = vadd.f32 %v1640, %v1824
      %v1826 = vpop.f32.mrb[0].mxu0
      %1827 = vmatprep.mubr.f32.mxu0 %v455
      %1828 = vmatmul.mubr.f32.gmra.mrb[0].mxu0 %v454
      %v1829 = vpop.f32.mrb[0].mxu0
      %v1830 = vadd.f32 %v1645, %v1829
      %v1831 = vpop.f32.mrb[0].mxu0
      %1832 = vmatprep.mubr.f32.mxu0 %v473
      %1833 = vmatmul.mubr.f32.gmra.mrb[0].mxu0 %v472
      %v1834 = vpop.f32.mrb[0].mxu0
      %v1835 = vadd.f32 %v1650, %v1834
      %v1836 = vpop.f32.mrb[0].mxu0
      %1837 = vmatprep.mubr.f32.mxu0 %v491
      %1838 = vmatmul.mubr.f32.gmra.mrb[0].mxu0 %v490
      %v1839 = vpop.f32.mrb[0].mxu0
      %v1840 = vadd.f32 %v1655, %v1839
      %v1841 = vpop.f32.mrb[0].mxu0
      %1842 = vmatprep.mubr.f32.mxu0 %v509
      %1843 = vmatmul.mubr.f32.gmra.mrb[0].mxu0 %v508
      %v1844 = vpop.f32.mrb[0].mxu0
      %v1845 = vadd.f32 %v1660, %v1844
      %v1846 = vpop.f32.mrb[0].mxu0
      %1847 = vmatprep.mubr.f32.mxu0 %v527
      %1848 = vmatmul.mubr.f32.gmra.mrb[0].mxu0 %v526
      %v1849 = vpop.f32.mrb[0].mxu0
      %v1850 = vadd.f32 %v1665, %v1849
      %v1851 = vpop.f32.mrb[0].mxu0
      %1852 = vmatprep.mubr.f32.mxu0 %v545
      %1853 = vmatmul.mubr.f32.gmra.mrb[0].mxu0 %v544
      %v1854 = vpop.f32.mrb[0].mxu0
      %v1855 = vadd.f32 %v1670, %v1854
      %v1856 = vpop.f32.mrb[0].mxu0
      %1857 = vmatprep.mubr.f32.mxu0 %v563
      %1858 = vmatmul.mubr.f32.gmra.mrb[0].mxu0 %v562
      %v1859 = vpop.f32.mrb[0].mxu0
      %v1860 = vadd.f32 %v1675, %v1859
      %v1861 = vpop.f32.mrb[0].mxu0
      %1862 = vmatprep.mubr.f32.mxu0 %v581
      %1863 = vmatmul.mubr.f32.gmra.mrb[0].mxu0 %v580
      %v1864 = vpop.f32.mrb[0].mxu0
      %v1865 = vadd.f32 %v1680, %v1864
      %v1866 = vpop.f32.mrb[0].mxu0
      %1867 = vmatprep.mubr.f32.mxu0 %v599
      %1868 = vmatmul.mubr.f32.gmra.mrb[0].mxu0 %v598
      %v1869 = vpop.f32.mrb[0].mxu0
      %v1870 = vadd.f32 %v1685, %v1869
      %v1871 = vpop.f32.mrb[0].mxu0
      %1872 = vmatprep.mubr.f32.mxu0 %v617
      %1873 = vmatmul.mubr.f32.gmra.mrb[0].mxu0 %v616
      %v1874 = vpop.f32.mrb[0].mxu0
      %v1875 = vadd.f32 %v1690, %v1874
      %v1876 = vpop.f32.mrb[0].mxu0
      %1877 = vmatprep.mubr.f32.mxu0 %v635
      %1878 = vmatmul.mubr.f32.gmra.mrb[0].mxu0 %v634
      %v1879 = vpop.f32.mrb[0].mxu0
      %v1880 = vadd.f32 %v1695, %v1879
      %v1881 = vpop.f32.mrb[0].mxu0
      %1882 = vmatprep.mubr.f32.mxu0 %v653
      %1883 = vmatmul.mubr.f32.gmra.mrb[0].mxu0 %v652
      %v1884 = vpop.f32.mrb[0].mxu0
      %v1885 = vadd.f32 %v1700, %v1884
      %v1886 = vpop.f32.mrb[0].mxu0
      %1887 = vmatprep.mubr.f32.mxu0 %v671
      %1888 = vmatmul.mubr.f32.gmra.mrb[0].mxu0 %v670
      %v1889 = vpop.f32.mrb[0].mxu0
      %v1890 = vadd.f32 %v1705, %v1889
      %v1891 = vpop.f32.mrb[0].mxu0
      %1892 = vdwg.mxu0
      %1893 = vmatprep.subr.mxu0 0.0
      %1894 = vmatpush1.msra.mxu0 %v840
      %1895 = vmatprep.subr.mxu0 0.0
      %1896 = vmatpush1.msra.mxu0 %v841
      %1897 = vmatprep.subr.mxu0 0.0
      %1898 = vmatpush1.msra.mxu0 %v842
      %1899 = vmatprep.subr.mxu0 0.0
      %1900 = vmatpush1.msra.mxu0 %v843
      %1901 = vmatprep.subr.mxu0 0.0
      %1902 = vmatpush1.msra.mxu0 %v844
      %1903 = vmatprep.subr.mxu0 0.0
      %1904 = vmatpush1.msra.mxu0 %v845
      %1905 = vmatprep.subr.mxu0 0.0
      %1906 = vmatpush1.msra.mxu0 %v846
      %1907 = vmatprep.subr.mxu0 0.0
      %1908 = vmatpush1.msra.mxu0 %v847
      %1909 = vmatprep.subr.mxu0 0.0
      %1910 = vmatpush1.msra.mxu0 %v848
      %1911 = vmatprep.subr.mxu0 0.0
      %1912 = vmatpush1.msra.mxu0 %v849
      %1913 = vmatprep.subr.mxu0 0.0
      %1914 = vmatpush1.msra.mxu0 %v850
      %1915 = vmatprep.subr.mxu0 0.0
      %1916 = vmatpush1.msra.mxu0 %v851
      %1917 = vmatprep.subr.mxu0 0.0
      %1918 = vmatpush1.msra.mxu0 %v852
      %1919 = vmatprep.subr.mxu0 0.0
      %1920 = vmatpush1.msra.mxu0 %v853
      %1921 = vmatprep.subr.mxu0 0.0
      %1922 = vmatpush1.msra.mxu0 %v854
      %1923 = vmatprep.subr.mxu0 0.0
      %1924 = vmatpush1.msra.mxu0 %v855
      %1925 = vmatprep.subr.mxu0 0.0
      %1926 = vmatpush1.msra.mxu0 %v856
      %1927 = vmatprep.subr.mxu0 0.0
      %1928 = vmatpush1.msra.mxu0 %v857
      %1929 = vmatprep.subr.mxu0 0.0
      %1930 = vmatpush1.msra.mxu0 %v858
      %1931 = vmatprep.subr.mxu0 0.0
      %1932 = vmatpush1.msra.mxu0 %v859
      %1933 = vmatprep.subr.mxu0 0.0
      %1934 = vmatpush1.msra.mxu0 %v860
      %1935 = vmatprep.subr.mxu0 0.0
      %1936 = vmatpush1.msra.mxu0 %v861
      %1937 = vmatprep.subr.mxu0 0.0
      %1938 = vmatpush1.msra.mxu0 %v862
      %1939 = vmatprep.subr.mxu0 0.0
      %1940 = vmatpush1.msra.mxu0 %v863
      %1941 = vmatprep.subr.mxu0 0.0
      %1942 = vmatpush1.msra.mxu0 %v864
      %1943 = vmatprep.subr.mxu0 0.0
      %1944 = vmatpush1.msra.mxu0 %v865
      %1945 = vmatprep.subr.mxu0 0.0
      %1946 = vmatpush1.msra.mxu0 %v866
      %1947 = vmatprep.subr.mxu0 0.0
      %1948 = vmatpush1.msra.mxu0 %v867
      %1949 = vmatprep.subr.mxu0 0.0
      %1950 = vmatpush1.msra.mxu0 %v868
      %1951 = vmatprep.subr.mxu0 0.0
      %1952 = vmatpush1.msra.mxu0 %v869
      %1953 = vmatprep.subr.mxu0 0.0
      %1954 = vmatpush1.msra.mxu0 %v870
      %1955 = vmatprep.subr.mxu0 0.0
      %1956 = vmatpush1.msra.mxu0 %v871
      %1957 = vmatprep.mubr.f32.mxu0 %v259
      %1958 = vmatmul.mubr.f32.gmra.mrb[0].mxu0 %v258
      %v1959 = vpop.f32.mrb[0].mxu0
      %v1960 = vadd.f32 %v1775, %v1959
      %v1961 = vpop.f32.mrb[0].mxu0
      %1962 = vmatprep.mubr.f32.mxu0 %v277
      %1963 = vmatmul.mubr.f32.gmra.mrb[0].mxu0 %v276
      %v1964 = vpop.f32.mrb[0].mxu0
      %v1965 = vadd.f32 %v1780, %v1964
      %v1966 = vpop.f32.mrb[0].mxu0
      %1967 = vmatprep.mubr.f32.mxu0 %v295
      %1968 = vmatmul.mubr.f32.gmra.mrb[0].mxu0 %v294
      %v1969 = vpop.f32.mrb[0].mxu0
      %v1970 = vadd.f32 %v1785, %v1969
      %v1971 = vpop.f32.mrb[0].mxu0
      %1972 = vmatprep.mubr.f32.mxu0 %v313
      %1973 = vmatmul.mubr.f32.gmra.mrb[0].mxu0 %v312
      %v1974 = vpop.f32.mrb[0].mxu0
      %v1975 = vadd.f32 %v1790, %v1974
      %v1976 = vpop.f32.mrb[0].mxu0
      %1977 = vmatprep.mubr.f32.mxu0 %v331
      %1978 = vmatmul.mubr.f32.gmra.mrb[0].mxu0 %v330
      %v1979 = vpop.f32.mrb[0].mxu0
      %v1980 = vadd.f32 %v1795, %v1979
      %v1981 = vpop.f32.mrb[0].mxu0
      %1982 = vmatprep.mubr.f32.mxu0 %v349
      %1983 = vmatmul.mubr.f32.gmra.mrb[0].mxu0 %v348
      %v1984 = vpop.f32.mrb[0].mxu0
      %v1985 = vadd.f32 %v1800, %v1984
      %v1986 = vpop.f32.mrb[0].mxu0
      %1987 = vmatprep.mubr.f32.mxu0 %v367
      %1988 = vmatmul.mubr.f32.gmra.mrb[0].mxu0 %v366
      %v1989 = vpop.f32.mrb[0].mxu0
      %v1990 = vadd.f32 %v1805, %v1989
      %v1991 = vpop.f32.mrb[0].mxu0
      %1992 = vmatprep.mubr.f32.mxu0 %v385
      %1993 = vmatmul.mubr.f32.gmra.mrb[0].mxu0 %v384
      %v1994 = vpop.f32.mrb[0].mxu0
      %v1995 = vadd.f32 %v1810, %v1994
      %v1996 = vpop.f32.mrb[0].mxu0
      %1997 = vmatprep.mubr.f32.mxu0 %v403
      %1998 = vmatmul.mubr.f32.gmra.mrb[0].mxu0 %v402
      %v1999 = vpop.f32.mrb[0].mxu0
      %v2000 = vadd.f32 %v1815, %v1999
      %v2001 = vpop.f32.mrb[0].mxu0
      %2002 = vmatprep.mubr.f32.mxu0 %v421
      %2003 = vmatmul.mubr.f32.gmra.mrb[0].mxu0 %v420
      %v2004 = vpop.f32.mrb[0].mxu0
      %v2005 = vadd.f32 %v1820, %v2004
      %v2006 = vpop.f32.mrb[0].mxu0
      %2007 = vmatprep.mubr.f32.mxu0 %v439
      %2008 = vmatmul.mubr.f32.gmra.mrb[0].mxu0 %v438
      %v2009 = vpop.f32.mrb[0].mxu0
      %v2010 = vadd.f32 %v1825, %v2009
      %v2011 = vpop.f32.mrb[0].mxu0
      %2012 = vmatprep.mubr.f32.mxu0 %v457
      %2013 = vmatmul.mubr.f32.gmra.mrb[0].mxu0 %v456
      %v2014 = vpop.f32.mrb[0].mxu0
      %v2015 = vadd.f32 %v1830, %v2014
      %v2016 = vpop.f32.mrb[0].mxu0
      %2017 = vmatprep.mubr.f32.mxu0 %v475
      %2018 = vmatmul.mubr.f32.gmra.mrb[0].mxu0 %v474
      %v2019 = vpop.f32.mrb[0].mxu0
      %v2020 = vadd.f32 %v1835, %v2019
      %v2021 = vpop.f32.mrb[0].mxu0
      %2022 = vmatprep.mubr.f32.mxu0 %v493
      %2023 = vmatmul.mubr.f32.gmra.mrb[0].mxu0 %v492
      %v2024 = vpop.f32.mrb[0].mxu0
      %v2025 = vadd.f32 %v1840, %v2024
      %v2026 = vpop.f32.mrb[0].mxu0
      %2027 = vmatprep.mubr.f32.mxu0 %v511
      %2028 = vmatmul.mubr.f32.gmra.mrb[0].mxu0 %v510
      %v2029 = vpop.f32.mrb[0].mxu0
      %v2030 = vadd.f32 %v1845, %v2029
      %v2031 = vpop.f32.mrb[0].mxu0
      %2032 = vmatprep.mubr.f32.mxu0 %v529
      %2033 = vmatmul.mubr.f32.gmra.mrb[0].mxu0 %v528
      %v2034 = vpop.f32.mrb[0].mxu0
      %v2035 = vadd.f32 %v1850, %v2034
      %v2036 = vpop.f32.mrb[0].mxu0
      %2037 = vmatprep.mubr.f32.mxu0 %v547
      %2038 = vmatmul.mubr.f32.gmra.mrb[0].mxu0 %v546
      %v2039 = vpop.f32.mrb[0].mxu0
      %v2040 = vadd.f32 %v1855, %v2039
      %v2041 = vpop.f32.mrb[0].mxu0
      %2042 = vmatprep.mubr.f32.mxu0 %v565
      %2043 = vmatmul.mubr.f32.gmra.mrb[0].mxu0 %v564
      %v2044 = vpop.f32.mrb[0].mxu0
      %v2045 = vadd.f32 %v1860, %v2044
      %v2046 = vpop.f32.mrb[0].mxu0
      %2047 = vmatprep.mubr.f32.mxu0 %v583
      %2048 = vmatmul.mubr.f32.gmra.mrb[0].mxu0 %v582
      %v2049 = vpop.f32.mrb[0].mxu0
      %v2050 = vadd.f32 %v1865, %v2049
      %v2051 = vpop.f32.mrb[0].mxu0
      %2052 = vmatprep.mubr.f32.mxu0 %v601
      %2053 = vmatmul.mubr.f32.gmra.mrb[0].mxu0 %v600
      %v2054 = vpop.f32.mrb[0].mxu0
      %v2055 = vadd.f32 %v1870, %v2054
      %v2056 = vpop.f32.mrb[0].mxu0
      %2057 = vmatprep.mubr.f32.mxu0 %v619
      %2058 = vmatmul.mubr.f32.gmra.mrb[0].mxu0 %v618
      %v2059 = vpop.f32.mrb[0].mxu0
      %v2060 = vadd.f32 %v1875, %v2059
      %v2061 = vpop.f32.mrb[0].mxu0
      %2062 = vmatprep.mubr.f32.mxu0 %v637
      %2063 = vmatmul.mubr.f32.gmra.mrb[0].mxu0 %v636
      %v2064 = vpop.f32.mrb[0].mxu0
      %v2065 = vadd.f32 %v1880, %v2064
      %v2066 = vpop.f32.mrb[0].mxu0
      %2067 = vmatprep.mubr.f32.mxu0 %v655
      %2068 = vmatmul.mubr.f32.gmra.mrb[0].mxu0 %v654
      %v2069 = vpop.f32.mrb[0].mxu0
      %v2070 = vadd.f32 %v1885, %v2069
      %v2071 = vpop.f32.mrb[0].mxu0
      %2072 = vmatprep.mubr.f32.mxu0 %v673
      %2073 = vmatmul.mubr.f32.gmra.mrb[0].mxu0 %v672
      %v2074 = vpop.f32.mrb[0].mxu0
      %v2075 = vadd.f32 %v1890, %v2074
      %v2076 = vpop.f32.mrb[0].mxu0
      %2077 = vdwg.mxu0
      %2078 = vmatprep.subr.mxu0 0.0
      %2079 = vmatpush1.msra.mxu0 %v872
      %2080 = vmatprep.subr.mxu0 0.0
      %2081 = vmatpush1.msra.mxu0 %v873
      %2082 = vmatprep.subr.mxu0 0.0
      %2083 = vmatpush1.msra.mxu0 %v874
      %2084 = vmatprep.subr.mxu0 0.0
      %2085 = vmatpush1.msra.mxu0 %v875
      %2086 = vmatprep.subr.mxu0 0.0
      %2087 = vmatpush1.msra.mxu0 %v876
      %2088 = vmatprep.subr.mxu0 0.0
      %2089 = vmatpush1.msra.mxu0 %v877
      %2090 = vmatprep.subr.mxu0 0.0
      %2091 = vmatpush1.msra.mxu0 %v878
      %2092 = vmatprep.subr.mxu0 0.0
      %2093 = vmatpush1.msra.mxu0 %v879
      %2094 = vmatprep.subr.mxu0 0.0
      %2095 = vmatpush1.msra.mxu0 %v880
      %2096 = vmatprep.subr.mxu0 0.0
      %2097 = vmatpush1.msra.mxu0 %v881
      %2098 = vmatprep.subr.mxu0 0.0
      %2099 = vmatpush1.msra.mxu0 %v882
      %2100 = vmatprep.subr.mxu0 0.0
      %2101 = vmatpush1.msra.mxu0 %v883
      %2102 = vmatprep.subr.mxu0 0.0
      %2103 = vmatpush1.msra.mxu0 %v884
      %2104 = vmatprep.subr.mxu0 0.0
      %2105 = vmatpush1.msra.mxu0 %v885
      %2106 = vmatprep.subr.mxu0 0.0
      %2107 = vmatpush1.msra.mxu0 %v886
      %2108 = vmatprep.subr.mxu0 0.0
      %2109 = vmatpush1.msra.mxu0 %v887
      %2110 = vmatprep.subr.mxu0 0.0
      %2111 = vmatpush1.msra.mxu0 %v888
      %2112 = vmatprep.subr.mxu0 0.0
      %2113 = vmatpush1.msra.mxu0 %v889
      %2114 = vmatprep.subr.mxu0 0.0
      %2115 = vmatpush1.msra.mxu0 %v890
      %2116 = vmatprep.subr.mxu0 0.0
      %2117 = vmatpush1.msra.mxu0 %v891
      %2118 = vmatprep.subr.mxu0 0.0
      %2119 = vmatpush1.msra.mxu0 %v892
      %2120 = vmatprep.subr.mxu0 0.0
      %2121 = vmatpush1.msra.mxu0 %v893
      %2122 = vmatprep.subr.mxu0 0.0
      %2123 = vmatpush1.msra.mxu0 %v894
      %2124 = vmatprep.subr.mxu0 0.0
      %2125 = vmatpush1.msra.mxu0 %v895
      %2126 = vmatprep.subr.mxu0 0.0
      %2127 = vmatpush1.msra.mxu0 %v896
      %2128 = vmatprep.subr.mxu0 0.0
      %2129 = vmatpush1.msra.mxu0 %v897
      %2130 = vmatprep.subr.mxu0 0.0
      %2131 = vmatpush1.msra.mxu0 %v898
      %2132 = vmatprep.subr.mxu0 0.0
      %2133 = vmatpush1.msra.mxu0 %v899
      %2134 = vmatprep.subr.mxu0 0.0
      %2135 = vmatpush1.msra.mxu0 %v900
      %2136 = vmatprep.subr.mxu0 0.0
      %2137 = vmatpush1.msra.mxu0 %v901
      %2138 = vmatprep.subr.mxu0 0.0
      %2139 = vmatpush1.msra.mxu0 %v902
      %2140 = vmatprep.subr.mxu0 0.0
      %2141 = vmatpush1.msra.mxu0 %v903
      %2142 = vmatprep.mubr.f32.mxu0 %v261
      %2143 = vmatmul.mubr.f32.gmra.mrb[0].mxu0 %v260
      %v2144 = vpop.f32.mrb[0].mxu0
      %v2145 = vadd.f32 %v1960, %v2144
      %v2146 = vpop.f32.mrb[0].mxu0
      %2147 = vmatprep.mubr.f32.mxu0 %v279
      %2148 = vmatmul.mubr.f32.gmra.mrb[0].mxu0 %v278
      %v2149 = vpop.f32.mrb[0].mxu0
      %v2150 = vadd.f32 %v1965, %v2149
      %v2151 = vpop.f32.mrb[0].mxu0
      %2152 = vmatprep.mubr.f32.mxu0 %v297
      %2153 = vmatmul.mubr.f32.gmra.mrb[0].mxu0 %v296
      %v2154 = vpop.f32.mrb[0].mxu0
      %v2155 = vadd.f32 %v1970, %v2154
      %v2156 = vpop.f32.mrb[0].mxu0
      %2157 = vmatprep.mubr.f32.mxu0 %v315
      %2158 = vmatmul.mubr.f32.gmra.mrb[0].mxu0 %v314
      %v2159 = vpop.f32.mrb[0].mxu0
      %v2160 = vadd.f32 %v1975, %v2159
      %v2161 = vpop.f32.mrb[0].mxu0
      %2162 = vmatprep.mubr.f32.mxu0 %v333
      %2163 = vmatmul.mubr.f32.gmra.mrb[0].mxu0 %v332
      %v2164 = vpop.f32.mrb[0].mxu0
      %v2165 = vadd.f32 %v1980, %v2164
      %v2166 = vpop.f32.mrb[0].mxu0
      %2167 = vmatprep.mubr.f32.mxu0 %v351
      %2168 = vmatmul.mubr.f32.gmra.mrb[0].mxu0 %v350
      %v2169 = vpop.f32.mrb[0].mxu0
      %v2170 = vadd.f32 %v1985, %v2169
      %v2171 = vpop.f32.mrb[0].mxu0
      %2172 = vmatprep.mubr.f32.mxu0 %v369
      %2173 = vmatmul.mubr.f32.gmra.mrb[0].mxu0 %v368
      %v2174 = vpop.f32.mrb[0].mxu0
      %v2175 = vadd.f32 %v1990, %v2174
      %v2176 = vpop.f32.mrb[0].mxu0
      %2177 = vmatprep.mubr.f32.mxu0 %v387
      %2178 = vmatmul.mubr.f32.gmra.mrb[0].mxu0 %v386
      %v2179 = vpop.f32.mrb[0].mxu0
      %v2180 = vadd.f32 %v1995, %v2179
      %v2181 = vpop.f32.mrb[0].mxu0
      %2182 = vmatprep.mubr.f32.mxu0 %v405
      %2183 = vmatmul.mubr.f32.gmra.mrb[0].mxu0 %v404
      %v2184 = vpop.f32.mrb[0].mxu0
      %v2185 = vadd.f32 %v2000, %v2184
      %v2186 = vpop.f32.mrb[0].mxu0
      %2187 = vmatprep.mubr.f32.mxu0 %v423
      %2188 = vmatmul.mubr.f32.gmra.mrb[0].mxu0 %v422
      %v2189 = vpop.f32.mrb[0].mxu0
      %v2190 = vadd.f32 %v2005, %v2189
      %v2191 = vpop.f32.mrb[0].mxu0
      %2192 = vmatprep.mubr.f32.mxu0 %v441
      %2193 = vmatmul.mubr.f32.gmra.mrb[0].mxu0 %v440
      %v2194 = vpop.f32.mrb[0].mxu0
      %v2195 = vadd.f32 %v2010, %v2194
      %v2196 = vpop.f32.mrb[0].mxu0
      %2197 = vmatprep.mubr.f32.mxu0 %v459
      %2198 = vmatmul.mubr.f32.gmra.mrb[0].mxu0 %v458
      %v2199 = vpop.f32.mrb[0].mxu0
      %v2200 = vadd.f32 %v2015, %v2199
      %v2201 = vpop.f32.mrb[0].mxu0
      %2202 = vmatprep.mubr.f32.mxu0 %v477
      %2203 = vmatmul.mubr.f32.gmra.mrb[0].mxu0 %v476
      %v2204 = vpop.f32.mrb[0].mxu0
      %v2205 = vadd.f32 %v2020, %v2204
      %v2206 = vpop.f32.mrb[0].mxu0
      %2207 = vmatprep.mubr.f32.mxu0 %v495
      %2208 = vmatmul.mubr.f32.gmra.mrb[0].mxu0 %v494
      %v2209 = vpop.f32.mrb[0].mxu0
      %v2210 = vadd.f32 %v2025, %v2209
      %v2211 = vpop.f32.mrb[0].mxu0
      %2212 = vmatprep.mubr.f32.mxu0 %v513
      %2213 = vmatmul.mubr.f32.gmra.mrb[0].mxu0 %v512
      %v2214 = vpop.f32.mrb[0].mxu0
      %v2215 = vadd.f32 %v2030, %v2214
      %v2216 = vpop.f32.mrb[0].mxu0
      %2217 = vmatprep.mubr.f32.mxu0 %v531
      %2218 = vmatmul.mubr.f32.gmra.mrb[0].mxu0 %v530
      %v2219 = vpop.f32.mrb[0].mxu0
      %v2220 = vadd.f32 %v2035, %v2219
      %v2221 = vpop.f32.mrb[0].mxu0
      %2222 = vmatprep.mubr.f32.mxu0 %v549
      %2223 = vmatmul.mubr.f32.gmra.mrb[0].mxu0 %v548
      %v2224 = vpop.f32.mrb[0].mxu0
      %v2225 = vadd.f32 %v2040, %v2224
      %v2226 = vpop.f32.mrb[0].mxu0
      %2227 = vmatprep.mubr.f32.mxu0 %v567
      %2228 = vmatmul.mubr.f32.gmra.mrb[0].mxu0 %v566
      %v2229 = vpop.f32.mrb[0].mxu0
      %v2230 = vadd.f32 %v2045, %v2229
      %v2231 = vpop.f32.mrb[0].mxu0
      %2232 = vmatprep.mubr.f32.mxu0 %v585
      %2233 = vmatmul.mubr.f32.gmra.mrb[0].mxu0 %v584
      %v2234 = vpop.f32.mrb[0].mxu0
      %v2235 = vadd.f32 %v2050, %v2234
      %v2236 = vpop.f32.mrb[0].mxu0
      %2237 = vmatprep.mubr.f32.mxu0 %v603
      %2238 = vmatmul.mubr.f32.gmra.mrb[0].mxu0 %v602
      %v2239 = vpop.f32.mrb[0].mxu0
      %v2240 = vadd.f32 %v2055, %v2239
      %v2241 = vpop.f32.mrb[0].mxu0
      %2242 = vmatprep.mubr.f32.mxu0 %v621
      %2243 = vmatmul.mubr.f32.gmra.mrb[0].mxu0 %v620
      %v2244 = vpop.f32.mrb[0].mxu0
      %v2245 = vadd.f32 %v2060, %v2244
      %v2246 = vpop.f32.mrb[0].mxu0
      %2247 = vmatprep.mubr.f32.mxu0 %v639
      %2248 = vmatmul.mubr.f32.gmra.mrb[0].mxu0 %v638
      %v2249 = vpop.f32.mrb[0].mxu0
      %v2250 = vadd.f32 %v2065, %v2249
      %v2251 = vpop.f32.mrb[0].mxu0
      %2252 = vmatprep.mubr.f32.mxu0 %v657
      %2253 = vmatmul.mubr.f32.gmra.mrb[0].mxu0 %v656
      %v2254 = vpop.f32.mrb[0].mxu0
      %v2255 = vadd.f32 %v2070, %v2254
      %v2256 = vpop.f32.mrb[0].mxu0
      %2257 = vmatprep.mubr.f32.mxu0 %v675
      %2258 = vmatmul.mubr.f32.gmra.mrb[0].mxu0 %v674
      %v2259 = vpop.f32.mrb[0].mxu0
      %v2260 = vadd.f32 %v2075, %v2259
      %v2261 = vpop.f32.mrb[0].mxu0
      %2262 = vdwg.mxu0
      %2263 = vmatprep.subr.mxu0 0.0
      %2264 = vmatpush1.msra.mxu0 %v904
      %2265 = vmatprep.subr.mxu0 0.0
      %2266 = vmatpush1.msra.mxu0 %v905
      %2267 = vmatprep.subr.mxu0 0.0
      %2268 = vmatpush1.msra.mxu0 %v906
      %2269 = vmatprep.subr.mxu0 0.0
      %2270 = vmatpush1.msra.mxu0 %v907
      %2271 = vmatprep.subr.mxu0 0.0
      %2272 = vmatpush1.msra.mxu0 %v908
      %2273 = vmatprep.subr.mxu0 0.0
      %2274 = vmatpush1.msra.mxu0 %v909
      %2275 = vmatprep.subr.mxu0 0.0
      %2276 = vmatpush1.msra.mxu0 %v910
      %2277 = vmatprep.subr.mxu0 0.0
      %2278 = vmatpush1.msra.mxu0 %v911
      %2279 = vmatprep.subr.mxu0 0.0
      %2280 = vmatpush1.msra.mxu0 %v912
      %2281 = vmatprep.subr.mxu0 0.0
      %2282 = vmatpush1.msra.mxu0 %v913
      %2283 = vmatprep.subr.mxu0 0.0
      %2284 = vmatpush1.msra.mxu0 %v914
      %2285 = vmatprep.subr.mxu0 0.0
      %2286 = vmatpush1.msra.mxu0 %v915
      %2287 = vmatprep.subr.mxu0 0.0
      %2288 = vmatpush1.msra.mxu0 %v916
      %2289 = vmatprep.subr.mxu0 0.0
      %2290 = vmatpush1.msra.mxu0 %v917
      %2291 = vmatprep.subr.mxu0 0.0
      %2292 = vmatpush1.msra.mxu0 %v918
      %2293 = vmatprep.subr.mxu0 0.0
      %2294 = vmatpush1.msra.mxu0 %v919
      %2295 = vmatprep.subr.mxu0 0.0
      %2296 = vmatpush1.msra.mxu0 %v920
      %2297 = vmatprep.subr.mxu0 0.0
      %2298 = vmatpush1.msra.mxu0 %v921
      %2299 = vmatprep.subr.mxu0 0.0
      %2300 = vmatpush1.msra.mxu0 %v922
      %2301 = vmatprep.subr.mxu0 0.0
      %2302 = vmatpush1.msra.mxu0 %v923
      %2303 = vmatprep.subr.mxu0 0.0
      %2304 = vmatpush1.msra.mxu0 %v924
      %2305 = vmatprep.subr.mxu0 0.0
      %2306 = vmatpush1.msra.mxu0 %v925
      %2307 = vmatprep.subr.mxu0 0.0
      %2308 = vmatpush1.msra.mxu0 %v926
      %2309 = vmatprep.subr.mxu0 0.0
      %2310 = vmatpush1.msra.mxu0 %v927
      %2311 = vmatprep.subr.mxu0 0.0
      %2312 = vmatpush1.msra.mxu0 %v928
      %2313 = vmatprep.subr.mxu0 0.0
      %2314 = vmatpush1.msra.mxu0 %v929
      %2315 = vmatprep.subr.mxu0 0.0
      %2316 = vmatpush1.msra.mxu0 %v930
      %2317 = vmatprep.subr.mxu0 0.0
      %2318 = vmatpush1.msra.mxu0 %v931
      %2319 = vmatprep.subr.mxu0 0.0
      %2320 = vmatpush1.msra.mxu0 %v932
      %2321 = vmatprep.subr.mxu0 0.0
      %2322 = vmatpush1.msra.mxu0 %v933
      %2323 = vmatprep.subr.mxu0 0.0
      %2324 = vmatpush1.msra.mxu0 %v934
      %2325 = vmatprep.subr.mxu0 0.0
      %2326 = vmatpush1.msra.mxu0 %v935
      %2327 = vmatprep.mubr.f32.mxu0 %v263
      %2328 = vmatmul.mubr.f32.gmra.mrb[0].mxu0 %v262
      %v2329 = vpop.f32.mrb[0].mxu0
      %v2330 = vadd.f32 %v2145, %v2329
      %v2331 = vpop.f32.mrb[0].mxu0
      %2332 = vmatprep.mubr.f32.mxu0 %v281
      %2333 = vmatmul.mubr.f32.gmra.mrb[0].mxu0 %v280
      %v2334 = vpop.f32.mrb[0].mxu0
      %v2335 = vadd.f32 %v2150, %v2334
      %v2336 = vpop.f32.mrb[0].mxu0
      %2337 = vmatprep.mubr.f32.mxu0 %v299
      %2338 = vmatmul.mubr.f32.gmra.mrb[0].mxu0 %v298
      %v2339 = vpop.f32.mrb[0].mxu0
      %v2340 = vadd.f32 %v2155, %v2339
      %v2341 = vpop.f32.mrb[0].mxu0
      %2342 = vmatprep.mubr.f32.mxu0 %v317
      %2343 = vmatmul.mubr.f32.gmra.mrb[0].mxu0 %v316
      %v2344 = vpop.f32.mrb[0].mxu0
      %v2345 = vadd.f32 %v2160, %v2344
      %v2346 = vpop.f32.mrb[0].mxu0
      %2347 = vmatprep.mubr.f32.mxu0 %v335
      %2348 = vmatmul.mubr.f32.gmra.mrb[0].mxu0 %v334
      %v2349 = vpop.f32.mrb[0].mxu0
      %v2350 = vadd.f32 %v2165, %v2349
      %v2351 = vpop.f32.mrb[0].mxu0
      %2352 = vmatprep.mubr.f32.mxu0 %v353
      %2353 = vmatmul.mubr.f32.gmra.mrb[0].mxu0 %v352
      %v2354 = vpop.f32.mrb[0].mxu0
      %v2355 = vadd.f32 %v2170, %v2354
      %v2356 = vpop.f32.mrb[0].mxu0
      %2357 = vmatprep.mubr.f32.mxu0 %v371
      %2358 = vmatmul.mubr.f32.gmra.mrb[0].mxu0 %v370
      %v2359 = vpop.f32.mrb[0].mxu0
      %v2360 = vadd.f32 %v2175, %v2359
      %v2361 = vpop.f32.mrb[0].mxu0
      %2362 = vmatprep.mubr.f32.mxu0 %v389
      %2363 = vmatmul.mubr.f32.gmra.mrb[0].mxu0 %v388
      %v2364 = vpop.f32.mrb[0].mxu0
      %v2365 = vadd.f32 %v2180, %v2364
      %v2366 = vpop.f32.mrb[0].mxu0
      %2367 = vmatprep.mubr.f32.mxu0 %v407
      %2368 = vmatmul.mubr.f32.gmra.mrb[0].mxu0 %v406
      %v2369 = vpop.f32.mrb[0].mxu0
      %v2370 = vadd.f32 %v2185, %v2369
      %v2371 = vpop.f32.mrb[0].mxu0
      %2372 = vmatprep.mubr.f32.mxu0 %v425
      %2373 = vmatmul.mubr.f32.gmra.mrb[0].mxu0 %v424
      %v2374 = vpop.f32.mrb[0].mxu0
      %v2375 = vadd.f32 %v2190, %v2374
      %v2376 = vpop.f32.mrb[0].mxu0
      %2377 = vmatprep.mubr.f32.mxu0 %v443
      %2378 = vmatmul.mubr.f32.gmra.mrb[0].mxu0 %v442
      %v2379 = vpop.f32.mrb[0].mxu0
      %v2380 = vadd.f32 %v2195, %v2379
      %v2381 = vpop.f32.mrb[0].mxu0
      %2382 = vmatprep.mubr.f32.mxu0 %v461
      %2383 = vmatmul.mubr.f32.gmra.mrb[0].mxu0 %v460
      %v2384 = vpop.f32.mrb[0].mxu0
      %v2385 = vadd.f32 %v2200, %v2384
      %v2386 = vpop.f32.mrb[0].mxu0
      %2387 = vmatprep.mubr.f32.mxu0 %v479
      %2388 = vmatmul.mubr.f32.gmra.mrb[0].mxu0 %v478
      %v2389 = vpop.f32.mrb[0].mxu0
      %v2390 = vadd.f32 %v2205, %v2389
      %v2391 = vpop.f32.mrb[0].mxu0
      %2392 = vmatprep.mubr.f32.mxu0 %v497
      %2393 = vmatmul.mubr.f32.gmra.mrb[0].mxu0 %v496
      %v2394 = vpop.f32.mrb[0].mxu0
      %v2395 = vadd.f32 %v2210, %v2394
      %v2396 = vpop.f32.mrb[0].mxu0
      %2397 = vmatprep.mubr.f32.mxu0 %v515
      %2398 = vmatmul.mubr.f32.gmra.mrb[0].mxu0 %v514
      %v2399 = vpop.f32.mrb[0].mxu0
      %v2400 = vadd.f32 %v2215, %v2399
      %v2401 = vpop.f32.mrb[0].mxu0
      %2402 = vmatprep.mubr.f32.mxu0 %v533
      %2403 = vmatmul.mubr.f32.gmra.mrb[0].mxu0 %v532
      %v2404 = vpop.f32.mrb[0].mxu0
      %v2405 = vadd.f32 %v2220, %v2404
      %v2406 = vpop.f32.mrb[0].mxu0
      %2407 = vmatprep.mubr.f32.mxu0 %v551
      %2408 = vmatmul.mubr.f32.gmra.mrb[0].mxu0 %v550
      %v2409 = vpop.f32.mrb[0].mxu0
      %v2410 = vadd.f32 %v2225, %v2409
      %v2411 = vpop.f32.mrb[0].mxu0
      %2412 = vmatprep.mubr.f32.mxu0 %v569
      %2413 = vmatmul.mubr.f32.gmra.mrb[0].mxu0 %v568
      %v2414 = vpop.f32.mrb[0].mxu0
      %v2415 = vadd.f32 %v2230, %v2414
      %v2416 = vpop.f32.mrb[0].mxu0
      %2417 = vmatprep.mubr.f32.mxu0 %v587
      %2418 = vmatmul.mubr.f32.gmra.mrb[0].mxu0 %v586
      %v2419 = vpop.f32.mrb[0].mxu0
      %v2420 = vadd.f32 %v2235, %v2419
      %v2421 = vpop.f32.mrb[0].mxu0
      %2422 = vmatprep.mubr.f32.mxu0 %v605
      %2423 = vmatmul.mubr.f32.gmra.mrb[0].mxu0 %v604
      %v2424 = vpop.f32.mrb[0].mxu0
      %v2425 = vadd.f32 %v2240, %v2424
      %v2426 = vpop.f32.mrb[0].mxu0
      %2427 = vmatprep.mubr.f32.mxu0 %v623
      %2428 = vmatmul.mubr.f32.gmra.mrb[0].mxu0 %v622
      %v2429 = vpop.f32.mrb[0].mxu0
      %v2430 = vadd.f32 %v2245, %v2429
      %v2431 = vpop.f32.mrb[0].mxu0
      %2432 = vmatprep.mubr.f32.mxu0 %v641
      %2433 = vmatmul.mubr.f32.gmra.mrb[0].mxu0 %v640
      %v2434 = vpop.f32.mrb[0].mxu0
      %v2435 = vadd.f32 %v2250, %v2434
      %v2436 = vpop.f32.mrb[0].mxu0
      %2437 = vmatprep.mubr.f32.mxu0 %v659
      %2438 = vmatmul.mubr.f32.gmra.mrb[0].mxu0 %v658
      %v2439 = vpop.f32.mrb[0].mxu0
      %v2440 = vadd.f32 %v2255, %v2439
      %v2441 = vpop.f32.mrb[0].mxu0
      %2442 = vmatprep.mubr.f32.mxu0 %v677
      %2443 = vmatmul.mubr.f32.gmra.mrb[0].mxu0 %v676
      %v2444 = vpop.f32.mrb[0].mxu0
      %v2445 = vadd.f32 %v2260, %v2444
      %v2446 = vpop.f32.mrb[0].mxu0
      %2447 = vdwg.mxu0
      %2448 = vmatprep.subr.mxu0 0.0
      %2449 = vmatpush1.msra.mxu0 %v936
      %2450 = vmatprep.subr.mxu0 0.0
      %2451 = vmatpush1.msra.mxu0 %v937
      %2452 = vmatprep.subr.mxu0 0.0
      %2453 = vmatpush1.msra.mxu0 %v938
      %2454 = vmatprep.subr.mxu0 0.0
      %2455 = vmatpush1.msra.mxu0 %v939
      %2456 = vmatprep.subr.mxu0 0.0
      %2457 = vmatpush1.msra.mxu0 %v940
      %2458 = vmatprep.subr.mxu0 0.0
      %2459 = vmatpush1.msra.mxu0 %v941
      %2460 = vmatprep.subr.mxu0 0.0
      %2461 = vmatpush1.msra.mxu0 %v942
      %2462 = vmatprep.subr.mxu0 0.0
      %2463 = vmatpush1.msra.mxu0 %v943
      %2464 = vmatprep.subr.mxu0 0.0
      %2465 = vmatpush1.msra.mxu0 %v944
      %2466 = vmatprep.subr.mxu0 0.0
      %2467 = vmatpush1.msra.mxu0 %v945
      %2468 = vmatprep.subr.mxu0 0.0
      %2469 = vmatpush1.msra.mxu0 %v946
      %2470 = vmatprep.subr.mxu0 0.0
      %2471 = vmatpush1.msra.mxu0 %v947
      %2472 = vmatprep.subr.mxu0 0.0
      %2473 = vmatpush1.msra.mxu0 %v948
      %2474 = vmatprep.subr.mxu0 0.0
      %2475 = vmatpush1.msra.mxu0 %v949
      %2476 = vmatprep.subr.mxu0 0.0
      %2477 = vmatpush1.msra.mxu0 %v950
      %2478 = vmatprep.subr.mxu0 0.0
      %2479 = vmatpush1.msra.mxu0 %v951
      %2480 = vmatprep.subr.mxu0 0.0
      %2481 = vmatpush1.msra.mxu0 %v952
      %2482 = vmatprep.subr.mxu0 0.0
      %2483 = vmatpush1.msra.mxu0 %v953
      %2484 = vmatprep.subr.mxu0 0.0
      %2485 = vmatpush1.msra.mxu0 %v954
      %2486 = vmatprep.subr.mxu0 0.0
      %2487 = vmatpush1.msra.mxu0 %v955
      %2488 = vmatprep.subr.mxu0 0.0
      %2489 = vmatpush1.msra.mxu0 %v956
      %2490 = vmatprep.subr.mxu0 0.0
      %2491 = vmatpush1.msra.mxu0 %v957
      %2492 = vmatprep.subr.mxu0 0.0
      %2493 = vmatpush1.msra.mxu0 %v958
      %2494 = vmatprep.subr.mxu0 0.0
      %2495 = vmatpush1.msra.mxu0 %v959
      %2496 = vmatprep.subr.mxu0 0.0
      %2497 = vmatpush1.msra.mxu0 %v960
      %2498 = vmatprep.subr.mxu0 0.0
      %2499 = vmatpush1.msra.mxu0 %v961
      %2500 = vmatprep.subr.mxu0 0.0
      %2501 = vmatpush1.msra.mxu0 %v962
      %2502 = vmatprep.subr.mxu0 0.0
      %2503 = vmatpush1.msra.mxu0 %v963
      %2504 = vmatprep.subr.mxu0 0.0
      %2505 = vmatpush1.msra.mxu0 %v964
      %2506 = vmatprep.subr.mxu0 0.0
      %2507 = vmatpush1.msra.mxu0 %v965
      %2508 = vmatprep.subr.mxu0 0.0
      %2509 = vmatpush1.msra.mxu0 %v966
      %2510 = vmatprep.subr.mxu0 0.0
      %2511 = vmatpush1.msra.mxu0 %v967
      %2512 = vmatprep.mubr.f32.mxu0 %v265
      %2513 = vmatmul.mubr.f32.gmra.mrb[0].mxu0 %v264
      %v2514 = vpop.f32.mrb[0].mxu0
      %v2515 = vadd.f32 %v2330, %v2514
      %v2516 = vpop.f32.mrb[0].mxu0
      %2517 = vmatprep.mubr.f32.mxu0 %v283
      %2518 = vmatmul.mubr.f32.gmra.mrb[0].mxu0 %v282
      %v2519 = vpop.f32.mrb[0].mxu0
      %v2520 = vadd.f32 %v2335, %v2519
      %v2521 = vpop.f32.mrb[0].mxu0
      %2522 = vmatprep.mubr.f32.mxu0 %v301
      %2523 = vmatmul.mubr.f32.gmra.mrb[0].mxu0 %v300
      %v2524 = vpop.f32.mrb[0].mxu0
      %v2525 = vadd.f32 %v2340, %v2524
      %v2526 = vpop.f32.mrb[0].mxu0
      %2527 = vmatprep.mubr.f32.mxu0 %v319
      %2528 = vmatmul.mubr.f32.gmra.mrb[0].mxu0 %v318
      %v2529 = vpop.f32.mrb[0].mxu0
      %v2530 = vadd.f32 %v2345, %v2529
      %v2531 = vpop.f32.mrb[0].mxu0
      %2532 = vmatprep.mubr.f32.mxu0 %v337
      %2533 = vmatmul.mubr.f32.gmra.mrb[0].mxu0 %v336
      %v2534 = vpop.f32.mrb[0].mxu0
      %v2535 = vadd.f32 %v2350, %v2534
      %v2536 = vpop.f32.mrb[0].mxu0
      %2537 = vmatprep.mubr.f32.mxu0 %v355
      %2538 = vmatmul.mubr.f32.gmra.mrb[0].mxu0 %v354
      %v2539 = vpop.f32.mrb[0].mxu0
      %v2540 = vadd.f32 %v2355, %v2539
      %v2541 = vpop.f32.mrb[0].mxu0
      %2542 = vmatprep.mubr.f32.mxu0 %v373
      %2543 = vmatmul.mubr.f32.gmra.mrb[0].mxu0 %v372
      %v2544 = vpop.f32.mrb[0].mxu0
      %v2545 = vadd.f32 %v2360, %v2544
      %v2546 = vpop.f32.mrb[0].mxu0
      %2547 = vmatprep.mubr.f32.mxu0 %v391
      %2548 = vmatmul.mubr.f32.gmra.mrb[0].mxu0 %v390
      %v2549 = vpop.f32.mrb[0].mxu0
      %v2550 = vadd.f32 %v2365, %v2549
      %v2551 = vpop.f32.mrb[0].mxu0
      %2552 = vmatprep.mubr.f32.mxu0 %v409
      %2553 = vmatmul.mubr.f32.gmra.mrb[0].mxu0 %v408
      %v2554 = vpop.f32.mrb[0].mxu0
      %v2555 = vadd.f32 %v2370, %v2554
      %v2556 = vpop.f32.mrb[0].mxu0
      %2557 = vmatprep.mubr.f32.mxu0 %v427
      %2558 = vmatmul.mubr.f32.gmra.mrb[0].mxu0 %v426
      %v2559 = vpop.f32.mrb[0].mxu0
      %v2560 = vadd.f32 %v2375, %v2559
      %v2561 = vpop.f32.mrb[0].mxu0
      %2562 = vmatprep.mubr.f32.mxu0 %v445
      %2563 = vmatmul.mubr.f32.gmra.mrb[0].mxu0 %v444
      %v2564 = vpop.f32.mrb[0].mxu0
      %v2565 = vadd.f32 %v2380, %v2564
      %v2566 = vpop.f32.mrb[0].mxu0
      %2567 = vmatprep.mubr.f32.mxu0 %v463
      %2568 = vmatmul.mubr.f32.gmra.mrb[0].mxu0 %v462
      %v2569 = vpop.f32.mrb[0].mxu0
      %v2570 = vadd.f32 %v2385, %v2569
      %v2571 = vpop.f32.mrb[0].mxu0
      %2572 = vmatprep.mubr.f32.mxu0 %v481
      %2573 = vmatmul.mubr.f32.gmra.mrb[0].mxu0 %v480
      %v2574 = vpop.f32.mrb[0].mxu0
      %v2575 = vadd.f32 %v2390, %v2574
      %v2576 = vpop.f32.mrb[0].mxu0
      %2577 = vmatprep.mubr.f32.mxu0 %v499
      %2578 = vmatmul.mubr.f32.gmra.mrb[0].mxu0 %v498
      %v2579 = vpop.f32.mrb[0].mxu0
      %v2580 = vadd.f32 %v2395, %v2579
      %v2581 = vpop.f32.mrb[0].mxu0
      %2582 = vmatprep.mubr.f32.mxu0 %v517
      %2583 = vmatmul.mubr.f32.gmra.mrb[0].mxu0 %v516
      %v2584 = vpop.f32.mrb[0].mxu0
      %v2585 = vadd.f32 %v2400, %v2584
      %v2586 = vpop.f32.mrb[0].mxu0
      %2587 = vmatprep.mubr.f32.mxu0 %v535
      %2588 = vmatmul.mubr.f32.gmra.mrb[0].mxu0 %v534
      %v2589 = vpop.f32.mrb[0].mxu0
      %v2590 = vadd.f32 %v2405, %v2589
      %v2591 = vpop.f32.mrb[0].mxu0
      %2592 = vmatprep.mubr.f32.mxu0 %v553
      %2593 = vmatmul.mubr.f32.gmra.mrb[0].mxu0 %v552
      %v2594 = vpop.f32.mrb[0].mxu0
      %v2595 = vadd.f32 %v2410, %v2594
      %v2596 = vpop.f32.mrb[0].mxu0
      %2597 = vmatprep.mubr.f32.mxu0 %v571
      %2598 = vmatmul.mubr.f32.gmra.mrb[0].mxu0 %v570
      %v2599 = vpop.f32.mrb[0].mxu0
      %v2600 = vadd.f32 %v2415, %v2599
      %v2601 = vpop.f32.mrb[0].mxu0
      %2602 = vmatprep.mubr.f32.mxu0 %v589
      %2603 = vmatmul.mubr.f32.gmra.mrb[0].mxu0 %v588
      %v2604 = vpop.f32.mrb[0].mxu0
      %v2605 = vadd.f32 %v2420, %v2604
      %v2606 = vpop.f32.mrb[0].mxu0
      %2607 = vmatprep.mubr.f32.mxu0 %v607
      %2608 = vmatmul.mubr.f32.gmra.mrb[0].mxu0 %v606
      %v2609 = vpop.f32.mrb[0].mxu0
      %v2610 = vadd.f32 %v2425, %v2609
      %v2611 = vpop.f32.mrb[0].mxu0
      %2612 = vmatprep.mubr.f32.mxu0 %v625
      %2613 = vmatmul.mubr.f32.gmra.mrb[0].mxu0 %v624
      %v2614 = vpop.f32.mrb[0].mxu0
      %v2615 = vadd.f32 %v2430, %v2614
      %v2616 = vpop.f32.mrb[0].mxu0
      %2617 = vmatprep.mubr.f32.mxu0 %v643
      %2618 = vmatmul.mubr.f32.gmra.mrb[0].mxu0 %v642
      %v2619 = vpop.f32.mrb[0].mxu0
      %v2620 = vadd.f32 %v2435, %v2619
      %v2621 = vpop.f32.mrb[0].mxu0
      %2622 = vmatprep.mubr.f32.mxu0 %v661
      %2623 = vmatmul.mubr.f32.gmra.mrb[0].mxu0 %v660
      %v2624 = vpop.f32.mrb[0].mxu0
      %v2625 = vadd.f32 %v2440, %v2624
      %v2626 = vpop.f32.mrb[0].mxu0
      %2627 = vmatprep.mubr.f32.mxu0 %v679
      %2628 = vmatmul.mubr.f32.gmra.mrb[0].mxu0 %v678
      %v2629 = vpop.f32.mrb[0].mxu0
      %v2630 = vadd.f32 %v2445, %v2629
      %v2631 = vpop.f32.mrb[0].mxu0
      %2632 = vdwg.mxu0
      %2633 = vadd.xlane.f32.xlu0 %v2515
      %v2634 = vpop.xlane.xlu0 %2633
      %2635 = vadd.xlane.f32.xlu0 %v2520
      %v2636 = vpop.xlane.xlu0 %2635
      %2637 = vadd.xlane.f32.xlu0 %v2525
      %v2638 = vpop.xlane.xlu0 %2637
      %2639 = vadd.xlane.f32.xlu0 %v2530
      %v2640 = vpop.xlane.xlu0 %2639
      %2641 = vadd.xlane.f32.xlu0 %v2535
      %v2642 = vpop.xlane.xlu0 %2641
      %2643 = vadd.xlane.f32.xlu0 %v2540
      %v2644 = vpop.xlane.xlu0 %2643
      %2645 = vadd.xlane.f32.xlu0 %v2545
      %v2646 = vpop.xlane.xlu0 %2645
      %2647 = vadd.xlane.f32.xlu0 %v2550
      %v2648 = vpop.xlane.xlu0 %2647
      %2649 = vadd.xlane.f32.xlu0 %v2555
      %v2650 = vpop.xlane.xlu0 %2649
      %2651 = vadd.xlane.f32.xlu0 %v2560
      %v2652 = vpop.xlane.xlu0 %2651
      %2653 = vadd.xlane.f32.xlu0 %v2565
      %v2654 = vpop.xlane.xlu0 %2653
      %2655 = vadd.xlane.f32.xlu0 %v2570
      %v2656 = vpop.xlane.xlu0 %2655
      %2657 = vadd.xlane.f32.xlu0 %v2575
      %v2658 = vpop.xlane.xlu0 %2657
      %2659 = vadd.xlane.f32.xlu0 %v2580
      %v2660 = vpop.xlane.xlu0 %2659
      %2661 = vadd.xlane.f32.xlu0 %v2585
      %v2662 = vpop.xlane.xlu0 %2661
      %2663 = vadd.xlane.f32.xlu0 %v2590
      %v2664 = vpop.xlane.xlu0 %2663
      %2665 = vadd.xlane.f32.xlu0 %v2595
      %v2666 = vpop.xlane.xlu0 %2665
      %2667 = vadd.xlane.f32.xlu0 %v2600
      %v2668 = vpop.xlane.xlu0 %2667
      %2669 = vadd.xlane.f32.xlu0 %v2605
      %v2670 = vpop.xlane.xlu0 %2669
      %2671 = vadd.xlane.f32.xlu0 %v2610
      %v2672 = vpop.xlane.xlu0 %2671
      %2673 = vadd.xlane.f32.xlu0 %v2615
      %v2674 = vpop.xlane.xlu0 %2673
      %2675 = vadd.xlane.f32.xlu0 %v2620
      %v2676 = vpop.xlane.xlu0 %2675
      %2677 = vadd.xlane.f32.xlu0 %v2625
      %v2678 = vpop.xlane.xlu0 %2677
      %2679 = vadd.xlane.f32.xlu0 %v2630
      %v2680 = vpop.xlane.xlu0 %2679
      %v2681 = vadd.f32 %v2634, 0.0
      %v2682 = vadd.f32 %v2636, 0.0
      %v2683 = vadd.f32 %v2638, 0.0
      %v2684 = vadd.f32 %v2640, 0.0
      %v2685 = vadd.f32 %v2642, 0.0
      %v2686 = vadd.f32 %v2644, 0.0
      %v2687 = vadd.f32 %v2646, 0.0
      %v2688 = vadd.f32 %v2648, 0.0
      %v2689 = vadd.f32 %v2650, 0.0
      %v2690 = vadd.f32 %v2652, 0.0
      %v2691 = vadd.f32 %v2654, 0.0
      %v2692 = vadd.f32 %v2656, 0.0
      %v2693 = vadd.f32 %v2658, 0.0
      %v2694 = vadd.f32 %v2660, 0.0
      %v2695 = vadd.f32 %v2662, 0.0
      %v2696 = vadd.f32 %v2664, 0.0
      %v2697 = vadd.f32 %v2666, 0.0
      %v2698 = vadd.f32 %v2668, 0.0
      %v2699 = vadd.f32 %v2670, 0.0
      %v2700 = vadd.f32 %v2672, 0.0
      %v2701 = vadd.f32 %v2674, 0.0
      %v2702 = vadd.f32 %v2676, 0.0
      %v2703 = vadd.f32 %v2678, 0.0
      %v2704 = vadd.f32 %v2680, 0.0
      %v2705 = vmul.f32 %v2515, %v2515
      %v2706 = vmul.f32 %v2520, %v2520
      %v2707 = vmul.f32 %v2525, %v2525
      %v2708 = vmul.f32 %v2530, %v2530
      %v2709 = vmul.f32 %v2535, %v2535
      %v2710 = vmul.f32 %v2540, %v2540
      %v2711 = vmul.f32 %v2545, %v2545
      %v2712 = vmul.f32 %v2550, %v2550
      %v2713 = vmul.f32 %v2555, %v2555
      %v2714 = vmul.f32 %v2560, %v2560
      %v2715 = vmul.f32 %v2565, %v2565
      %v2716 = vmul.f32 %v2570, %v2570
      %v2717 = vmul.f32 %v2575, %v2575
      %v2718 = vmul.f32 %v2580, %v2580
      %v2719 = vmul.f32 %v2585, %v2585
      %v2720 = vmul.f32 %v2590, %v2590
      %v2721 = vmul.f32 %v2595, %v2595
      %v2722 = vmul.f32 %v2600, %v2600
      %v2723 = vmul.f32 %v2605, %v2605
      %v2724 = vmul.f32 %v2610, %v2610
      %v2725 = vmul.f32 %v2615, %v2615
      %v2726 = vmul.f32 %v2620, %v2620
      %v2727 = vmul.f32 %v2625, %v2625
      %v2728 = vmul.f32 %v2630, %v2630
      %2729 = vadd.xlane.f32.xlu0 %v2705
      %v2730 = vpop.xlane.xlu0 %2729
      %2731 = vadd.xlane.f32.xlu0 %v2706
      %v2732 = vpop.xlane.xlu0 %2731
      %2733 = vadd.xlane.f32.xlu0 %v2707
      %v2734 = vpop.xlane.xlu0 %2733
      %2735 = vadd.xlane.f32.xlu0 %v2708
      %v2736 = vpop.xlane.xlu0 %2735
      %2737 = vadd.xlane.f32.xlu0 %v2709
      %v2738 = vpop.xlane.xlu0 %2737
      %2739 = vadd.xlane.f32.xlu0 %v2710
      %v2740 = vpop.xlane.xlu0 %2739
      %2741 = vadd.xlane.f32.xlu0 %v2711
      %v2742 = vpop.xlane.xlu0 %2741
      %2743 = vadd.xlane.f32.xlu0 %v2712
      %v2744 = vpop.xlane.xlu0 %2743
      %2745 = vadd.xlane.f32.xlu0 %v2713
      %v2746 = vpop.xlane.xlu0 %2745
      %2747 = vadd.xlane.f32.xlu0 %v2714
      %v2748 = vpop.xlane.xlu0 %2747
      %2749 = vadd.xlane.f32.xlu0 %v2715
      %v2750 = vpop.xlane.xlu0 %2749
      %2751 = vadd.xlane.f32.xlu0 %v2716
      %v2752 = vpop.xlane.xlu0 %2751
      %2753 = vadd.xlane.f32.xlu0 %v2717
      %v2754 = vpop.xlane.xlu0 %2753
      %2755 = vadd.xlane.f32.xlu0 %v2718
      %v2756 = vpop.xlane.xlu0 %2755
      %2757 = vadd.xlane.f32.xlu0 %v2719
      %v2758 = vpop.xlane.xlu0 %2757
      %2759 = vadd.xlane.f32.xlu0 %v2720
      %v2760 = vpop.xlane.xlu0 %2759
      %2761 = vadd.xlane.f32.xlu0 %v2721
      %v2762 = vpop.xlane.xlu0 %2761
      %2763 = vadd.xlane.f32.xlu0 %v2722
      %v2764 = vpop.xlane.xlu0 %2763
      %2765 = vadd.xlane.f32.xlu0 %v2723
      %v2766 = vpop.xlane.xlu0 %2765
      %2767 = vadd.xlane.f32.xlu0 %v2724
      %v2768 = vpop.xlane.xlu0 %2767
      %2769 = vadd.xlane.f32.xlu0 %v2725
      %v2770 = vpop.xlane.xlu0 %2769
      %2771 = vadd.xlane.f32.xlu0 %v2726
      %v2772 = vpop.xlane.xlu0 %2771
      %2773 = vadd.xlane.f32.xlu0 %v2727
      %v2774 = vpop.xlane.xlu0 %2773
      %2775 = vadd.xlane.f32.xlu0 %v2728
      %v2776 = vpop.xlane.xlu0 %2775
      %v2777 = vadd.f32 %v2730, 0.0
      %v2778 = vadd.f32 %v2732, 0.0
      %v2779 = vadd.f32 %v2734, 0.0
      %v2780 = vadd.f32 %v2736, 0.0
      %v2781 = vadd.f32 %v2738, 0.0
      %v2782 = vadd.f32 %v2740, 0.0
      %v2783 = vadd.f32 %v2742, 0.0
      %v2784 = vadd.f32 %v2744, 0.0
      %v2785 = vadd.f32 %v2746, 0.0
      %v2786 = vadd.f32 %v2748, 0.0
      %v2787 = vadd.f32 %v2750, 0.0
      %v2788 = vadd.f32 %v2752, 0.0
      %v2789 = vadd.f32 %v2754, 0.0
      %v2790 = vadd.f32 %v2756, 0.0
      %v2791 = vadd.f32 %v2758, 0.0
      %v2792 = vadd.f32 %v2760, 0.0
      %v2793 = vadd.f32 %v2762, 0.0
      %v2794 = vadd.f32 %v2764, 0.0
      %v2795 = vadd.f32 %v2766, 0.0
      %v2796 = vadd.f32 %v2768, 0.0
      %v2797 = vadd.f32 %v2770, 0.0
      %v2798 = vadd.f32 %v2772, 0.0
      %v2799 = vadd.f32 %v2774, 0.0
      %v2800 = vadd.f32 %v2776, 0.0
      %v2801 = vmul.f32 %v2681, 0.020408163
      %v2802 = vmul.f32 %v2682, 0.020408163
      %v2803 = vmul.f32 %v2683, 0.020408163
      %v2804 = vmul.f32 %v2684, 0.020408163
      %v2805 = vmul.f32 %v2685, 0.020408163
      %v2806 = vmul.f32 %v2686, 0.020408163
      %v2807 = vmul.f32 %v2687, 0.020408163
      %v2808 = vmul.f32 %v2688, 0.020408163
      %v2809 = vmul.f32 %v2689, 0.020408163
      %v2810 = vmul.f32 %v2690, 0.020408163
      %v2811 = vmul.f32 %v2691, 0.020408163
      %v2812 = vmul.f32 %v2692, 0.020408163
      %v2813 = vmul.f32 %v2693, 0.020408163
      %v2814 = vmul.f32 %v2694, 0.020408163
      %v2815 = vmul.f32 %v2695, 0.020408163
      %v2816 = vmul.f32 %v2696, 0.020408163
      %v2817 = vmul.f32 %v2697, 0.020408163
      %v2818 = vmul.f32 %v2698, 0.020408163
      %v2819 = vmul.f32 %v2699, 0.020408163
      %v2820 = vmul.f32 %v2700, 0.020408163
      %v2821 = vmul.f32 %v2701, 0.020408163
      %v2822 = vmul.f32 %v2702, 0.020408163
      %v2823 = vmul.f32 %v2703, 0.020408163
      %v2824 = vmul.f32 %v2704, 0.020408163
      %v2825 = vmul.f32 %v2777, 0.020408163
      %v2826 = vmul.f32 %v2778, 0.020408163
      %v2827 = vmul.f32 %v2779, 0.020408163
      %v2828 = vmul.f32 %v2780, 0.020408163
      %v2829 = vmul.f32 %v2781, 0.020408163
      %v2830 = vmul.f32 %v2782, 0.020408163
      %v2831 = vmul.f32 %v2783, 0.020408163
      %v2832 = vmul.f32 %v2784, 0.020408163
      %v2833 = vmul.f32 %v2785, 0.020408163
      %v2834 = vmul.f32 %v2786, 0.020408163
      %v2835 = vmul.f32 %v2787, 0.020408163
      %v2836 = vmul.f32 %v2788, 0.020408163
      %v2837 = vmul.f32 %v2789, 0.020408163
      %v2838 = vmul.f32 %v2790, 0.020408163
      %v2839 = vmul.f32 %v2791, 0.020408163
      %v2840 = vmul.f32 %v2792, 0.020408163
      %v2841 = vmul.f32 %v2793, 0.020408163
      %v2842 = vmul.f32 %v2794, 0.020408163
      %v2843 = vmul.f32 %v2795, 0.020408163
      %v2844 = vmul.f32 %v2796, 0.020408163
      %v2845 = vmul.f32 %v2797, 0.020408163
      %v2846 = vmul.f32 %v2798, 0.020408163
      %v2847 = vmul.f32 %v2799, 0.020408163
      %v2848 = vmul.f32 %v2800, 0.020408163
      %v2849 = vmul.f32 %v2801, %v2801
      %v2850 = vmul.f32 %v2802, %v2802
      %v2851 = vmul.f32 %v2803, %v2803
      %v2852 = vmul.f32 %v2804, %v2804
      %v2853 = vmul.f32 %v2805, %v2805
      %v2854 = vmul.f32 %v2806, %v2806
      %v2855 = vmul.f32 %v2807, %v2807
      %v2856 = vmul.f32 %v2808, %v2808
      %v2857 = vmul.f32 %v2809, %v2809
      %v2858 = vmul.f32 %v2810, %v2810
      %v2859 = vmul.f32 %v2811, %v2811
      %v2860 = vmul.f32 %v2812, %v2812
      %v2861 = vmul.f32 %v2813, %v2813
      %v2862 = vmul.f32 %v2814, %v2814
      %v2863 = vmul.f32 %v2815, %v2815
      %v2864 = vmul.f32 %v2816, %v2816
      %v2865 = vmul.f32 %v2817, %v2817
      %v2866 = vmul.f32 %v2818, %v2818
      %v2867 = vmul.f32 %v2819, %v2819
      %v2868 = vmul.f32 %v2820, %v2820
      %v2869 = vmul.f32 %v2821, %v2821
      %v2870 = vmul.f32 %v2822, %v2822
      %v2871 = vmul.f32 %v2823, %v2823
      %v2872 = vmul.f32 %v2824, %v2824
      %v2873 = vsub.f32 %v2825, %v2849
      %v2874 = vsub.f32 %v2826, %v2850
      %v2875 = vsub.f32 %v2827, %v2851
      %v2876 = vsub.f32 %v2828, %v2852
      %v2877 = vsub.f32 %v2829, %v2853
      %v2878 = vsub.f32 %v2830, %v2854
      %v2879 = vsub.f32 %v2831, %v2855
      %v2880 = vsub.f32 %v2832, %v2856
      %v2881 = vsub.f32 %v2833, %v2857
      %v2882 = vsub.f32 %v2834, %v2858
      %v2883 = vsub.f32 %v2835, %v2859
      %v2884 = vsub.f32 %v2836, %v2860
      %v2885 = vsub.f32 %v2837, %v2861
      %v2886 = vsub.f32 %v2838, %v2862
      %v2887 = vsub.f32 %v2839, %v2863
      %v2888 = vsub.f32 %v2840, %v2864
      %v2889 = vsub.f32 %v2841, %v2865
      %v2890 = vsub.f32 %v2842, %v2866
      %v2891 = vsub.f32 %v2843, %v2867
      %v2892 = vsub.f32 %v2844, %v2868
      %v2893 = vsub.f32 %v2845, %v2869
      %v2894 = vsub.f32 %v2846, %v2870
      %v2895 = vsub.f32 %v2847, %v2871
      %v2896 = vsub.f32 %v2848, %v2872
      %v2897 = vmax.f32 %v2873, 0.0
      %v2898 = vmax.f32 %v2874, 0.0
      %v2899 = vmax.f32 %v2875, 0.0
      %v2900 = vmax.f32 %v2876, 0.0
      %v2901 = vmax.f32 %v2877, 0.0
      %v2902 = vmax.f32 %v2878, 0.0
      %v2903 = vmax.f32 %v2879, 0.0
      %v2904 = vmax.f32 %v2880, 0.0
      %v2905 = vmax.f32 %v2881, 0.0
      %v2906 = vmax.f32 %v2882, 0.0
      %v2907 = vmax.f32 %v2883, 0.0
      %v2908 = vmax.f32 %v2884, 0.0
      %v2909 = vmax.f32 %v2885, 0.0
      %v2910 = vmax.f32 %v2886, 0.0
      %v2911 = vmax.f32 %v2887, 0.0
      %v2912 = vmax.f32 %v2888, 0.0
      %v2913 = vmax.f32 %v2889, 0.0
      %v2914 = vmax.f32 %v2890, 0.0
      %v2915 = vmax.f32 %v2891, 0.0
      %v2916 = vmax.f32 %v2892, 0.0
      %v2917 = vmax.f32 %v2893, 0.0
      %v2918 = vmax.f32 %v2894, 0.0
      %v2919 = vmax.f32 %v2895, 0.0
      %v2920 = vmax.f32 %v2896, 0.0
      %v2921 = vld [vmem:[%s234] sm:$0xff]
      %v2922 = vld [vmem:[%s234 + $0x8] sm:$0xff]
      %v2923 = vld [vmem:[%s234 + $0x10] sm:$0xff]
      %v2924 = vld [vmem:[%s234 + $0x18] sm:$0xff]
      %v2925 = vld [vmem:[%s234 + $0x20] sm:$0xff]
      %v2926 = vld [vmem:[%s234 + $0x28] sm:$0xff]
      %v2927 = vld [vmem:[%s234 + $0x30] sm:$0xff]
      %v2928 = vld [vmem:[%s234 + $0x38] sm:$0xff]
      %v2929 = vld [vmem:[%s234 + $0x40] sm:$0xff]
      %v2930 = vld [vmem:[%s234 + $0x48] sm:$0xff]
      %v2931 = vld [vmem:[%s234 + $0x50] sm:$0xff]
      %v2932 = vld [vmem:[%s234 + $0x58] sm:$0xff]
      %v2933 = vld [vmem:[%s234 + $0x60] sm:$0xff]
      %v2934 = vld [vmem:[%s234 + $0x68] sm:$0xff]
      %v2935 = vld [vmem:[%s234 + $0x70] sm:$0xff]
      %v2936 = vld [vmem:[%s234 + $0x78] sm:$0xff]
      %v2937 = vld [vmem:[%s234 + $0x80] sm:$0xff]
      %v2938 = vld [vmem:[%s234 + $0x88] sm:$0xff]
      %v2939 = vld [vmem:[%s234 + $0x90] sm:$0xff]
      %v2940 = vld [vmem:[%s234 + $0x98] sm:$0xff]
      %v2941 = vld [vmem:[%s234 + $0xa0] sm:$0xff]
      %v2942 = vld [vmem:[%s234 + $0xa8] sm:$0xff]
      %v2943 = vld [vmem:[%s234 + $0xb0] sm:$0xff]
      %v2944 = vld [vmem:[%s234 + $0xb8] sm:$0xff]
      %v2945 = vadd.f32 %v2897, 1e-05
      %v2946 = vadd.f32 %v2898, 1e-05
      %v2947 = vadd.f32 %v2899, 1e-05
      %v2948 = vadd.f32 %v2900, 1e-05
      %v2949 = vadd.f32 %v2901, 1e-05
      %v2950 = vadd.f32 %v2902, 1e-05
      %v2951 = vadd.f32 %v2903, 1e-05
      %v2952 = vadd.f32 %v2904, 1e-05
      %v2953 = vadd.f32 %v2905, 1e-05
      %v2954 = vadd.f32 %v2906, 1e-05
      %v2955 = vadd.f32 %v2907, 1e-05
      %v2956 = vadd.f32 %v2908, 1e-05
      %v2957 = vadd.f32 %v2909, 1e-05
      %v2958 = vadd.f32 %v2910, 1e-05
      %v2959 = vadd.f32 %v2911, 1e-05
      %v2960 = vadd.f32 %v2912, 1e-05
      %v2961 = vadd.f32 %v2913, 1e-05
      %v2962 = vadd.f32 %v2914, 1e-05
      %v2963 = vadd.f32 %v2915, 1e-05
      %v2964 = vadd.f32 %v2916, 1e-05
      %v2965 = vadd.f32 %v2917, 1e-05
      %v2966 = vadd.f32 %v2918, 1e-05
      %v2967 = vadd.f32 %v2919, 1e-05
      %v2968 = vadd.f32 %v2920, 1e-05
      %v2969 = vrsqrt.pop %v2945
      %v2970 = vrsqrt.pop %v2946
      %v2971 = vrsqrt.pop %v2947
      %v2972 = vrsqrt.pop %v2948
      %v2973 = vrsqrt.pop %v2949
      %v2974 = vrsqrt.pop %v2950
      %v2975 = vrsqrt.pop %v2951
      %v2976 = vrsqrt.pop %v2952
      %v2977 = vrsqrt.pop %v2953
      %v2978 = vrsqrt.pop %v2954
      %v2979 = vrsqrt.pop %v2955
      %v2980 = vrsqrt.pop %v2956
      %v2981 = vrsqrt.pop %v2957
      %v2982 = vrsqrt.pop %v2958
      %v2983 = vrsqrt.pop %v2959
      %v2984 = vrsqrt.pop %v2960
      %v2985 = vrsqrt.pop %v2961
      %v2986 = vrsqrt.pop %v2962
      %v2987 = vrsqrt.pop %v2963
      %v2988 = vrsqrt.pop %v2964
      %v2989 = vrsqrt.pop %v2965
      %v2990 = vrsqrt.pop %v2966
      %v2991 = vrsqrt.pop %v2967
      %v2992 = vrsqrt.pop %v2968
      %v2993 = vmul.f32 %v2921, %v2969
      %v2994 = vmul.f32 %v2922, %v2970
      %v2995 = vmul.f32 %v2923, %v2971
      %v2996 = vmul.f32 %v2924, %v2972
      %v2997 = vmul.f32 %v2925, %v2973
      %v2998 = vmul.f32 %v2926, %v2974
      %v2999 = vmul.f32 %v2927, %v2975
      %v3000 = vmul.f32 %v2928, %v2976
      %v3001 = vmul.f32 %v2929, %v2977
      %v3002 = vmul.f32 %v2930, %v2978
      %v3003 = vmul.f32 %v2931, %v2979
      %v3004 = vmul.f32 %v2932, %v2980
      %v3005 = vmul.f32 %v2933, %v2981
      %v3006 = vmul.f32 %v2934, %v2982
      %v3007 = vmul.f32 %v2935, %v2983
      %v3008 = vmul.f32 %v2936, %v2984
      %v3009 = vmul.f32 %v2937, %v2985
      %v3010 = vmul.f32 %v2938, %v2986
      %v3011 = vmul.f32 %v2939, %v2987
      %v3012 = vmul.f32 %v2940, %v2988
      %v3013 = vmul.f32 %v2941, %v2989
      %v3014 = vmul.f32 %v2942, %v2990
      %v3015 = vmul.f32 %v2943, %v2991
      %v3016 = vmul.f32 %v2944, %v2992
      %v3017 = vld [vmem:[%s240] sm:$0xff]
      %v3018 = vld [vmem:[%s240 + $0x8] sm:$0xff]
      %v3019 = vld [vmem:[%s240 + $0x10] sm:$0xff]
      %v3020 = vld [vmem:[%s240 + $0x18] sm:$0xff]
      %v3021 = vld [vmem:[%s240 + $0x20] sm:$0xff]
      %v3022 = vld [vmem:[%s240 + $0x28] sm:$0xff]
      %v3023 = vld [vmem:[%s240 + $0x30] sm:$0xff]
      %v3024 = vld [vmem:[%s240 + $0x38] sm:$0xff]
      %v3025 = vld [vmem:[%s240 + $0x40] sm:$0xff]
      %v3026 = vld [vmem:[%s240 + $0x48] sm:$0xff]
      %v3027 = vld [vmem:[%s240 + $0x50] sm:$0xff]
      %v3028 = vld [vmem:[%s240 + $0x58] sm:$0xff]
      %v3029 = vld [vmem:[%s240 + $0x60] sm:$0xff]
      %v3030 = vld [vmem:[%s240 + $0x68] sm:$0xff]
      %v3031 = vld [vmem:[%s240 + $0x70] sm:$0xff]
      %v3032 = vld [vmem:[%s240 + $0x78] sm:$0xff]
      %v3033 = vld [vmem:[%s240 + $0x80] sm:$0xff]
      %v3034 = vld [vmem:[%s240 + $0x88] sm:$0xff]
      %v3035 = vld [vmem:[%s240 + $0x90] sm:$0xff]
      %v3036 = vld [vmem:[%s240 + $0x98] sm:$0xff]
      %v3037 = vld [vmem:[%s240 + $0xa0] sm:$0xff]
      %v3038 = vld [vmem:[%s240 + $0xa8] sm:$0xff]
      %v3039 = vld [vmem:[%s240 + $0xb0] sm:$0xff]
      %v3040 = vld [vmem:[%s240 + $0xb8] sm:$0xff]
      %v3041 = vmul.f32 %v2801, %v2993
      %v3042 = vmul.f32 %v2802, %v2994
      %v3043 = vmul.f32 %v2803, %v2995
      %v3044 = vmul.f32 %v2804, %v2996
      %v3045 = vmul.f32 %v2805, %v2997
      %v3046 = vmul.f32 %v2806, %v2998
      %v3047 = vmul.f32 %v2807, %v2999
      %v3048 = vmul.f32 %v2808, %v3000
      %v3049 = vmul.f32 %v2809, %v3001
      %v3050 = vmul.f32 %v2810, %v3002
      %v3051 = vmul.f32 %v2811, %v3003
      %v3052 = vmul.f32 %v2812, %v3004
      %v3053 = vmul.f32 %v2813, %v3005
      %v3054 = vmul.f32 %v2814, %v3006
      %v3055 = vmul.f32 %v2815, %v3007
      %v3056 = vmul.f32 %v2816, %v3008
      %v3057 = vmul.f32 %v2817, %v3009
      %v3058 = vmul.f32 %v2818, %v3010
      %v3059 = vmul.f32 %v2819, %v3011
      %v3060 = vmul.f32 %v2820, %v3012
      %v3061 = vmul.f32 %v2821, %v3013
      %v3062 = vmul.f32 %v2822, %v3014
      %v3063 = vmul.f32 %v2823, %v3015
      %v3064 = vmul.f32 %v2824, %v3016
      %v3065 = vsub.f32 %v3017, %v3041
      %v3066 = vsub.f32 %v3018, %v3042
      %v3067 = vsub.f32 %v3019, %v3043
      %v3068 = vsub.f32 %v3020, %v3044
      %v3069 = vsub.f32 %v3021, %v3045
      %v3070 = vsub.f32 %v3022, %v3046
      %v3071 = vsub.f32 %v3023, %v3047
      %v3072 = vsub.f32 %v3024, %v3048
      %v3073 = vsub.f32 %v3025, %v3049
      %v3074 = vsub.f32 %v3026, %v3050
      %v3075 = vsub.f32 %v3027, %v3051
      %v3076 = vsub.f32 %v3028, %v3052
      %v3077 = vsub.f32 %v3029, %v3053
      %v3078 = vsub.f32 %v3030, %v3054
      %v3079 = vsub.f32 %v3031, %v3055
      %v3080 = vsub.f32 %v3032, %v3056
      %v3081 = vsub.f32 %v3033, %v3057
      %v3082 = vsub.f32 %v3034, %v3058
      %v3083 = vsub.f32 %v3035, %v3059
      %v3084 = vsub.f32 %v3036, %v3060
      %v3085 = vsub.f32 %v3037, %v3061
      %v3086 = vsub.f32 %v3038, %v3062
      %v3087 = vsub.f32 %v3039, %v3063
      %v3088 = vsub.f32 %v3040, %v3064
      %3090 = vset.pattern.permute.xlu0 0
      %3091 = vperm.xlu0 %3090, %v2993
      %v3092 = vpop.permute.xlu0 %3091
      %3095 = vset.pattern.permute.xlu0 0
      %3096 = vperm.xlu0 %3095, %v2994
      %v3097 = vpop.permute.xlu0 %3096
      %3100 = vset.pattern.permute.xlu0 0
      %3101 = vperm.xlu0 %3100, %v2995
      %v3102 = vpop.permute.xlu0 %3101
      %3105 = vset.pattern.permute.xlu0 0
      %3106 = vperm.xlu0 %3105, %v2996
      %v3107 = vpop.permute.xlu0 %3106
      %3110 = vset.pattern.permute.xlu0 0
      %3111 = vperm.xlu0 %3110, %v2997
      %v3112 = vpop.permute.xlu0 %3111
      %3115 = vset.pattern.permute.xlu0 0
      %3116 = vperm.xlu0 %3115, %v2998
      %v3117 = vpop.permute.xlu0 %3116
      %3120 = vset.pattern.permute.xlu0 0
      %3121 = vperm.xlu0 %3120, %v2999
      %v3122 = vpop.permute.xlu0 %3121
      %3125 = vset.pattern.permute.xlu0 0
      %3126 = vperm.xlu0 %3125, %v3000
      %v3127 = vpop.permute.xlu0 %3126
      %3130 = vset.pattern.permute.xlu0 0
      %3131 = vperm.xlu0 %3130, %v3001
      %v3132 = vpop.permute.xlu0 %3131
      %3135 = vset.pattern.permute.xlu0 0
      %3136 = vperm.xlu0 %3135, %v3002
      %v3137 = vpop.permute.xlu0 %3136
      %3140 = vset.pattern.permute.xlu0 0
      %3141 = vperm.xlu0 %3140, %v3003
      %v3142 = vpop.permute.xlu0 %3141
      %3145 = vset.pattern.permute.xlu0 0
      %3146 = vperm.xlu0 %3145, %v3004
      %v3147 = vpop.permute.xlu0 %3146
      %3150 = vset.pattern.permute.xlu0 0
      %3151 = vperm.xlu0 %3150, %v3005
      %v3152 = vpop.permute.xlu0 %3151
      %3155 = vset.pattern.permute.xlu0 0
      %3156 = vperm.xlu0 %3155, %v3006
      %v3157 = vpop.permute.xlu0 %3156
      %3160 = vset.pattern.permute.xlu0 0
      %3161 = vperm.xlu0 %3160, %v3007
      %v3162 = vpop.permute.xlu0 %3161
      %3165 = vset.pattern.permute.xlu0 0
      %3166 = vperm.xlu0 %3165, %v3008
      %v3167 = vpop.permute.xlu0 %3166
      %3170 = vset.pattern.permute.xlu0 0
      %3171 = vperm.xlu0 %3170, %v3009
      %v3172 = vpop.permute.xlu0 %3171
      %3175 = vset.pattern.permute.xlu0 0
      %3176 = vperm.xlu0 %3175, %v3010
      %v3177 = vpop.permute.xlu0 %3176
      %3180 = vset.pattern.permute.xlu0 0
      %3181 = vperm.xlu0 %3180, %v3011
      %v3182 = vpop.permute.xlu0 %3181
      %3185 = vset.pattern.permute.xlu0 0
      %3186 = vperm.xlu0 %3185, %v3012
      %v3187 = vpop.permute.xlu0 %3186
      %3190 = vset.pattern.permute.xlu0 0
      %3191 = vperm.xlu0 %3190, %v3013
      %v3192 = vpop.permute.xlu0 %3191
      %3195 = vset.pattern.permute.xlu0 0
      %3196 = vperm.xlu0 %3195, %v3014
      %v3197 = vpop.permute.xlu0 %3196
      %3200 = vset.pattern.permute.xlu0 0
      %3201 = vperm.xlu0 %3200, %v3015
      %v3202 = vpop.permute.xlu0 %3201
      %3205 = vset.pattern.permute.xlu0 0
      %3206 = vperm.xlu0 %3205, %v3016
      %v3207 = vpop.permute.xlu0 %3206
      %v3209 = vmul.f32 %v2515, %v3092
      %v3210 = vmul.f32 %v2520, %v3097
      %v3211 = vmul.f32 %v2525, %v3102
      %v3212 = vmul.f32 %v2530, %v3107
      %v3213 = vmul.f32 %v2535, %v3112
      %v3214 = vmul.f32 %v2540, %v3117
      %v3215 = vmul.f32 %v2545, %v3122
      %v3216 = vmul.f32 %v2550, %v3127
      %v3217 = vmul.f32 %v2555, %v3132
      %v3218 = vmul.f32 %v2560, %v3137
      %v3219 = vmul.f32 %v2565, %v3142
      %v3220 = vmul.f32 %v2570, %v3147
      %v3221 = vmul.f32 %v2575, %v3152
      %v3222 = vmul.f32 %v2580, %v3157
      %v3223 = vmul.f32 %v2585, %v3162
      %v3224 = vmul.f32 %v2590, %v3167
      %v3225 = vmul.f32 %v2595, %v3172
      %v3226 = vmul.f32 %v2600, %v3177
      %v3227 = vmul.f32 %v2605, %v3182
      %v3228 = vmul.f32 %v2610, %v3187
      %v3229 = vmul.f32 %v2615, %v3192
      %v3230 = vmul.f32 %v2620, %v3197
      %v3231 = vmul.f32 %v2625, %v3202
      %v3232 = vmul.f32 %v2630, %v3207
      %3234 = vset.pattern.permute.xlu0 0
      %3235 = vperm.xlu0 %3234, %v3065
      %v3236 = vpop.permute.xlu0 %3235
      %3239 = vset.pattern.permute.xlu0 0
      %3240 = vperm.xlu0 %3239, %v3066
      %v3241 = vpop.permute.xlu0 %3240
      %3244 = vset.pattern.permute.xlu0 0
      %3245 = vperm.xlu0 %3244, %v3067
      %v3246 = vpop.permute.xlu0 %3245
      %3249 = vset.pattern.permute.xlu0 0
      %3250 = vperm.xlu0 %3249, %v3068
      %v3251 = vpop.permute.xlu0 %3250
      %3254 = vset.pattern.permute.xlu0 0
      %3255 = vperm.xlu0 %3254, %v3069
      %v3256 = vpop.permute.xlu0 %3255
      %3259 = vset.pattern.permute.xlu0 0
      %3260 = vperm.xlu0 %3259, %v3070
      %v3261 = vpop.permute.xlu0 %3260
      %3264 = vset.pattern.permute.xlu0 0
      %3265 = vperm.xlu0 %3264, %v3071
      %v3266 = vpop.permute.xlu0 %3265
      %3269 = vset.pattern.permute.xlu0 0
      %3270 = vperm.xlu0 %3269, %v3072
      %v3271 = vpop.permute.xlu0 %3270
      %3274 = vset.pattern.permute.xlu0 0
      %3275 = vperm.xlu0 %3274, %v3073
      %v3276 = vpop.permute.xlu0 %3275
      %3279 = vset.pattern.permute.xlu0 0
      %3280 = vperm.xlu0 %3279, %v3074
      %v3281 = vpop.permute.xlu0 %3280
      %3284 = vset.pattern.permute.xlu0 0
      %3285 = vperm.xlu0 %3284, %v3075
      %v3286 = vpop.permute.xlu0 %3285
      %3289 = vset.pattern.permute.xlu0 0
      %3290 = vperm.xlu0 %3289, %v3076
      %v3291 = vpop.permute.xlu0 %3290
      %3294 = vset.pattern.permute.xlu0 0
      %3295 = vperm.xlu0 %3294, %v3077
      %v3296 = vpop.permute.xlu0 %3295
      %3299 = vset.pattern.permute.xlu0 0
      %3300 = vperm.xlu0 %3299, %v3078
      %v3301 = vpop.permute.xlu0 %3300
      %3304 = vset.pattern.permute.xlu0 0
      %3305 = vperm.xlu0 %3304, %v3079
      %v3306 = vpop.permute.xlu0 %3305
      %3309 = vset.pattern.permute.xlu0 0
      %3310 = vperm.xlu0 %3309, %v3080
      %v3311 = vpop.permute.xlu0 %3310
      %3314 = vset.pattern.permute.xlu0 0
      %3315 = vperm.xlu0 %3314, %v3081
      %v3316 = vpop.permute.xlu0 %3315
      %3319 = vset.pattern.permute.xlu0 0
      %3320 = vperm.xlu0 %3319, %v3082
      %v3321 = vpop.permute.xlu0 %3320
      %3324 = vset.pattern.permute.xlu0 0
      %3325 = vperm.xlu0 %3324, %v3083
      %v3326 = vpop.permute.xlu0 %3325
      %3329 = vset.pattern.permute.xlu0 0
      %3330 = vperm.xlu0 %3329, %v3084
      %v3331 = vpop.permute.xlu0 %3330
      %3334 = vset.pattern.permute.xlu0 0
      %3335 = vperm.xlu0 %3334, %v3085
      %v3336 = vpop.permute.xlu0 %3335
      %3339 = vset.pattern.permute.xlu0 0
      %3340 = vperm.xlu0 %3339, %v3086
      %v3341 = vpop.permute.xlu0 %3340
      %3344 = vset.pattern.permute.xlu0 0
      %3345 = vperm.xlu0 %3344, %v3087
      %v3346 = vpop.permute.xlu0 %3345
      %3349 = vset.pattern.permute.xlu0 0
      %3350 = vperm.xlu0 %3349, %v3088
      %v3351 = vpop.permute.xlu0 %3350
      %v3353 = vadd.f32 %v3209, %v3236
      %v3354 = vadd.f32 %v3210, %v3241
      %v3355 = vadd.f32 %v3211, %v3246
      %v3356 = vadd.f32 %v3212, %v3251
      %v3357 = vadd.f32 %v3213, %v3256
      %v3358 = vadd.f32 %v3214, %v3261
      %v3359 = vadd.f32 %v3215, %v3266
      %v3360 = vadd.f32 %v3216, %v3271
      %v3361 = vadd.f32 %v3217, %v3276
      %v3362 = vadd.f32 %v3218, %v3281
      %v3363 = vadd.f32 %v3219, %v3286
      %v3364 = vadd.f32 %v3220, %v3291
      %v3365 = vadd.f32 %v3221, %v3296
      %v3366 = vadd.f32 %v3222, %v3301
      %v3367 = vadd.f32 %v3223, %v3306
      %v3368 = vadd.f32 %v3224, %v3311
      %v3369 = vadd.f32 %v3225, %v3316
      %v3370 = vadd.f32 %v3226, %v3321
      %v3371 = vadd.f32 %v3227, %v3326
      %v3372 = vadd.f32 %v3228, %v3331
      %v3373 = vadd.f32 %v3229, %v3336
      %v3374 = vadd.f32 %v3230, %v3341
      %v3375 = vadd.f32 %v3231, %v3346
      %v3376 = vadd.f32 %v3232, %v3351
      %3377 = vst [vmem:[%s246] sm:$0xff] %v3353
      %3378 = vst [vmem:[%s246 + $0x8] sm:$0xff] %v3354
      %3379 = vst [vmem:[%s246 + $0x10] sm:$0xff] %v3355
      %3380 = vst [vmem:[%s246 + $0x18] sm:$0xff] %v3356
      %3381 = vst [vmem:[%s246 + $0x20] sm:$0xff] %v3357
      %3382 = vst [vmem:[%s246 + $0x28] sm:$0xff] %v3358
      %3383 = vst [vmem:[%s246 + $0x30] sm:$0xff] %v3359
      %3384 = vst [vmem:[%s246 + $0x38] sm:$0xff] %v3360
      %3385 = vst [vmem:[%s246 + $0x40] sm:$0xff] %v3361
      %3386 = vst [vmem:[%s246 + $0x48] sm:$0xff] %v3362
      %3387 = vst [vmem:[%s246 + $0x50] sm:$0xff] %v3363
      %3388 = vst [vmem:[%s246 + $0x58] sm:$0xff] %v3364
      %3389 = vst [vmem:[%s246 + $0x60] sm:$0xff] %v3365
      %3390 = vst [vmem:[%s246 + $0x68] sm:$0xff] %v3366
      %3391 = vst [vmem:[%s246 + $0x70] sm:$0xff] %v3367
      %3392 = vst [vmem:[%s246 + $0x78] sm:$0xff] %v3368
      %3393 = vst [vmem:[%s246 + $0x80] sm:$0xff] %v3369
      %3394 = vst [vmem:[%s246 + $0x88] sm:$0xff] %v3370
      %3395 = vst [vmem:[%s246 + $0x90] sm:$0xff] %v3371
      %3396 = vst [vmem:[%s246 + $0x98] sm:$0xff] %v3372
      %3397 = vst [vmem:[%s246 + $0xa0] sm:$0xff] %v3373
      %3398 = vst [vmem:[%s246 + $0xa8] sm:$0xff] %v3374
      %3399 = vst [vmem:[%s246 + $0xb0] sm:$0xff] %v3375
      %3400 = vst [vmem:[%s246 + $0xb8] sm:$0xff] %v3376
      %s3401 = smul.u32 24, %s15
      %p3402 = scmp.lt.s32.totalorder %s3401, 47
      %s3403 = scalar_select %p3402, %s3401, 47
      %s3404 = smul.addr %s3403, 8
      %s3405 = scalar_lea.vmem %s4, %s3404
      // Predicated region
      $region37: #{conv1x1_batchnorm.1} parent=35 // pred_check
        %p3406 = pneg %p132
      $region38: #{conv1x1_batchnorm.1} parent=35 // pred_check_branch
        %3408 = sbr.rel (%p3406) target = $region40
      $region39: #{conv1x1_batchnorm.1} parent=35 // pred_region
        %s3409 = smul.u32 24, %s15
      $region40: #{conv1x1_batchnorm.1} parent=35 // pred_fallthru
        _
    $region36: #{conv1x1_batchnorm.1} parent=5 // pred_fallthru
      _
    %p3410 = scmp.le.s32.totalorder 2, %s10
    // Predicated region
    $region41: #{conv1x1_batchnorm.1} parent=5 // pred_check
      %p3411 = pneg %p3410
    $region42: #{conv1x1_batchnorm.1} parent=5 // pred_check_branch
      %3413 = sbr.rel (%p3411) target = $region44
    $region43: #{conv1x1_batchnorm.1} parent=5 // pred_region
      %s3414 = ssub.s32 %s10, 2
      // Predicated region
      $region45: #{conv1x1_batchnorm.1} parent=43 // pred_check
        %p3415 = pneg %p138
      $region46: #{conv1x1_batchnorm.1} parent=43 // pred_check_branch
        %3417 = sbr.rel (%p3415) target = $region48
      $region47: #{conv1x1_batchnorm.1} parent=43 // pred_region
        %s3418 = smul.u32 24, %s16
        %p3419 = scmp.lt.s32.totalorder %s3418, 47
        %s3420 = scalar_select %p3419, %s3418, 47
        %s3421 = smul.addr %s3420, 8
        %s3422 = scalar_lea.vmem %s4, %s3421
      $region48: #{conv1x1_batchnorm.1} parent=43 // pred_fallthru
        _
    $region44: #{conv1x1_batchnorm.1} parent=5 // pred_fallthru
      _
  $region6: #{conv1x1_batchnorm.1} parent=0 // loop_footer
    %s14 = sadd.s32 1, %s10
  $region7: #{conv1x1_batchnorm.1} parent=0 // loop_footer_branch
    %9 = sbr.rel target = $region3
  $region8: #{conv1x1_batchnorm.1} parent=0 // loop_exit
    _

</llo_original>
